<compile_context>
chip_gen: v5e
topology: v5e:2x2
jax: 0.10.0
libtpu: 0.0.40
codegen_flags: <defaults>
</compile_context>

<pallas_src>
import functools

import jax
import jax.numpy as jnp
from jax.experimental import pallas as pl
from jax.experimental.pallas import tpu as pltpu


# ----------------------------- fused Pallas kernel -----------------------------


def _fused_down_block_kernel(
    x_ref, temb_ref,
    gin_ref, gin_t_ref, gout_ref, gout_t_ref,   # (C, groups) / (groups, C) group indicators
    *rest,
    shortcut_flags, groups, eps, n_pad, compute_dtype,
):
    out_ref = rest[-1]                  # (num_layers + 1, Bpad, n_pad)
    it = iter(rest[:-1])                # per-layer params, then downsample W/b

    gin, gin_t = gin_ref[...], gin_t_ref[...]
    gout, gout_t = gout_ref[...], gout_t_ref[...]

    x = x_ref[...].astype(jnp.float32)
    bpad = x.shape[0]

    # SiLU(temb) hoisted: computed once, reused by every layer's time projection.
    t = temb_ref[...].astype(jnp.float32)
    t = (t * jax.nn.sigmoid(t)).astype(compute_dtype)

    gsz_out = float(gout.shape[0] // groups)

    def group_norm(h, gamma, beta, g_mat, g_t, gsz):
        # Per-group sum of x and x^2 fused into ONE small matmul against the (C, groups)
        # indicator; mean / inv_std broadcast back per channel with one more small matmul.
        stacked = jnp.concatenate([h, h * h], axis=0)                       # (2B, C)
        sums = jnp.dot(stacked, g_mat, preferred_element_type=jnp.float32,
                       precision=jax.lax.Precision.HIGHEST)                 # (2B, G)
        mean = sums[:bpad] / gsz
        ex2 = sums[bpad:] / gsz
        var = jnp.maximum(ex2 - mean * mean, 0.0)
        inv = jax.lax.rsqrt(var + eps)
        stats = jnp.concatenate([mean, inv], axis=0)                        # (2B, G)
        bc = jnp.dot(stats, g_t, preferred_element_type=jnp.float32,
                     precision=jax.lax.Precision.HIGHEST)                   # (2B, C)
        return (h - bc[:bpad]) * bc[bpad:] * gamma + beta

    def silu(v):
        return v * jax.nn.sigmoid(v)

    def lane_pad(v):
        n = v.shape[-1]
        if n == n_pad:
            return v
        return jnp.concatenate(
            [v, jnp.zeros((v.shape[0], n_pad - n), v.dtype)], axis=-1)

    h = x
    num_layers = len(shortcut_flags)
    for li, has_shortcut in enumerate(shortcut_flags):
        g1 = next(it)[...]; b1 = next(it)[...]
        w1 = next(it)[...]; c1b = next(it)[...]
        wt = next(it)[...]; tb = next(it)[...]
        g2 = next(it)[...]; b2 = next(it)[...]
        w2 = next(it)[...]; c2b = next(it)[...]
        if has_shortcut:
            ws = next(it)[...]; sb = next(it)[...]

        if li == 0:
            n1_mat, n1_t, n1_gsz = gin, gin_t, float(gin.shape[0] // groups)
        else:
            n1_mat, n1_t, n1_gsz = gout, gout_t, gsz_out

        # GroupNorm1 -> SiLU -> conv1 (1x1 conv == matmul, bf16 on MXU, f32 accum)
        hh = group_norm(h, g1, b1, n1_mat, n1_t, n1_gsz)
        hh = silu(hh)
        hh = jnp.dot(hh.astype(compute_dtype), w1,
                     preferred_element_type=jnp.float32) + c1b
        # time embedding projection (SiLU already applied to temb above)
        hh = hh + jnp.dot(t, wt, preferred_element_type=jnp.float32) + tb
        # GroupNorm2 -> SiLU -> (dropout is identity in eval) -> conv2
        hh = group_norm(hh, g2, b2, gout, gout_t, gsz_out)
        hh = silu(hh)
        hh = jnp.dot(hh.astype(compute_dtype), w2,
                     preferred_element_type=jnp.float32) + c2b

        if has_shortcut:
            short = jnp.dot(h.astype(compute_dtype), ws,
                            preferred_element_type=jnp.float32) + sb
        else:
            short = h                    # identity shortcut: no matmul, no eye() DMA

        h = short + hh
        out_ref[li] = lane_pad(h).astype(out_ref.dtype)   # full-vreg, lane-dense store

    # LinearMultiDim downsampler, fused in the same kernel
    dw = next(it)[...]; db = next(it)[...]
    d = jnp.dot(h.astype(compute_dtype), dw, preferred_element_type=jnp.float32) + db
    out_ref[num_layers] = lane_pad(d).astype(out_ref.dtype)


# ----------------------------- pallas_call wrapper -----------------------------


def _full_spec(shape):
    nd = len(shape)
    return pl.BlockSpec(shape, lambda i, _nd=nd: (0,) * _nd)


def _round_up(x, m):
    return ((x + m - 1) // m) * m


def _group_indicator(C, groups):
    gsz = C // groups
    gid = jnp.arange(C) // gsz
    return (gid[:, None] == jnp.arange(groups)[None, :]).astype(jnp.float32)  # (C, groups)


def down_block_flat_forward(hidden_states, temb, params, *, out_channels, second_dim,
                            groups, eps, compute_dtype=jnp.bfloat16):
    """Mirrors DownBlockFlat.forward: returns (hidden_states, output_states)."""
    B = hidden_states.shape[0]
    x2d = hidden_states.reshape(B, -1)           # (B, Cin*second_dim*1)
    cin = x2d.shape[1]
    cout = out_channels * second_dim
    num_layers = len(params["resnets"])
    num_out = num_layers + 1

    bpad = max(8, _round_up(B, 8))               # sublane-pad the batch
    n_pad = _round_up(cout, 128)                 # lane-pad the output channel dim

    x_pad = jnp.zeros((bpad, cin), x2d.dtype).at[:B].set(x2d)
    t_pad = jnp.zeros((bpad, temb.shape[1]), temb.dtype).at[:B].set(temb)

    gin = _group_indicator(cin, groups)
    gout = _group_indicator(cout, groups)

    args = [x_pad, t_pad, gin, gin.T, gout, gout.T]
    shortcut_flags = []
    for p in params["resnets"]:
        has_sc = "ws" in p
        shortcut_flags.append(has_sc)
        args += [p["g1"], p["b1"],
                 p["w1"].astype(compute_dtype), p["c1b"],
                 p["wt"].astype(compute_dtype), p["tb"],
                 p["g2"], p["b2"],
                 p["w2"].astype(compute_dtype), p["c2b"]]
        if has_sc:
            args += [p["ws"].astype(compute_dtype), p["sb"]]
    args += [params["down_w"].astype(compute_dtype), params["down_b"]]

    kernel = functools.partial(
        _fused_down_block_kernel,
        shortcut_flags=tuple(shortcut_flags),
        groups=groups, eps=eps, n_pad=n_pad,
        compute_dtype=compute_dtype,
    )

    out = pl.pallas_call(
        kernel,
        out_shape=jax.ShapeDtypeStruct((num_out, bpad, n_pad), x2d.dtype),
        grid_spec=pltpu.PrefetchScalarGridSpec(
            num_scalar_prefetch=0,
            grid=(1,),
            in_specs=[_full_spec(a.shape) for a in args],
            out_specs=_full_spec((num_out, bpad, n_pad)),
        ),
        compiler_params=pltpu.CompilerParams(
            dimension_semantics=("arbitrary",),
            vmem_limit_bytes=64 << 20,
        ),
    )(*args)

    valid = out[:, :B, :cout]
    output_states = tuple(
        valid[i].reshape(B, out_channels, second_dim, 1) for i in range(num_out)
    )
    return output_states[-1], output_states


# ----------------------------- reference (pure JAX) -----------------------------


def _silu(x):
    return x * jax.nn.sigmoid(x)


def _groupnorm_ref(x, gamma, beta, groups, eps):
    B, C = x.shape
    xg = x.reshape(B, groups, C // groups)
    m = xg.mean(-1, keepdims=True)
    v = ((xg - m) ** 2).mean(-1, keepdims=True)
    xn = (xg - m) / jnp.sqrt(v + eps)
    return xn.reshape(B, C) * gamma + beta


def down_block_flat_ref(hidden_states, temb, params, *, out_channels, second_dim, groups, eps):
    B = hidden_states.shape[0]
    output_states = ()
    h = hidden_states
    for p in params["resnets"]:
        x = h.reshape(B, -1)
        hh = _groupnorm_ref(x, p["g1"], p["b1"], groups, eps)
        hh = _silu(hh)
        hh = hh @ p["w1"] + p["c1b"]
        hh = hh + _silu(temb) @ p["wt"] + p["tb"]
        hh = _groupnorm_ref(hh, p["g2"], p["b2"], groups, eps)
        hh = _silu(hh)
        hh = hh @ p["w2"] + p["c2b"]
        short = (x @ p["ws"] + p["sb"]) if "ws" in p else x
        h = (short + hh).reshape(B, out_channels, second_dim, 1)
        output_states = output_states + (h,)
    x = h.reshape(B, -1)
    h = (x @ params["down_w"] + params["down_b"]).reshape(B, out_channels, second_dim, 1)
    output_states = output_states + (h,)
    return h, output_states


# ----------------------------- parameter init -----------------------------


def make_params(key, *, in_channels, out_channels, temb_channels, second_dim, groups, num_layers):
    params = {"resnets": []}
    for i in range(num_layers):
        cin = in_channels if i == 0 else out_channels
        Cin, Cout = cin * second_dim, out_channels * second_dim
        keys = jax.random.split(jax.random.fold_in(key, i), 12)
        use_shortcut = Cin != Cout
        p = {
            "g1": 1.0 + 0.1 * jax.random.normal(keys[0], (1, Cin), jnp.float32),
            "b1": 0.1 * jax.random.normal(keys[1], (1, Cin), jnp.float32),
            "w1": 0.1 * jax.random.normal(keys[2], (Cin, Cout), jnp.float32),
            "c1b": 0.1 * jax.random.normal(keys[3], (1, Cout), jnp.float32),
            "wt": 0.1 * jax.random.normal(keys[4], (temb_channels, Cout), jnp.float32),
            "tb": 0.1 * jax.random.normal(keys[5], (1, Cout), jnp.float32),
            "g2": 1.0 + 0.1 * jax.random.normal(keys[6], (1, Cout), jnp.float32),
            "b2": 0.1 * jax.random.normal(keys[7], (1, Cout), jnp.float32),
            "w2": 0.1 * jax.random.normal(keys[8], (Cout, Cout), jnp.float32),
            "c2b": 0.1 * jax.random.normal(keys[9], (1, Cout), jnp.float32),
        }
        if use_shortcut:   # conv_shortcut exists only when Cin != Cout
            p["ws"] = 0.1 * jax.random.normal(keys[10], (Cin, Cout), jnp.float32)
            p["sb"] = 0.1 * jax.random.normal(keys[11], (1, Cout), jnp.float32)
        params["resnets"].append(p)
    Cd = out_channels * second_dim
    kd1, kd2 = jax.random.split(jax.random.fold_in(key, 1000))
    params["down_w"] = 0.1 * jax.random.normal(kd1, (Cd, Cd), jnp.float32)
    params["down_b"] = 0.1 * jax.random.normal(kd2, (1, Cd), jnp.float32)
    return params


# ----------------------------- main -----------------------------


if __name__ == "__main__":
    B = 2
    in_channels = 8
    out_channels = 16
    temb_channels = 32
    second_dim = 4
    groups = 4            # must divide in_channels*4 and out_channels*4
    num_layers = 2
    eps = 1e-6

    key = jax.random.PRNGKey(0)
    k_x, k_t, k_p = jax.random.split(key, 3)

    hidden_states = jax.random.normal(k_x, (B, in_channels, second_dim, 1), jnp.float32)
    temb = jax.random.normal(k_t, (B, temb_channels), jnp.float32)
    params = make_params(
        k_p,
        in_channels=in_channels,
        out_channels=out_channels,
        temb_channels=temb_channels,
        second_dim=second_dim,
        groups=groups,
        num_layers=num_layers,
    )

    h_out, out_states = down_block_flat_forward(
        hidden_states, temb, params,
        out_channels=out_channels, second_dim=second_dim, groups=groups, eps=eps,
    )
    jax.block_until_ready(h_out)

    # correctness check against a pure-JAX (f32) reference of the PyTorch forward.
    # tolerance accounts for bf16 MXU matmuls in the kernel.
    h_ref, ref_states = down_block_flat_ref(
        hidden_states, temb, params,
        out_channels=out_channels, second_dim=second_dim, groups=groups, eps=eps,
    )
    assert h_out.shape == (B, out_channels, second_dim, 1)
    assert len(out_states) == num_layers + 1
    for a, b in zip(out_states, ref_states):
        assert a.shape == b.shape
        assert jnp.allclose(a, b, atol=5e-2, rtol=5e-2), float(jnp.max(jnp.abs(a - b)))

    print("KERNEL_OK")
</pallas_src>

<mosaic_0001>
module attributes {stable_mosaic.version = 11 : i64} {
  func.func @_fused_down_block_kernel(%arg0: i32, %arg1: memref<8x32xf32, #tpu.memory_space<vmem>>, %arg2: memref<8x32xf32, #tpu.memory_space<vmem>>, %arg3: memref<32x4xf32, #tpu.memory_space<vmem>>, %arg4: memref<4x32xf32, #tpu.memory_space<vmem>>, %arg5: memref<64x4xf32, #tpu.memory_space<vmem>>, %arg6: memref<4x64xf32, #tpu.memory_space<vmem>>, %arg7: memref<1x32xf32, #tpu.memory_space<vmem>>, %arg8: memref<1x32xf32, #tpu.memory_space<vmem>>, %arg9: memref<32x64xbf16, #tpu.memory_space<vmem>>, %arg10: memref<1x64xf32, #tpu.memory_space<vmem>>, %arg11: memref<32x64xbf16, #tpu.memory_space<vmem>>, %arg12: memref<1x64xf32, #tpu.memory_space<vmem>>, %arg13: memref<1x64xf32, #tpu.memory_space<vmem>>, %arg14: memref<1x64xf32, #tpu.memory_space<vmem>>, %arg15: memref<64x64xbf16, #tpu.memory_space<vmem>>, %arg16: memref<1x64xf32, #tpu.memory_space<vmem>>, %arg17: memref<32x64xbf16, #tpu.memory_space<vmem>>, %arg18: memref<1x64xf32, #tpu.memory_space<vmem>>, %arg19: memref<1x64xf32, #tpu.memory_space<vmem>>, %arg20: memref<1x64xf32, #tpu.memory_space<vmem>>, %arg21: memref<64x64xbf16, #tpu.memory_space<vmem>>, %arg22: memref<1x64xf32, #tpu.memory_space<vmem>>, %arg23: memref<32x64xbf16, #tpu.memory_space<vmem>>, %arg24: memref<1x64xf32, #tpu.memory_space<vmem>>, %arg25: memref<1x64xf32, #tpu.memory_space<vmem>>, %arg26: memref<1x64xf32, #tpu.memory_space<vmem>>, %arg27: memref<64x64xbf16, #tpu.memory_space<vmem>>, %arg28: memref<1x64xf32, #tpu.memory_space<vmem>>, %arg29: memref<64x64xbf16, #tpu.memory_space<vmem>>, %arg30: memref<1x64xf32, #tpu.memory_space<vmem>>, %arg31: memref<3x8x128xf32, #tpu.memory_space<vmem>>) attributes {dimension_semantics = [#tpu.dimension_semantics<arbitrary>], iteration_bounds = array<i64: 1>, scalar_prefetch = 0 : i64, scratch_operands = 0 : i64, tpu.core_type = #tpu.core_type<tc>, window_params = [{pipeline_mode = #tpu.pipeline_mode<synchronous>, transform_indices = @transform_0, window_bounds = array<i64: 8, 32>}, {pipeline_mode = #tpu.pipeline_mode<synchronous>, transform_indices = @transform_1, window_bounds = array<i64: 8, 32>}, {pipeline_mode = #tpu.pipeline_mode<synchronous>, transform_indices = @transform_2, window_bounds = array<i64: 32, 4>}, {pipeline_mode = #tpu.pipeline_mode<synchronous>, transform_indices = @transform_3, window_bounds = array<i64: 4, 32>}, {pipeline_mode = #tpu.pipeline_mode<synchronous>, transform_indices = @transform_4, window_bounds = array<i64: 64, 4>}, {pipeline_mode = #tpu.pipeline_mode<synchronous>, transform_indices = @transform_5, window_bounds = array<i64: 4, 64>}, {pipeline_mode = #tpu.pipeline_mode<synchronous>, transform_indices = @transform_6, window_bounds = array<i64: 1, 32>}, {pipeline_mode = #tpu.pipeline_mode<synchronous>, transform_indices = @transform_7, window_bounds = array<i64: 1, 32>}, {pipeline_mode = #tpu.pipeline_mode<synchronous>, transform_indices = @transform_8, window_bounds = array<i64: 32, 64>}, {pipeline_mode = #tpu.pipeline_mode<synchronous>, transform_indices = @transform_9, window_bounds = array<i64: 1, 64>}, {pipeline_mode = #tpu.pipeline_mode<synchronous>, transform_indices = @transform_10, window_bounds = array<i64: 32, 64>}, {pipeline_mode = #tpu.pipeline_mode<synchronous>, transform_indices = @transform_11, window_bounds = array<i64: 1, 64>}, {pipeline_mode = #tpu.pipeline_mode<synchronous>, transform_indices = @transform_12, window_bounds = array<i64: 1, 64>}, {pipeline_mode = #tpu.pipeline_mode<synchronous>, transform_indices = @transform_13, window_bounds = array<i64: 1, 64>}, {pipeline_mode = #tpu.pipeline_mode<synchronous>, transform_indices = @transform_14, window_bounds = array<i64: 64, 64>}, {pipeline_mode = #tpu.pipeline_mode<synchronous>, transform_indices = @transform_15, window_bounds = array<i64: 1, 64>}, {pipeline_mode = #tpu.pipeline_mode<synchronous>, transform_indices = @transform_16, window_bounds = array<i64: 32, 64>}, {pipeline_mode = #tpu.pipeline_mode<synchronous>, transform_indices = @transform_17, window_bounds = array<i64: 1, 64>}, {pipeline_mode = #tpu.pipeline_mode<synchronous>, transform_indices = @transform_18, window_bounds = array<i64: 1, 64>}, {pipeline_mode = #tpu.pipeline_mode<synchronous>, transform_indices = @transform_19, window_bounds = array<i64: 1, 64>}, {pipeline_mode = #tpu.pipeline_mode<synchronous>, transform_indices = @transform_20, window_bounds = array<i64: 64, 64>}, {pipeline_mode = #tpu.pipeline_mode<synchronous>, transform_indices = @transform_21, window_bounds = array<i64: 1, 64>}, {pipeline_mode = #tpu.pipeline_mode<synchronous>, transform_indices = @transform_22, window_bounds = array<i64: 32, 64>}, {pipeline_mode = #tpu.pipeline_mode<synchronous>, transform_indices = @transform_23, window_bounds = array<i64: 1, 64>}, {pipeline_mode = #tpu.pipeline_mode<synchronous>, transform_indices = @transform_24, window_bounds = array<i64: 1, 64>}, {pipeline_mode = #tpu.pipeline_mode<synchronous>, transform_indices = @transform_25, window_bounds = array<i64: 1, 64>}, {pipeline_mode = #tpu.pipeline_mode<synchronous>, transform_indices = @transform_26, window_bounds = array<i64: 64, 64>}, {pipeline_mode = #tpu.pipeline_mode<synchronous>, transform_indices = @transform_27, window_bounds = array<i64: 1, 64>}, {pipeline_mode = #tpu.pipeline_mode<synchronous>, transform_indices = @transform_28, window_bounds = array<i64: 64, 64>}, {pipeline_mode = #tpu.pipeline_mode<synchronous>, transform_indices = @transform_29, window_bounds = array<i64: 1, 64>}, {pipeline_mode = #tpu.pipeline_mode<synchronous>, transform_indices = @transform_30, window_bounds = array<i64: 3, 8, 128>}]} {
    %c0 = arith.constant 0 : index
    %c0_0 = arith.constant 0 : index
    %0 = vector.load %arg3[%c0, %c0_0] : memref<32x4xf32, #tpu.memory_space<vmem>>, vector<32x4xf32>
    %c0_1 = arith.constant 0 : index
    %c0_2 = arith.constant 0 : index
    %1 = vector.load %arg4[%c0_1, %c0_2] : memref<4x32xf32, #tpu.memory_space<vmem>>, vector<4x32xf32>
    %c0_3 = arith.constant 0 : index
    %c0_4 = arith.constant 0 : index
    %2 = vector.load %arg5[%c0_3, %c0_4] : memref<64x4xf32, #tpu.memory_space<vmem>>, vector<64x4xf32>
    %c0_5 = arith.constant 0 : index
    %c0_6 = arith.constant 0 : index
    %3 = vector.load %arg6[%c0_5, %c0_6] : memref<4x64xf32, #tpu.memory_space<vmem>>, vector<4x64xf32>
    %c0_7 = arith.constant 0 : index
    %c0_8 = arith.constant 0 : index
    %4 = vector.load %arg1[%c0_7, %c0_8] : memref<8x32xf32, #tpu.memory_space<vmem>>, vector<8x32xf32>
    %c0_9 = arith.constant 0 : index
    %c0_10 = arith.constant 0 : index
    %5 = vector.load %arg2[%c0_9, %c0_10] : memref<8x32xf32, #tpu.memory_space<vmem>>, vector<8x32xf32>
    %6 = arith.negf %5 : vector<8x32xf32>
    %7 = math.exp %6 : vector<8x32xf32>
    %cst = arith.constant 1.000000e+00 : f32
    %8 = vector.broadcast %cst : f32 to vector<8x32xf32>
    %9 = arith.addf %8, %7 : vector<8x32xf32>
    %10 = arith.divf %8, %9 : vector<8x32xf32>
    %11 = arith.mulf %5, %10 : vector<8x32xf32>
    %12 = arith.truncf %11 : vector<8x32xf32> to vector<8x32xbf16>
    %c0_11 = arith.constant 0 : index
    %c0_12 = arith.constant 0 : index
    %13 = vector.load %arg7[%c0_11, %c0_12] : memref<1x32xf32, #tpu.memory_space<vmem>>, vector<1x32xf32>
    %c0_13 = arith.constant 0 : index
    %c0_14 = arith.constant 0 : index
    %14 = vector.load %arg8[%c0_13, %c0_14] : memref<1x32xf32, #tpu.memory_space<vmem>>, vector<1x32xf32>
    %c0_15 = arith.constant 0 : index
    %c0_16 = arith.constant 0 : index
    %15 = vector.load %arg9[%c0_15, %c0_16] : memref<32x64xbf16, #tpu.memory_space<vmem>>, vector<32x64xbf16>
    %c0_17 = arith.constant 0 : index
    %c0_18 = arith.constant 0 : index
    %16 = vector.load %arg10[%c0_17, %c0_18] : memref<1x64xf32, #tpu.memory_space<vmem>>, vector<1x64xf32>
    %c0_19 = arith.constant 0 : index
    %c0_20 = arith.constant 0 : index
    %17 = vector.load %arg11[%c0_19, %c0_20] : memref<32x64xbf16, #tpu.memory_space<vmem>>, vector<32x64xbf16>
    %c0_21 = arith.constant 0 : index
    %c0_22 = arith.constant 0 : index
    %18 = vector.load %arg12[%c0_21, %c0_22] : memref<1x64xf32, #tpu.memory_space<vmem>>, vector<1x64xf32>
    %c0_23 = arith.constant 0 : index
    %c0_24 = arith.constant 0 : index
    %19 = vector.load %arg13[%c0_23, %c0_24] : memref<1x64xf32, #tpu.memory_space<vmem>>, vector<1x64xf32>
    %c0_25 = arith.constant 0 : index
    %c0_26 = arith.constant 0 : index
    %20 = vector.load %arg14[%c0_25, %c0_26] : memref<1x64xf32, #tpu.memory_space<vmem>>, vector<1x64xf32>
    %c0_27 = arith.constant 0 : index
    %c0_28 = arith.constant 0 : index
    %21 = vector.load %arg15[%c0_27, %c0_28] : memref<64x64xbf16, #tpu.memory_space<vmem>>, vector<64x64xbf16>
    %c0_29 = arith.constant 0 : index
    %c0_30 = arith.constant 0 : index
    %22 = vector.load %arg16[%c0_29, %c0_30] : memref<1x64xf32, #tpu.memory_space<vmem>>, vector<1x64xf32>
    %c0_31 = arith.constant 0 : index
    %c0_32 = arith.constant 0 : index
    %23 = vector.load %arg17[%c0_31, %c0_32] : memref<32x64xbf16, #tpu.memory_space<vmem>>, vector<32x64xbf16>
    %c0_33 = arith.constant 0 : index
    %c0_34 = arith.constant 0 : index
    %24 = vector.load %arg18[%c0_33, %c0_34] : memref<1x64xf32, #tpu.memory_space<vmem>>, vector<1x64xf32>
    %25 = arith.mulf %4, %4 : vector<8x32xf32>
    %26 = tpu.concatenate %4, %25 in 0 : vector<8x32xf32>, vector<8x32xf32> -> vector<16x32xf32>
    %cst_35 = arith.constant dense<0.000000e+00> : vector<16x4xf32>
    %27 = tpu.matmul %26, %0, %cst_35 {dimension_numbers = #tpu.dot_dimension_numbers<[1], [0], [0], [1], [0, 0, 1, 1], [], []>, precision = #tpu.contract_precision<fp32>} : vector<16x32xf32>, vector<32x4xf32>, vector<16x4xf32> -> vector<16x4xf32>
    %28 = vector.extract_strided_slice %27 {offsets = [0, 0], sizes = [8, 4], strides = [1, 1]} : vector<16x4xf32> to vector<8x4xf32>
    %cst_36 = arith.constant 8.000000e+00 : f32
    %29 = vector.broadcast %cst_36 : f32 to vector<8x4xf32>
    %30 = arith.divf %28, %29 : vector<8x4xf32>
    %31 = vector.extract_strided_slice %27 {offsets = [8, 0], sizes = [8, 4], strides = [1, 1]} : vector<16x4xf32> to vector<8x4xf32>
    %cst_37 = arith.constant 8.000000e+00 : f32
    %32 = vector.broadcast %cst_37 : f32 to vector<8x4xf32>
    %33 = arith.divf %31, %32 : vector<8x4xf32>
    %34 = arith.mulf %30, %30 : vector<8x4xf32>
    %35 = arith.subf %33, %34 : vector<8x4xf32>
    %cst_38 = arith.constant 0.000000e+00 : f32
    %36 = vector.broadcast %cst_38 : f32 to vector<8x4xf32>
    %37 = arith.maximumf %35, %36 : vector<8x4xf32>
    %cst_39 = arith.constant 9.99999997E-7 : f32
    %38 = vector.broadcast %cst_39 : f32 to vector<8x4xf32>
    %39 = arith.addf %37, %38 : vector<8x4xf32>
    %40 = math.rsqrt %39 : vector<8x4xf32>
    %41 = tpu.concatenate %30, %40 in 0 : vector<8x4xf32>, vector<8x4xf32> -> vector<16x4xf32>
    %cst_40 = arith.constant dense<0.000000e+00> : vector<16x32xf32>
    %42 = tpu.matmul %41, %1, %cst_40 {dimension_numbers = #tpu.dot_dimension_numbers<[1], [0], [0], [1], [0, 0, 1, 1], [], []>, precision = #tpu.contract_precision<fp32>} : vector<16x4xf32>, vector<4x32xf32>, vector<16x32xf32> -> vector<16x32xf32>
    %43 = vector.extract_strided_slice %42 {offsets = [0, 0], sizes = [8, 32], strides = [1, 1]} : vector<16x32xf32> to vector<8x32xf32>
    %44 = arith.subf %4, %43 : vector<8x32xf32>
    %45 = vector.extract_strided_slice %42 {offsets = [8, 0], sizes = [8, 32], strides = [1, 1]} : vector<16x32xf32> to vector<8x32xf32>
    %46 = arith.mulf %44, %45 : vector<8x32xf32>
    %47 = vector.broadcast %13 : vector<1x32xf32> to vector<8x32xf32>
    %48 = arith.mulf %46, %47 : vector<8x32xf32>
    %49 = vector.broadcast %14 : vector<1x32xf32> to vector<8x32xf32>
    %50 = arith.addf %48, %49 : vector<8x32xf32>
    %51 = arith.negf %50 : vector<8x32xf32>
    %52 = math.exp %51 : vector<8x32xf32>
    %cst_41 = arith.constant 1.000000e+00 : f32
    %53 = vector.broadcast %cst_41 : f32 to vector<8x32xf32>
    %54 = arith.addf %53, %52 : vector<8x32xf32>
    %55 = arith.divf %53, %54 : vector<8x32xf32>
    %56 = arith.mulf %50, %55 : vector<8x32xf32>
    %57 = arith.truncf %56 : vector<8x32xf32> to vector<8x32xbf16>
    %cst_42 = arith.constant dense<0.000000e+00> : vector<8x64xf32>
    %58 = tpu.matmul %57, %15, %cst_42 {dimension_numbers = #tpu.dot_dimension_numbers<[1], [0], [0], [1], [0, 0, 1, 1], [], []>} : vector<8x32xbf16>, vector<32x64xbf16>, vector<8x64xf32> -> vector<8x64xf32>
    %59 = vector.broadcast %16 : vector<1x64xf32> to vector<8x64xf32>
    %60 = arith.addf %58, %59 : vector<8x64xf32>
    %cst_43 = arith.constant dense<0.000000e+00> : vector<8x64xf32>
    %61 = tpu.matmul %12, %17, %cst_43 {dimension_numbers = #tpu.dot_dimension_numbers<[1], [0], [0], [1], [0, 0, 1, 1], [], []>} : vector<8x32xbf16>, vector<32x64xbf16>, vector<8x64xf32> -> vector<8x64xf32>
    %62 = arith.addf %60, %61 : vector<8x64xf32>
    %63 = vector.broadcast %18 : vector<1x64xf32> to vector<8x64xf32>
    %64 = arith.addf %62, %63 : vector<8x64xf32>
    %65 = arith.mulf %64, %64 : vector<8x64xf32>
    %66 = tpu.concatenate %64, %65 in 0 : vector<8x64xf32>, vector<8x64xf32> -> vector<16x64xf32>
    %cst_44 = arith.constant dense<0.000000e+00> : vector<16x4xf32>
    %67 = tpu.matmul %66, %2, %cst_44 {dimension_numbers = #tpu.dot_dimension_numbers<[1], [0], [0], [1], [0, 0, 1, 1], [], []>, precision = #tpu.contract_precision<fp32>} : vector<16x64xf32>, vector<64x4xf32>, vector<16x4xf32> -> vector<16x4xf32>
    %68 = vector.extract_strided_slice %67 {offsets = [0, 0], sizes = [8, 4], strides = [1, 1]} : vector<16x4xf32> to vector<8x4xf32>
    %cst_45 = arith.constant 1.600000e+01 : f32
    %69 = vector.broadcast %cst_45 : f32 to vector<8x4xf32>
    %70 = arith.divf %68, %69 : vector<8x4xf32>
    %71 = vector.extract_strided_slice %67 {offsets = [8, 0], sizes = [8, 4], strides = [1, 1]} : vector<16x4xf32> to vector<8x4xf32>
    %cst_46 = arith.constant 1.600000e+01 : f32
    %72 = vector.broadcast %cst_46 : f32 to vector<8x4xf32>
    %73 = arith.divf %71, %72 : vector<8x4xf32>
    %74 = arith.mulf %70, %70 : vector<8x4xf32>
    %75 = arith.subf %73, %74 : vector<8x4xf32>
    %cst_47 = arith.constant 0.000000e+00 : f32
    %76 = vector.broadcast %cst_47 : f32 to vector<8x4xf32>
    %77 = arith.maximumf %75, %76 : vector<8x4xf32>
    %cst_48 = arith.constant 9.99999997E-7 : f32
    %78 = vector.broadcast %cst_48 : f32 to vector<8x4xf32>
    %79 = arith.addf %77, %78 : vector<8x4xf32>
    %80 = math.rsqrt %79 : vector<8x4xf32>
    %81 = tpu.concatenate %70, %80 in 0 : vector<8x4xf32>, vector<8x4xf32> -> vector<16x4xf32>
    %cst_49 = arith.constant dense<0.000000e+00> : vector<16x64xf32>
    %82 = tpu.matmul %81, %3, %cst_49 {dimension_numbers = #tpu.dot_dimension_numbers<[1], [0], [0], [1], [0, 0, 1, 1], [], []>, precision = #tpu.contract_precision<fp32>} : vector<16x4xf32>, vector<4x64xf32>, vector<16x64xf32> -> vector<16x64xf32>
    %83 = vector.extract_strided_slice %82 {offsets = [0, 0], sizes = [8, 64], strides = [1, 1]} : vector<16x64xf32> to vector<8x64xf32>
    %84 = arith.subf %64, %83 : vector<8x64xf32>
    %85 = vector.extract_strided_slice %82 {offsets = [8, 0], sizes = [8, 64], strides = [1, 1]} : vector<16x64xf32> to vector<8x64xf32>
    %86 = arith.mulf %84, %85 : vector<8x64xf32>
    %87 = vector.broadcast %19 : vector<1x64xf32> to vector<8x64xf32>
    %88 = arith.mulf %86, %87 : vector<8x64xf32>
    %89 = vector.broadcast %20 : vector<1x64xf32> to vector<8x64xf32>
    %90 = arith.addf %88, %89 : vector<8x64xf32>
    %91 = arith.negf %90 : vector<8x64xf32>
    %92 = math.exp %91 : vector<8x64xf32>
    %cst_50 = arith.constant 1.000000e+00 : f32
    %93 = vector.broadcast %cst_50 : f32 to vector<8x64xf32>
    %94 = arith.addf %93, %92 : vector<8x64xf32>
    %95 = arith.divf %93, %94 : vector<8x64xf32>
    %96 = arith.mulf %90, %95 : vector<8x64xf32>
    %97 = arith.truncf %96 : vector<8x64xf32> to vector<8x64xbf16>
    %cst_51 = arith.constant dense<0.000000e+00> : vector<8x64xf32>
    %98 = tpu.matmul %97, %21, %cst_51 {dimension_numbers = #tpu.dot_dimension_numbers<[1], [0], [0], [1], [0, 0, 1, 1], [], []>} : vector<8x64xbf16>, vector<64x64xbf16>, vector<8x64xf32> -> vector<8x64xf32>
    %99 = vector.broadcast %22 : vector<1x64xf32> to vector<8x64xf32>
    %100 = arith.addf %98, %99 : vector<8x64xf32>
    %101 = arith.truncf %4 : vector<8x32xf32> to vector<8x32xbf16>
    %cst_52 = arith.constant dense<0.000000e+00> : vector<8x64xf32>
    %102 = tpu.matmul %101, %23, %cst_52 {dimension_numbers = #tpu.dot_dimension_numbers<[1], [0], [0], [1], [0, 0, 1, 1], [], []>} : vector<8x32xbf16>, vector<32x64xbf16>, vector<8x64xf32> -> vector<8x64xf32>
    %103 = vector.broadcast %24 : vector<1x64xf32> to vector<8x64xf32>
    %104 = arith.addf %102, %103 : vector<8x64xf32>
    %105 = arith.addf %104, %100 : vector<8x64xf32>
    %cst_53 = arith.constant 0.000000e+00 : f32
    %106 = vector.broadcast %cst_53 : f32 to vector<8x64xf32>
    %107 = tpu.concatenate %105, %106 in 1 : vector<8x64xf32>, vector<8x64xf32> -> vector<8x128xf32>
    %c0_54 = arith.constant 0 : index
    %c0_55 = arith.constant 0 : index
    %c0_56 = arith.constant 0 : index
    %108 = vector.load %arg31[%c0_54, %c0_55, %c0_56] : memref<3x8x128xf32, #tpu.memory_space<vmem>>, vector<1x8x128xf32>
    %109 = vector.shape_cast %108 : vector<1x8x128xf32> to vector<8x128xf32>
    %110 = vector.shape_cast %107 : vector<8x128xf32> to vector<1x8x128xf32>
    tpu.vector_store %arg31[%c0_54, %c0_55, %c0_56], %110 {strides = array<i32>} : memref<3x8x128xf32, #tpu.memory_space<vmem>>, vector<1x8x128xf32>,
    %c0_57 = arith.constant 0 : index
    %c0_58 = arith.constant 0 : index
    %111 = vector.load %arg19[%c0_57, %c0_58] : memref<1x64xf32, #tpu.memory_space<vmem>>, vector<1x64xf32>
    %c0_59 = arith.constant 0 : index
    %c0_60 = arith.constant 0 : index
    %112 = vector.load %arg20[%c0_59, %c0_60] : memref<1x64xf32, #tpu.memory_space<vmem>>, vector<1x64xf32>
    %c0_61 = arith.constant 0 : index
    %c0_62 = arith.constant 0 : index
    %113 = vector.load %arg21[%c0_61, %c0_62] : memref<64x64xbf16, #tpu.memory_space<vmem>>, vector<64x64xbf16>
    %c0_63 = arith.constant 0 : index
    %c0_64 = arith.constant 0 : index
    %114 = vector.load %arg22[%c0_63, %c0_64] : memref<1x64xf32, #tpu.memory_space<vmem>>, vector<1x64xf32>
    %c0_65 = arith.constant 0 : index
    %c0_66 = arith.constant 0 : index
    %115 = vector.load %arg23[%c0_65, %c0_66] : memref<32x64xbf16, #tpu.memory_space<vmem>>, vector<32x64xbf16>
    %c0_67 = arith.constant 0 : index
    %c0_68 = arith.constant 0 : index
    %116 = vector.load %arg24[%c0_67, %c0_68] : memref<1x64xf32, #tpu.memory_space<vmem>>, vector<1x64xf32>
    %c0_69 = arith.constant 0 : index
    %c0_70 = arith.constant 0 : index
    %117 = vector.load %arg25[%c0_69, %c0_70] : memref<1x64xf32, #tpu.memory_space<vmem>>, vector<1x64xf32>
    %c0_71 = arith.constant 0 : index
    %c0_72 = arith.constant 0 : index
    %118 = vector.load %arg26[%c0_71, %c0_72] : memref<1x64xf32, #tpu.memory_space<vmem>>, vector<1x64xf32>
    %c0_73 = arith.constant 0 : index
    %c0_74 = arith.constant 0 : index
    %119 = vector.load %arg27[%c0_73, %c0_74] : memref<64x64xbf16, #tpu.memory_space<vmem>>, vector<64x64xbf16>
    %c0_75 = arith.constant 0 : index
    %c0_76 = arith.constant 0 : index
    %120 = vector.load %arg28[%c0_75, %c0_76] : memref<1x64xf32, #tpu.memory_space<vmem>>, vector<1x64xf32>
    %121 = arith.mulf %105, %105 : vector<8x64xf32>
    %122 = tpu.concatenate %105, %121 in 0 : vector<8x64xf32>, vector<8x64xf32> -> vector<16x64xf32>
    %cst_77 = arith.constant dense<0.000000e+00> : vector<16x4xf32>
    %123 = tpu.matmul %122, %2, %cst_77 {dimension_numbers = #tpu.dot_dimension_numbers<[1], [0], [0], [1], [0, 0, 1, 1], [], []>, precision = #tpu.contract_precision<fp32>} : vector<16x64xf32>, vector<64x4xf32>, vector<16x4xf32> -> vector<16x4xf32>
    %124 = vector.extract_strided_slice %123 {offsets = [0, 0], sizes = [8, 4], strides = [1, 1]} : vector<16x4xf32> to vector<8x4xf32>
    %cst_78 = arith.constant 1.600000e+01 : f32
    %125 = vector.broadcast %cst_78 : f32 to vector<8x4xf32>
    %126 = arith.divf %124, %125 : vector<8x4xf32>
    %127 = vector.extract_strided_slice %123 {offsets = [8, 0], sizes = [8, 4], strides = [1, 1]} : vector<16x4xf32> to vector<8x4xf32>
    %cst_79 = arith.constant 1.600000e+01 : f32
    %128 = vector.broadcast %cst_79 : f32 to vector<8x4xf32>
    %129 = arith.divf %127, %128 : vector<8x4xf32>
    %130 = arith.mulf %126, %126 : vector<8x4xf32>
    %131 = arith.subf %129, %130 : vector<8x4xf32>
    %cst_80 = arith.constant 0.000000e+00 : f32
    %132 = vector.broadcast %cst_80 : f32 to vector<8x4xf32>
    %133 = arith.maximumf %131, %132 : vector<8x4xf32>
    %cst_81 = arith.constant 9.99999997E-7 : f32
    %134 = vector.broadcast %cst_81 : f32 to vector<8x4xf32>
    %135 = arith.addf %133, %134 : vector<8x4xf32>
    %136 = math.rsqrt %135 : vector<8x4xf32>
    %137 = tpu.concatenate %126, %136 in 0 : vector<8x4xf32>, vector<8x4xf32> -> vector<16x4xf32>
    %cst_82 = arith.constant dense<0.000000e+00> : vector<16x64xf32>
    %138 = tpu.matmul %137, %3, %cst_82 {dimension_numbers = #tpu.dot_dimension_numbers<[1], [0], [0], [1], [0, 0, 1, 1], [], []>, precision = #tpu.contract_precision<fp32>} : vector<16x4xf32>, vector<4x64xf32>, vector<16x64xf32> -> vector<16x64xf32>
    %139 = vector.extract_strided_slice %138 {offsets = [0, 0], sizes = [8, 64], strides = [1, 1]} : vector<16x64xf32> to vector<8x64xf32>
    %140 = arith.subf %105, %139 : vector<8x64xf32>
    %141 = vector.extract_strided_slice %138 {offsets = [8, 0], sizes = [8, 64], strides = [1, 1]} : vector<16x64xf32> to vector<8x64xf32>
    %142 = arith.mulf %140, %141 : vector<8x64xf32>
    %143 = vector.broadcast %111 : vector<1x64xf32> to vector<8x64xf32>
    %144 = arith.mulf %142, %143 : vector<8x64xf32>
    %145 = vector.broadcast %112 : vector<1x64xf32> to vector<8x64xf32>
    %146 = arith.addf %144, %145 : vector<8x64xf32>
    %147 = arith.negf %146 : vector<8x64xf32>
    %148 = math.exp %147 : vector<8x64xf32>
    %cst_83 = arith.constant 1.000000e+00 : f32
    %149 = vector.broadcast %cst_83 : f32 to vector<8x64xf32>
    %150 = arith.addf %149, %148 : vector<8x64xf32>
    %151 = arith.divf %149, %150 : vector<8x64xf32>
    %152 = arith.mulf %146, %151 : vector<8x64xf32>
    %153 = arith.truncf %152 : vector<8x64xf32> to vector<8x64xbf16>
    %cst_84 = arith.constant dense<0.000000e+00> : vector<8x64xf32>
    %154 = tpu.matmul %153, %113, %cst_84 {dimension_numbers = #tpu.dot_dimension_numbers<[1], [0], [0], [1], [0, 0, 1, 1], [], []>} : vector<8x64xbf16>, vector<64x64xbf16>, vector<8x64xf32> -> vector<8x64xf32>
    %155 = vector.broadcast %114 : vector<1x64xf32> to vector<8x64xf32>
    %156 = arith.addf %154, %155 : vector<8x64xf32>
    %cst_85 = arith.constant dense<0.000000e+00> : vector<8x64xf32>
    %157 = tpu.matmul %12, %115, %cst_85 {dimension_numbers = #tpu.dot_dimension_numbers<[1], [0], [0], [1], [0, 0, 1, 1], [], []>} : vector<8x32xbf16>, vector<32x64xbf16>, vector<8x64xf32> -> vector<8x64xf32>
    %158 = arith.addf %156, %157 : vector<8x64xf32>
    %159 = vector.broadcast %116 : vector<1x64xf32> to vector<8x64xf32>
    %160 = arith.addf %158, %159 : vector<8x64xf32>
    %161 = arith.mulf %160, %160 : vector<8x64xf32>
    %162 = tpu.concatenate %160, %161 in 0 : vector<8x64xf32>, vector<8x64xf32> -> vector<16x64xf32>
    %cst_86 = arith.constant dense<0.000000e+00> : vector<16x4xf32>
    %163 = tpu.matmul %162, %2, %cst_86 {dimension_numbers = #tpu.dot_dimension_numbers<[1], [0], [0], [1], [0, 0, 1, 1], [], []>, precision = #tpu.contract_precision<fp32>} : vector<16x64xf32>, vector<64x4xf32>, vector<16x4xf32> -> vector<16x4xf32>
    %164 = vector.extract_strided_slice %163 {offsets = [0, 0], sizes = [8, 4], strides = [1, 1]} : vector<16x4xf32> to vector<8x4xf32>
    %cst_87 = arith.constant 1.600000e+01 : f32
    %165 = vector.broadcast %cst_87 : f32 to vector<8x4xf32>
    %166 = arith.divf %164, %165 : vector<8x4xf32>
    %167 = vector.extract_strided_slice %163 {offsets = [8, 0], sizes = [8, 4], strides = [1, 1]} : vector<16x4xf32> to vector<8x4xf32>
    %cst_88 = arith.constant 1.600000e+01 : f32
    %168 = vector.broadcast %cst_88 : f32 to vector<8x4xf32>
    %169 = arith.divf %167, %168 : vector<8x4xf32>
    %170 = arith.mulf %166, %166 : vector<8x4xf32>
    %171 = arith.subf %169, %170 : vector<8x4xf32>
    %cst_89 = arith.constant 0.000000e+00 : f32
    %172 = vector.broadcast %cst_89 : f32 to vector<8x4xf32>
    %173 = arith.maximumf %171, %172 : vector<8x4xf32>
    %cst_90 = arith.constant 9.99999997E-7 : f32
    %174 = vector.broadcast %cst_90 : f32 to vector<8x4xf32>
    %175 = arith.addf %173, %174 : vector<8x4xf32>
    %176 = math.rsqrt %175 : vector<8x4xf32>
    %177 = tpu.concatenate %166, %176 in 0 : vector<8x4xf32>, vector<8x4xf32> -> vector<16x4xf32>
    %cst_91 = arith.constant dense<0.000000e+00> : vector<16x64xf32>
    %178 = tpu.matmul %177, %3, %cst_91 {dimension_numbers = #tpu.dot_dimension_numbers<[1], [0], [0], [1], [0, 0, 1, 1], [], []>, precision = #tpu.contract_precision<fp32>} : vector<16x4xf32>, vector<4x64xf32>, vector<16x64xf32> -> vector<16x64xf32>
    %179 = vector.extract_strided_slice %178 {offsets = [0, 0], sizes = [8, 64], strides = [1, 1]} : vector<16x64xf32> to vector<8x64xf32>
    %180 = arith.subf %160, %179 : vector<8x64xf32>
    %181 = vector.extract_strided_slice %178 {offsets = [8, 0], sizes = [8, 64], strides = [1, 1]} : vector<16x64xf32> to vector<8x64xf32>
    %182 = arith.mulf %180, %181 : vector<8x64xf32>
    %183 = vector.broadcast %117 : vector<1x64xf32> to vector<8x64xf32>
    %184 = arith.mulf %182, %183 : vector<8x64xf32>
    %185 = vector.broadcast %118 : vector<1x64xf32> to vector<8x64xf32>
    %186 = arith.addf %184, %185 : vector<8x64xf32>
    %187 = arith.negf %186 : vector<8x64xf32>
    %188 = math.exp %187 : vector<8x64xf32>
    %cst_92 = arith.constant 1.000000e+00 : f32
    %189 = vector.broadcast %cst_92 : f32 to vector<8x64xf32>
    %190 = arith.addf %189, %188 : vector<8x64xf32>
    %191 = arith.divf %189, %190 : vector<8x64xf32>
    %192 = arith.mulf %186, %191 : vector<8x64xf32>
    %193 = arith.truncf %192 : vector<8x64xf32> to vector<8x64xbf16>
    %cst_93 = arith.constant dense<0.000000e+00> : vector<8x64xf32>
    %194 = tpu.matmul %193, %119, %cst_93 {dimension_numbers = #tpu.dot_dimension_numbers<[1], [0], [0], [1], [0, 0, 1, 1], [], []>} : vector<8x64xbf16>, vector<64x64xbf16>, vector<8x64xf32> -> vector<8x64xf32>
    %195 = vector.broadcast %120 : vector<1x64xf32> to vector<8x64xf32>
    %196 = arith.addf %194, %195 : vector<8x64xf32>
    %197 = arith.addf %105, %196 : vector<8x64xf32>
    %cst_94 = arith.constant 0.000000e+00 : f32
    %198 = vector.broadcast %cst_94 : f32 to vector<8x64xf32>
    %199 = tpu.concatenate %197, %198 in 1 : vector<8x64xf32>, vector<8x64xf32> -> vector<8x128xf32>
    %c1 = arith.constant 1 : index
    %c0_95 = arith.constant 0 : index
    %c0_96 = arith.constant 0 : index
    %200 = vector.load %arg31[%c1, %c0_95, %c0_96] : memref<3x8x128xf32, #tpu.memory_space<vmem>>, vector<1x8x128xf32>
    %201 = vector.shape_cast %200 : vector<1x8x128xf32> to vector<8x128xf32>
    %202 = vector.shape_cast %199 : vector<8x128xf32> to vector<1x8x128xf32>
    tpu.vector_store %arg31[%c1, %c0_95, %c0_96], %202 {strides = array<i32>} : memref<3x8x128xf32, #tpu.memory_space<vmem>>, vector<1x8x128xf32>,
    %c0_97 = arith.constant 0 : index
    %c0_98 = arith.constant 0 : index
    %203 = vector.load %arg29[%c0_97, %c0_98] : memref<64x64xbf16, #tpu.memory_space<vmem>>, vector<64x64xbf16>
    %c0_99 = arith.constant 0 : index
    %c0_100 = arith.constant 0 : index
    %204 = vector.load %arg30[%c0_99, %c0_100] : memref<1x64xf32, #tpu.memory_space<vmem>>, vector<1x64xf32>
    %205 = arith.truncf %197 : vector<8x64xf32> to vector<8x64xbf16>
    %cst_101 = arith.constant dense<0.000000e+00> : vector<8x64xf32>
    %206 = tpu.matmul %205, %203, %cst_101 {dimension_numbers = #tpu.dot_dimension_numbers<[1], [0], [0], [1], [0, 0, 1, 1], [], []>} : vector<8x64xbf16>, vector<64x64xbf16>, vector<8x64xf32> -> vector<8x64xf32>
    %207 = vector.broadcast %204 : vector<1x64xf32> to vector<8x64xf32>
    %208 = arith.addf %206, %207 : vector<8x64xf32>
    %cst_102 = arith.constant 0.000000e+00 : f32
    %209 = vector.broadcast %cst_102 : f32 to vector<8x64xf32>
    %210 = tpu.concatenate %208, %209 in 1 : vector<8x64xf32>, vector<8x64xf32> -> vector<8x128xf32>
    %c2 = arith.constant 2 : index
    %c0_103 = arith.constant 0 : index
    %c0_104 = arith.constant 0 : index
    %211 = vector.load %arg31[%c2, %c0_103, %c0_104] : memref<3x8x128xf32, #tpu.memory_space<vmem>>, vector<1x8x128xf32>
    %212 = vector.shape_cast %211 : vector<1x8x128xf32> to vector<8x128xf32>
    %213 = vector.shape_cast %210 : vector<8x128xf32> to vector<1x8x128xf32>
    tpu.vector_store %arg31[%c2, %c0_103, %c0_104], %213 {strides = array<i32>} : memref<3x8x128xf32, #tpu.memory_space<vmem>>, vector<1x8x128xf32>,
    return
  }
  func.func @transform_0(%arg0: i32) -> (i32, i32) {
    %c0_i32 = arith.constant 0 : i32
    %c0_i32_0 = arith.constant 0 : i32
    %c0_i32_1 = arith.constant 0 : i32
    return %c0_i32, %c0_i32_0 : i32, i32
  }
  func.func @transform_1(%arg0: i32) -> (i32, i32) {
    %c0_i32 = arith.constant 0 : i32
    %c0_i32_0 = arith.constant 0 : i32
    %c0_i32_1 = arith.constant 0 : i32
    return %c0_i32, %c0_i32_0 : i32, i32
  }
  func.func @transform_2(%arg0: i32) -> (i32, i32) {
    %c0_i32 = arith.constant 0 : i32
    %c0_i32_0 = arith.constant 0 : i32
    %c0_i32_1 = arith.constant 0 : i32
    return %c0_i32, %c0_i32_0 : i32, i32
  }
  func.func @transform_3(%arg0: i32) -> (i32, i32) {
    %c0_i32 = arith.constant 0 : i32
    %c0_i32_0 = arith.constant 0 : i32
    %c0_i32_1 = arith.constant 0 : i32
    return %c0_i32, %c0_i32_0 : i32, i32
  }
  func.func @transform_4(%arg0: i32) -> (i32, i32) {
    %c0_i32 = arith.constant 0 : i32
    %c0_i32_0 = arith.constant 0 : i32
    %c0_i32_1 = arith.constant 0 : i32
    return %c0_i32, %c0_i32_0 : i32, i32
  }
  func.func @transform_5(%arg0: i32) -> (i32, i32) {
    %c0_i32 = arith.constant 0 : i32
    %c0_i32_0 = arith.constant 0 : i32
    %c0_i32_1 = arith.constant 0 : i32
    return %c0_i32, %c0_i32_0 : i32, i32
  }
  func.func @transform_6(%arg0: i32) -> (i32, i32) {
    %c0_i32 = arith.constant 0 : i32
    %c0_i32_0 = arith.constant 0 : i32
    %c0_i32_1 = arith.constant 0 : i32
    return %c0_i32, %c0_i32_0 : i32, i32
  }
  func.func @transform_7(%arg0: i32) -> (i32, i32) {
    %c0_i32 = arith.constant 0 : i32
    %c0_i32_0 = arith.constant 0 : i32
    %c0_i32_1 = arith.constant 0 : i32
    return %c0_i32, %c0_i32_0 : i32, i32
  }
  func.func @transform_8(%arg0: i32) -> (i32, i32) {
    %c0_i32 = arith.constant 0 : i32
    %c0_i32_0 = arith.constant 0 : i32
    %c0_i32_1 = arith.constant 0 : i32
    return %c0_i32, %c0_i32_0 : i32, i32
  }
  func.func @transform_9(%arg0: i32) -> (i32, i32) {
    %c0_i32 = arith.constant 0 : i32
    %c0_i32_0 = arith.constant 0 : i32
    %c0_i32_1 = arith.constant 0 : i32
    return %c0_i32, %c0_i32_0 : i32, i32
  }
  func.func @transform_10(%arg0: i32) -> (i32, i32) {
    %c0_i32 = arith.constant 0 : i32
    %c0_i32_0 = arith.constant 0 : i32
    %c0_i32_1 = arith.constant 0 : i32
    return %c0_i32, %c0_i32_0 : i32, i32
  }
  func.func @transform_11(%arg0: i32) -> (i32, i32) {
    %c0_i32 = arith.constant 0 : i32
    %c0_i32_0 = arith.constant 0 : i32
    %c0_i32_1 = arith.constant 0 : i32
    return %c0_i32, %c0_i32_0 : i32, i32
  }
  func.func @transform_12(%arg0: i32) -> (i32, i32) {
    %c0_i32 = arith.constant 0 : i32
    %c0_i32_0 = arith.constant 0 : i32
    %c0_i32_1 = arith.constant 0 : i32
    return %c0_i32, %c0_i32_0 : i32, i32
  }
  func.func @transform_13(%arg0: i32) -> (i32, i32) {
    %c0_i32 = arith.constant 0 : i32
    %c0_i32_0 = arith.constant 0 : i32
    %c0_i32_1 = arith.constant 0 : i32
    return %c0_i32, %c0_i32_0 : i32, i32
  }
  func.func @transform_14(%arg0: i32) -> (i32, i32) {
    %c0_i32 = arith.constant 0 : i32
    %c0_i32_0 = arith.constant 0 : i32
    %c0_i32_1 = arith.constant 0 : i32
    return %c0_i32, %c0_i32_0 : i32, i32
  }
  func.func @transform_15(%arg0: i32) -> (i32, i32) {
    %c0_i32 = arith.constant 0 : i32
    %c0_i32_0 = arith.constant 0 : i32
    %c0_i32_1 = arith.constant 0 : i32
    return %c0_i32, %c0_i32_0 : i32, i32
  }
  func.func @transform_16(%arg0: i32) -> (i32, i32) {
    %c0_i32 = arith.constant 0 : i32
    %c0_i32_0 = arith.constant 0 : i32
    %c0_i32_1 = arith.constant 0 : i32
    return %c0_i32, %c0_i32_0 : i32, i32
  }
  func.func @transform_17(%arg0: i32) -> (i32, i32) {
    %c0_i32 = arith.constant 0 : i32
    %c0_i32_0 = arith.constant 0 : i32
    %c0_i32_1 = arith.constant 0 : i32
    return %c0_i32, %c0_i32_0 : i32, i32
  }
  func.func @transform_18(%arg0: i32) -> (i32, i32) {
    %c0_i32 = arith.constant 0 : i32
    %c0_i32_0 = arith.constant 0 : i32
    %c0_i32_1 = arith.constant 0 : i32
    return %c0_i32, %c0_i32_0 : i32, i32
  }
  func.func @transform_19(%arg0: i32) -> (i32, i32) {
    %c0_i32 = arith.constant 0 : i32
    %c0_i32_0 = arith.constant 0 : i32
    %c0_i32_1 = arith.constant 0 : i32
    return %c0_i32, %c0_i32_0 : i32, i32
  }
  func.func @transform_20(%arg0: i32) -> (i32, i32) {
    %c0_i32 = arith.constant 0 : i32
    %c0_i32_0 = arith.constant 0 : i32
    %c0_i32_1 = arith.constant 0 : i32
    return %c0_i32, %c0_i32_0 : i32, i32
  }
  func.func @transform_21(%arg0: i32) -> (i32, i32) {
    %c0_i32 = arith.constant 0 : i32
    %c0_i32_0 = arith.constant 0 : i32
    %c0_i32_1 = arith.constant 0 : i32
    return %c0_i32, %c0_i32_0 : i32, i32
  }
  func.func @transform_22(%arg0: i32) -> (i32, i32) {
    %c0_i32 = arith.constant 0 : i32
    %c0_i32_0 = arith.constant 0 : i32
    %c0_i32_1 = arith.constant 0 : i32
    return %c0_i32, %c0_i32_0 : i32, i32
  }
  func.func @transform_23(%arg0: i32) -> (i32, i32) {
    %c0_i32 = arith.constant 0 : i32
    %c0_i32_0 = arith.constant 0 : i32
    %c0_i32_1 = arith.constant 0 : i32
    return %c0_i32, %c0_i32_0 : i32, i32
  }
  func.func @transform_24(%arg0: i32) -> (i32, i32) {
    %c0_i32 = arith.constant 0 : i32
    %c0_i32_0 = arith.constant 0 : i32
    %c0_i32_1 = arith.constant 0 : i32
    return %c0_i32, %c0_i32_0 : i32, i32
  }
  func.func @transform_25(%arg0: i32) -> (i32, i32) {
    %c0_i32 = arith.constant 0 : i32
    %c0_i32_0 = arith.constant 0 : i32
    %c0_i32_1 = arith.constant 0 : i32
    return %c0_i32, %c0_i32_0 : i32, i32
  }
  func.func @transform_26(%arg0: i32) -> (i32, i32) {
    %c0_i32 = arith.constant 0 : i32
    %c0_i32_0 = arith.constant 0 : i32
    %c0_i32_1 = arith.constant 0 : i32
    return %c0_i32, %c0_i32_0 : i32, i32
  }
  func.func @transform_27(%arg0: i32) -> (i32, i32) {
    %c0_i32 = arith.constant 0 : i32
    %c0_i32_0 = arith.constant 0 : i32
    %c0_i32_1 = arith.constant 0 : i32
    return %c0_i32, %c0_i32_0 : i32, i32
  }
  func.func @transform_28(%arg0: i32) -> (i32, i32) {
    %c0_i32 = arith.constant 0 : i32
    %c0_i32_0 = arith.constant 0 : i32
    %c0_i32_1 = arith.constant 0 : i32
    return %c0_i32, %c0_i32_0 : i32, i32
  }
  func.func @transform_29(%arg0: i32) -> (i32, i32) {
    %c0_i32 = arith.constant 0 : i32
    %c0_i32_0 = arith.constant 0 : i32
    %c0_i32_1 = arith.constant 0 : i32
    return %c0_i32, %c0_i32_0 : i32, i32
  }
  func.func @transform_30(%arg0: i32) -> (i32, i32, i32) {
    %c0_i32 = arith.constant 0 : i32
    %c0_i32_0 = arith.constant 0 : i32
    %c0_i32_1 = arith.constant 0 : i32
    %c0_i32_2 = arith.constant 0 : i32
    return %c0_i32, %c0_i32_0, %c0_i32_1 : i32, i32, i32
  }
}

</mosaic_0001>

<llo_original>
// kernel: tpu_custom_call.1
$region0: #{tpu_custom_call.1}
  #allocation0 [shape = 'u32[]', space=smem, size = 0x4, offset = 0x4, fixed_abs, tag = 'smem constant byte address 0x4 - core index']
  #allocation1 [shape = 'u32[72,128]{1,0:T(1,128)}', space=vmem, size = 0x9000, scoped, tag = 'internal scratch']
  %s0 = inlined_call_operand.smem [shape: u32[31], index: -1, kind: input, shape index: {}]
  %s1 = sld [smem:[%s0]]
  %s2 = scalar_lea.smem %s0, 1
  %s3 = sld [smem:[%s2]]
  %s4 = scalar_lea.smem %s0, 2
  %s5 = sld [smem:[%s4]]
  %s6 = scalar_lea.smem %s0, 3
  %s7 = sld [smem:[%s6]]
  %s8 = scalar_lea.smem %s0, 4
  %s9 = sld [smem:[%s8]]
  %s10 = scalar_lea.smem %s0, 5
  %s11 = sld [smem:[%s10]]
  %s12 = scalar_lea.smem %s0, 6
  %s13 = sld [smem:[%s12]]
  %s14 = scalar_lea.smem %s0, 7
  %s15 = sld [smem:[%s14]]
  %s16 = scalar_lea.smem %s0, 8
  %s17 = sld [smem:[%s16]]
  %s18 = scalar_lea.smem %s0, 9
  %s19 = sld [smem:[%s18]]
  %s20 = scalar_lea.smem %s0, 10
  %s21 = sld [smem:[%s20]]
  %s22 = scalar_lea.smem %s0, 11
  %s23 = sld [smem:[%s22]]
  %s24 = scalar_lea.smem %s0, 12
  %s25 = sld [smem:[%s24]]
  %s26 = scalar_lea.smem %s0, 13
  %s27 = sld [smem:[%s26]]
  %s28 = scalar_lea.smem %s0, 14
  %s29 = sld [smem:[%s28]]
  %s30 = scalar_lea.smem %s0, 15
  %s31 = sld [smem:[%s30]]
  %s32 = scalar_lea.smem %s0, 16
  %s33 = sld [smem:[%s32]]
  %s34 = scalar_lea.smem %s0, 17
  %s35 = sld [smem:[%s34]]
  %s36 = scalar_lea.smem %s0, 18
  %s37 = sld [smem:[%s36]]
  %s38 = scalar_lea.smem %s0, 19
  %s39 = sld [smem:[%s38]]
  %s40 = scalar_lea.smem %s0, 20
  %s41 = sld [smem:[%s40]]
  %s42 = scalar_lea.smem %s0, 21
  %s43 = sld [smem:[%s42]]
  %s44 = scalar_lea.smem %s0, 22
  %s45 = sld [smem:[%s44]]
  %s46 = scalar_lea.smem %s0, 23
  %s47 = sld [smem:[%s46]]
  %s48 = scalar_lea.smem %s0, 24
  %s49 = sld [smem:[%s48]]
  %s50 = scalar_lea.smem %s0, 25
  %s51 = sld [smem:[%s50]]
  %s52 = scalar_lea.smem %s0, 26
  %s53 = sld [smem:[%s52]]
  %s54 = scalar_lea.smem %s0, 27
  %s55 = sld [smem:[%s54]]
  %s56 = scalar_lea.smem %s0, 28
  %s57 = sld [smem:[%s56]]
  %s58 = scalar_lea.smem %s0, 29
  %s59 = sld [smem:[%s58]]
  %s60 = scalar_lea.smem %s0, 30
  %s61 = sld [smem:[%s60]]
  %s62 = sld [smem:[#allocation0]]
  $region186: #{tpu_custom_call.1} parent=0
    _
  %s64 = ssub.s32 1, %s62
  %s65 = scalar_select 0, %s64, %s62
  $region1: #{tpu_custom_call.1} parent=0
    #allocation2 [shape = 'u8[4096]{0}', space=vmem, size = 0x1000, scoped, tag = 'input window, operand 0, single buffered']
    #allocation3 [shape = 's32[1]{0}', space=sflag, size = 0x4, scoped, tag = 'scoped memory for tpu_custom_call.1']
    #allocation4 [shape = 's32[1]{0}', space=sflag, size = 0x4, scoped, tag = 'scoped memory for tpu_custom_call.1']
    #allocation5 [shape = 'u8[4096]{0}', space=vmem, size = 0x1000, scoped, tag = 'input window, operand 1, single buffered']
    #allocation6 [shape = 's32[1]{0}', space=sflag, size = 0x4, scoped, tag = 'scoped memory for tpu_custom_call.1']
    #allocation7 [shape = 'u8[2048]{0}', space=vmem, size = 0x800, scoped, tag = 'input window, operand 3, single buffered']
    #allocation8 [shape = 'u8[2048]{0}', space=vmem, size = 0x800, scoped, tag = 'input window, operand 5, single buffered']
    #allocation9 [shape = 's32[1]{0}', space=sflag, size = 0x4, scoped, tag = 'scoped memory for tpu_custom_call.1']
    #allocation10 [shape = 'u8[512]{0}', space=vmem, size = 0x400, scoped, tag = 'input window, operand 7, single buffered']
    #allocation11 [shape = 'u8[8192]{0}', space=vmem, size = 0x2000, scoped, tag = 'input window, operand 8, single buffered']
    #allocation12 [shape = 's32[1]{0}', space=sflag, size = 0x4, scoped, tag = 'scoped memory for tpu_custom_call.1']
    #allocation13 [shape = 'u8[512]{0}', space=vmem, size = 0x400, scoped, tag = 'input window, operand 9, single buffered']
    #allocation14 [shape = 'u8[8192]{0}', space=vmem, size = 0x2000, scoped, tag = 'input window, operand 10, single buffered']
    #allocation15 [shape = 's32[1]{0}', space=sflag, size = 0x4, scoped, tag = 'scoped memory for tpu_custom_call.1']
    #allocation16 [shape = 'u8[512]{0}', space=vmem, size = 0x400, scoped, tag = 'input window, operand 11, single buffered']
    #allocation17 [shape = 'u8[512]{0}', space=vmem, size = 0x400, scoped, tag = 'input window, operand 12, single buffered']
    #allocation18 [shape = 's32[1]{0}', space=sflag, size = 0x4, scoped, tag = 'scoped memory for tpu_custom_call.1']
    #allocation19 [shape = 'u8[512]{0}', space=vmem, size = 0x400, scoped, tag = 'input window, operand 13, single buffered']
    #allocation20 [shape = 'u8[512]{0}', space=vmem, size = 0x400, scoped, tag = 'input window, operand 15, single buffered']
    #allocation21 [shape = 's32[1]{0}', space=sflag, size = 0x4, scoped, tag = 'scoped memory for tpu_custom_call.1']
    #allocation22 [shape = 'u8[8192]{0}', space=vmem, size = 0x2000, scoped, tag = 'input window, operand 22, single buffered']
    #allocation23 [shape = 'u8[16384]{0}', space=vmem, size = 0x4000, scoped, tag = 'input window, operand 28, single buffered']
    #allocation24 [shape = 's32[1]{0}', space=sflag, size = 0x4, scoped, tag = 'scoped memory for tpu_custom_call.1']
    #allocation25 [shape = 'u8[12288]{0}', space=vmem, size = 0x3000, scoped, tag = 'output window, operand 0, single buffered']
    %66 = vsyncpa [#allocation3], 0
    %67 = vsyncpa [#allocation6], 0
    %68 = vsyncpa [#allocation9], 0
    %69 = vsyncpa [#allocation12], 0
    %70 = vsyncpa [#allocation15], 0
    %71 = vsyncpa [#allocation18], 0
    %72 = vsyncpa [#allocation21], 0
    %73 = vsyncpa [#allocation24], 0
    %74 = vsyncpa [#allocation4], 0
    // Predicated region
    $region2: #{tpu_custom_call.1} parent=1 // pred_check
      _
    $region3: #{tpu_custom_call.1} parent=1 // pred_check_branch
      %76 = sbr.rel (0) target = $region5
    $region4: #{tpu_custom_call.1} parent=1 // pred_region
      %78 = vsyncadd [#allocation3], 0
      %s80 = sshll.u32 %s1, 4
      %s81 = int_to_ptr.hbm [resolvable:$true] %s80
      %s82 = sshll.u32 [#allocation2], 4
      %s83 = int_to_ptr.vmem [resolvable:$true] %s82
      %85 = dma.hbm_to_vmem [thread:$0]  %s81, 128, %s83, [#allocation3]
    $region5: #{tpu_custom_call.1} parent=1 // pred_fallthru
      _
    // Predicated region
    $region6: #{tpu_custom_call.1} parent=1 // pred_check
      _
    $region7: #{tpu_custom_call.1} parent=1 // pred_check_branch
      %87 = sbr.rel (0) target = $region9
    $region8: #{tpu_custom_call.1} parent=1 // pred_region
      %89 = vsyncadd [#allocation6], 0
      %s91 = sshll.u32 %s3, 4
      %s92 = int_to_ptr.hbm [resolvable:$true] %s91
      %s93 = sshll.u32 [#allocation5], 4
      %s94 = int_to_ptr.vmem [resolvable:$true] %s93
      %96 = dma.hbm_to_vmem [thread:$0]  %s92, 128, %s94, [#allocation6]
    $region9: #{tpu_custom_call.1} parent=1 // pred_fallthru
      _
    // Predicated region
    $region10: #{tpu_custom_call.1} parent=1 // pred_check
      _
    $region11: #{tpu_custom_call.1} parent=1 // pred_check_branch
      %98 = sbr.rel (0) target = $region13
    $region12: #{tpu_custom_call.1} parent=1 // pred_region
      _
    $region13: #{tpu_custom_call.1} parent=1 // pred_fallthru
      _
    // Predicated region
    $region14: #{tpu_custom_call.1} parent=1 // pred_check
      _
    $region15: #{tpu_custom_call.1} parent=1 // pred_check_branch
      %100 = sbr.rel (0) target = $region17
    $region16: #{tpu_custom_call.1} parent=1 // pred_region
      %102 = vsyncadd [#allocation6], 0
      %s104 = sshll.u32 %s7, 4
      %s105 = int_to_ptr.hbm [resolvable:$true] %s104
      %s106 = sshll.u32 [#allocation7], 4
      %s107 = int_to_ptr.vmem [resolvable:$true] %s106
      %109 = dma.hbm_to_vmem [thread:$0]  %s105, 64, %s107, [#allocation6]
    $region17: #{tpu_custom_call.1} parent=1 // pred_fallthru
      _
    // Predicated region
    $region18: #{tpu_custom_call.1} parent=1 // pred_check
      _
    $region19: #{tpu_custom_call.1} parent=1 // pred_check_branch
      %111 = sbr.rel (0) target = $region21
    $region20: #{tpu_custom_call.1} parent=1 // pred_region
      _
    $region21: #{tpu_custom_call.1} parent=1 // pred_fallthru
      _
    // Predicated region
    $region22: #{tpu_custom_call.1} parent=1 // pred_check
      _
    $region23: #{tpu_custom_call.1} parent=1 // pred_check_branch
      %113 = sbr.rel (0) target = $region25
    $region24: #{tpu_custom_call.1} parent=1 // pred_region
      %115 = vsyncadd [#allocation9], 0
      %s117 = sshll.u32 %s11, 4
      %s118 = int_to_ptr.hbm [resolvable:$true] %s117
      %s119 = sshll.u32 [#allocation8], 4
      %s120 = int_to_ptr.vmem [resolvable:$true] %s119
      %122 = dma.hbm_to_vmem [thread:$0]  %s118, 64, %s120, [#allocation9]
    $region25: #{tpu_custom_call.1} parent=1 // pred_fallthru
      _
    // Predicated region
    $region26: #{tpu_custom_call.1} parent=1 // pred_check
      _
    $region27: #{tpu_custom_call.1} parent=1 // pred_check_branch
      %124 = sbr.rel (0) target = $region29
    $region28: #{tpu_custom_call.1} parent=1 // pred_region
      _
    $region29: #{tpu_custom_call.1} parent=1 // pred_fallthru
      _
    // Predicated region
    $region30: #{tpu_custom_call.1} parent=1 // pred_check
      _
    $region31: #{tpu_custom_call.1} parent=1 // pred_check_branch
      %126 = sbr.rel (0) target = $region33
    $region32: #{tpu_custom_call.1} parent=1 // pred_region
      %128 = vsyncadd [#allocation9], 0
      %s130 = sshll.u32 %s15, 4
      %s131 = int_to_ptr.hbm [resolvable:$true] %s130
      %s132 = sshll.u32 [#allocation10], 4
      %s133 = int_to_ptr.vmem [resolvable:$true] %s132
      %135 = dma.hbm_to_vmem [thread:$0]  %s131, 16, %s133, [#allocation9]
    $region33: #{tpu_custom_call.1} parent=1 // pred_fallthru
      _
    // Predicated region
    $region34: #{tpu_custom_call.1} parent=1 // pred_check
      _
    $region35: #{tpu_custom_call.1} parent=1 // pred_check_branch
      %137 = sbr.rel (0) target = $region37
    $region36: #{tpu_custom_call.1} parent=1 // pred_region
      %139 = vsyncadd [#allocation12], 0
      %s140 = sshll.u32 %s17, 4
      %s141 = int_to_ptr.hbm [resolvable:$true] %s140
      %s142 = sshll.u32 [#allocation11], 4
      %s143 = int_to_ptr.vmem [resolvable:$true] %s142
      %148 = dma.hbm_to_vmem [thread:$0]  %s141, 256, %s143, [#allocation12], 64, 64, 4
    $region37: #{tpu_custom_call.1} parent=1 // pred_fallthru
      _
    // Predicated region
    $region38: #{tpu_custom_call.1} parent=1 // pred_check
      _
    $region39: #{tpu_custom_call.1} parent=1 // pred_check_branch
      %150 = sbr.rel (0) target = $region41
    $region40: #{tpu_custom_call.1} parent=1 // pred_region
      %152 = vsyncadd [#allocation12], 0
      %s154 = sshll.u32 %s19, 4
      %s155 = int_to_ptr.hbm [resolvable:$true] %s154
      %s156 = sshll.u32 [#allocation13], 4
      %s157 = int_to_ptr.vmem [resolvable:$true] %s156
      %159 = dma.hbm_to_vmem [thread:$0]  %s155, 16, %s157, [#allocation12]
    $region41: #{tpu_custom_call.1} parent=1 // pred_fallthru
      _
    // Predicated region
    $region42: #{tpu_custom_call.1} parent=1 // pred_check
      _
    $region43: #{tpu_custom_call.1} parent=1 // pred_check_branch
      %161 = sbr.rel (0) target = $region45
    $region44: #{tpu_custom_call.1} parent=1 // pred_region
      %163 = vsyncadd [#allocation15], 0
      %s164 = sshll.u32 %s21, 4
      %s165 = int_to_ptr.hbm [resolvable:$true] %s164
      %s166 = sshll.u32 [#allocation14], 4
      %s167 = int_to_ptr.vmem [resolvable:$true] %s166
      %172 = dma.hbm_to_vmem [thread:$0]  %s165, 256, %s167, [#allocation15], 64, 64, 4
    $region45: #{tpu_custom_call.1} parent=1 // pred_fallthru
      _
    // Predicated region
    $region46: #{tpu_custom_call.1} parent=1 // pred_check
      _
    $region47: #{tpu_custom_call.1} parent=1 // pred_check_branch
      %174 = sbr.rel (0) target = $region49
    $region48: #{tpu_custom_call.1} parent=1 // pred_region
      %176 = vsyncadd [#allocation15], 0
      %s178 = sshll.u32 %s23, 4
      %s179 = int_to_ptr.hbm [resolvable:$true] %s178
      %s180 = sshll.u32 [#allocation16], 4
      %s181 = int_to_ptr.vmem [resolvable:$true] %s180
      %183 = dma.hbm_to_vmem [thread:$0]  %s179, 16, %s181, [#allocation15]
    $region49: #{tpu_custom_call.1} parent=1 // pred_fallthru
      _
    // Predicated region
    $region50: #{tpu_custom_call.1} parent=1 // pred_check
      _
    $region51: #{tpu_custom_call.1} parent=1 // pred_check_branch
      %185 = sbr.rel (0) target = $region53
    $region52: #{tpu_custom_call.1} parent=1 // pred_region
      %187 = vsyncadd [#allocation18], 0
      %s189 = sshll.u32 %s25, 4
      %s190 = int_to_ptr.hbm [resolvable:$true] %s189
      %s191 = sshll.u32 [#allocation17], 4
      %s192 = int_to_ptr.vmem [resolvable:$true] %s191
      %194 = dma.hbm_to_vmem [thread:$0]  %s190, 16, %s192, [#allocation18]
    $region53: #{tpu_custom_call.1} parent=1 // pred_fallthru
      _
    // Predicated region
    $region54: #{tpu_custom_call.1} parent=1 // pred_check
      _
    $region55: #{tpu_custom_call.1} parent=1 // pred_check_branch
      %196 = sbr.rel (0) target = $region57
    $region56: #{tpu_custom_call.1} parent=1 // pred_region
      %198 = vsyncadd [#allocation18], 0
      %s200 = sshll.u32 %s27, 4
      %s201 = int_to_ptr.hbm [resolvable:$true] %s200
      %s202 = sshll.u32 [#allocation19], 4
      %s203 = int_to_ptr.vmem [resolvable:$true] %s202
      %205 = dma.hbm_to_vmem [thread:$0]  %s201, 16, %s203, [#allocation18]
    $region57: #{tpu_custom_call.1} parent=1 // pred_fallthru
      _
    // Predicated region
    $region58: #{tpu_custom_call.1} parent=1 // pred_check
      _
    $region59: #{tpu_custom_call.1} parent=1 // pred_check_branch
      %207 = sbr.rel (0) target = $region61
    $region60: #{tpu_custom_call.1} parent=1 // pred_region
      _
    $region61: #{tpu_custom_call.1} parent=1 // pred_fallthru
      _
    // Predicated region
    $region62: #{tpu_custom_call.1} parent=1 // pred_check
      _
    $region63: #{tpu_custom_call.1} parent=1 // pred_check_branch
      %209 = sbr.rel (0) target = $region65
    $region64: #{tpu_custom_call.1} parent=1 // pred_region
      %211 = vsyncadd [#allocation21], 0
      %s213 = sshll.u32 %s31, 4
      %s214 = int_to_ptr.hbm [resolvable:$true] %s213
      %s215 = sshll.u32 [#allocation20], 4
      %s216 = int_to_ptr.vmem [resolvable:$true] %s215
      %218 = dma.hbm_to_vmem [thread:$0]  %s214, 16, %s216, [#allocation21]
    $region65: #{tpu_custom_call.1} parent=1 // pred_fallthru
      _
    // Predicated region
    $region66: #{tpu_custom_call.1} parent=1 // pred_check
      _
    $region67: #{tpu_custom_call.1} parent=1 // pred_check_branch
      %220 = sbr.rel (0) target = $region69
    $region68: #{tpu_custom_call.1} parent=1 // pred_region
      _
    $region69: #{tpu_custom_call.1} parent=1 // pred_fallthru
      _
    // Predicated region
    $region70: #{tpu_custom_call.1} parent=1 // pred_check
      _
    $region71: #{tpu_custom_call.1} parent=1 // pred_check_branch
      %222 = sbr.rel (0) target = $region73
    $region72: #{tpu_custom_call.1} parent=1 // pred_region
      _
    $region73: #{tpu_custom_call.1} parent=1 // pred_fallthru
      _
    // Predicated region
    $region74: #{tpu_custom_call.1} parent=1 // pred_check
      _
    $region75: #{tpu_custom_call.1} parent=1 // pred_check_branch
      %224 = sbr.rel (0) target = $region77
    $region76: #{tpu_custom_call.1} parent=1 // pred_region
      _
    $region77: #{tpu_custom_call.1} parent=1 // pred_fallthru
      _
    // Predicated region
    $region78: #{tpu_custom_call.1} parent=1 // pred_check
      _
    $region79: #{tpu_custom_call.1} parent=1 // pred_check_branch
      %226 = sbr.rel (0) target = $region81
    $region80: #{tpu_custom_call.1} parent=1 // pred_region
      _
    $region81: #{tpu_custom_call.1} parent=1 // pred_fallthru
      _
    // Predicated region
    $region82: #{tpu_custom_call.1} parent=1 // pred_check
      _
    $region83: #{tpu_custom_call.1} parent=1 // pred_check_branch
      %228 = sbr.rel (0) target = $region85
    $region84: #{tpu_custom_call.1} parent=1 // pred_region
      _
    $region85: #{tpu_custom_call.1} parent=1 // pred_fallthru
      _
    // Predicated region
    $region86: #{tpu_custom_call.1} parent=1 // pred_check
      _
    $region87: #{tpu_custom_call.1} parent=1 // pred_check_branch
      %230 = sbr.rel (0) target = $region89
    $region88: #{tpu_custom_call.1} parent=1 // pred_region
      _
    $region89: #{tpu_custom_call.1} parent=1 // pred_fallthru
      _
    // Predicated region
    $region90: #{tpu_custom_call.1} parent=1 // pred_check
      _
    $region91: #{tpu_custom_call.1} parent=1 // pred_check_branch
      %232 = sbr.rel (0) target = $region93
    $region92: #{tpu_custom_call.1} parent=1 // pred_region
      %234 = vsyncadd [#allocation21], 0
      %s235 = sshll.u32 %s45, 4
      %s236 = int_to_ptr.hbm [resolvable:$true] %s235
      %s237 = sshll.u32 [#allocation22], 4
      %s238 = int_to_ptr.vmem [resolvable:$true] %s237
      %243 = dma.hbm_to_vmem [thread:$0]  %s236, 256, %s238, [#allocation21], 64, 64, 4
    $region93: #{tpu_custom_call.1} parent=1 // pred_fallthru
      _
    // Predicated region
    $region94: #{tpu_custom_call.1} parent=1 // pred_check
      _
    $region95: #{tpu_custom_call.1} parent=1 // pred_check_branch
      %245 = sbr.rel (0) target = $region97
    $region96: #{tpu_custom_call.1} parent=1 // pred_region
      _
    $region97: #{tpu_custom_call.1} parent=1 // pred_fallthru
      _
    // Predicated region
    $region98: #{tpu_custom_call.1} parent=1 // pred_check
      _
    $region99: #{tpu_custom_call.1} parent=1 // pred_check_branch
      %247 = sbr.rel (0) target = $region101
    $region100: #{tpu_custom_call.1} parent=1 // pred_region
      _
    $region101: #{tpu_custom_call.1} parent=1 // pred_fallthru
      _
    // Predicated region
    $region102: #{tpu_custom_call.1} parent=1 // pred_check
      _
    $region103: #{tpu_custom_call.1} parent=1 // pred_check_branch
      %249 = sbr.rel (0) target = $region105
    $region104: #{tpu_custom_call.1} parent=1 // pred_region
      _
    $region105: #{tpu_custom_call.1} parent=1 // pred_fallthru
      _
    // Predicated region
    $region106: #{tpu_custom_call.1} parent=1 // pred_check
      _
    $region107: #{tpu_custom_call.1} parent=1 // pred_check_branch
      %251 = sbr.rel (0) target = $region109
    $region108: #{tpu_custom_call.1} parent=1 // pred_region
      _
    $region109: #{tpu_custom_call.1} parent=1 // pred_fallthru
      _
    // Predicated region
    $region110: #{tpu_custom_call.1} parent=1 // pred_check
      _
    $region111: #{tpu_custom_call.1} parent=1 // pred_check_branch
      %253 = sbr.rel (0) target = $region113
    $region112: #{tpu_custom_call.1} parent=1 // pred_region
      _
    $region113: #{tpu_custom_call.1} parent=1 // pred_fallthru
      _
    // Predicated region
    $region114: #{tpu_custom_call.1} parent=1 // pred_check
      _
    $region115: #{tpu_custom_call.1} parent=1 // pred_check_branch
      %255 = sbr.rel (0) target = $region117
    $region116: #{tpu_custom_call.1} parent=1 // pred_region
      %257 = vsyncadd [#allocation24], 0
      %s258 = sshll.u32 %s57, 4
      %s259 = int_to_ptr.hbm [resolvable:$true] %s258
      %s260 = sshll.u32 [#allocation23], 4
      %s261 = int_to_ptr.vmem [resolvable:$true] %s260
      %266 = dma.hbm_to_vmem [thread:$0]  %s259, 512, %s261, [#allocation24], 64, 64, 4
    $region117: #{tpu_custom_call.1} parent=1 // pred_fallthru
      _
    // Predicated region
    $region118: #{tpu_custom_call.1} parent=1 // pred_check
      _
    $region119: #{tpu_custom_call.1} parent=1 // pred_check_branch
      %268 = sbr.rel (0) target = $region121
    $region120: #{tpu_custom_call.1} parent=1 // pred_region
      _
    $region121: #{tpu_custom_call.1} parent=1 // pred_fallthru
      _
    // Predicated region
    $region122: #{tpu_custom_call.1} parent=1 // pred_check
      _
    $region123: #{tpu_custom_call.1} parent=1 // pred_check_branch
      %270 = sbr.rel (0) target = $region125
    $region124: #{tpu_custom_call.1} parent=1 // pred_region
      %272 = dma.done [#allocation3], 128
    $region125: #{tpu_custom_call.1} parent=1 // pred_fallthru
      _
    // Predicated region
    $region126: #{tpu_custom_call.1} parent=1 // pred_check
      _
    $region127: #{tpu_custom_call.1} parent=1 // pred_check_branch
      %274 = sbr.rel (0) target = $region129
    $region128: #{tpu_custom_call.1} parent=1 // pred_region
      %276 = dma.done [#allocation6], 128
    $region129: #{tpu_custom_call.1} parent=1 // pred_fallthru
      _
    // Predicated region
    $region130: #{tpu_custom_call.1} parent=1 // pred_check
      _
    $region131: #{tpu_custom_call.1} parent=1 // pred_check_branch
      %278 = sbr.rel (0) target = $region133
    $region132: #{tpu_custom_call.1} parent=1 // pred_region
      %280 = dma.done [#allocation6], 64
    $region133: #{tpu_custom_call.1} parent=1 // pred_fallthru
      _
    // Predicated region
    $region134: #{tpu_custom_call.1} parent=1 // pred_check
      _
    $region135: #{tpu_custom_call.1} parent=1 // pred_check_branch
      %282 = sbr.rel (0) target = $region137
    $region136: #{tpu_custom_call.1} parent=1 // pred_region
      %284 = dma.done [#allocation9], 64
    $region137: #{tpu_custom_call.1} parent=1 // pred_fallthru
      _
    // Predicated region
    $region138: #{tpu_custom_call.1} parent=1 // pred_check
      _
    $region139: #{tpu_custom_call.1} parent=1 // pred_check_branch
      %286 = sbr.rel (0) target = $region141
    $region140: #{tpu_custom_call.1} parent=1 // pred_region
      %288 = dma.done [#allocation9], 16
    $region141: #{tpu_custom_call.1} parent=1 // pred_fallthru
      _
    // Predicated region
    $region142: #{tpu_custom_call.1} parent=1 // pred_check
      _
    $region143: #{tpu_custom_call.1} parent=1 // pred_check_branch
      %290 = sbr.rel (0) target = $region145
    $region144: #{tpu_custom_call.1} parent=1 // pred_region
      %292 = dma.done [#allocation12], 256
    $region145: #{tpu_custom_call.1} parent=1 // pred_fallthru
      _
    // Predicated region
    $region146: #{tpu_custom_call.1} parent=1 // pred_check
      _
    $region147: #{tpu_custom_call.1} parent=1 // pred_check_branch
      %294 = sbr.rel (0) target = $region149
    $region148: #{tpu_custom_call.1} parent=1 // pred_region
      %296 = dma.done [#allocation12], 16
    $region149: #{tpu_custom_call.1} parent=1 // pred_fallthru
      _
    // Predicated region
    $region150: #{tpu_custom_call.1} parent=1 // pred_check
      _
    $region151: #{tpu_custom_call.1} parent=1 // pred_check_branch
      %298 = sbr.rel (0) target = $region153
    $region152: #{tpu_custom_call.1} parent=1 // pred_region
      %300 = dma.done [#allocation15], 256
    $region153: #{tpu_custom_call.1} parent=1 // pred_fallthru
      _
    // Predicated region
    $region154: #{tpu_custom_call.1} parent=1 // pred_check
      _
    $region155: #{tpu_custom_call.1} parent=1 // pred_check_branch
      %302 = sbr.rel (0) target = $region157
    $region156: #{tpu_custom_call.1} parent=1 // pred_region
      %304 = dma.done [#allocation15], 16
    $region157: #{tpu_custom_call.1} parent=1 // pred_fallthru
      _
    // Predicated region
    $region158: #{tpu_custom_call.1} parent=1 // pred_check
      _
    $region159: #{tpu_custom_call.1} parent=1 // pred_check_branch
      %306 = sbr.rel (0) target = $region161
    $region160: #{tpu_custom_call.1} parent=1 // pred_region
      %308 = dma.done [#allocation18], 16
    $region161: #{tpu_custom_call.1} parent=1 // pred_fallthru
      _
    // Predicated region
    $region162: #{tpu_custom_call.1} parent=1 // pred_check
      _
    $region163: #{tpu_custom_call.1} parent=1 // pred_check_branch
      %310 = sbr.rel (0) target = $region165
    $region164: #{tpu_custom_call.1} parent=1 // pred_region
      %312 = dma.done [#allocation18], 16
    $region165: #{tpu_custom_call.1} parent=1 // pred_fallthru
      _
    // Predicated region
    $region166: #{tpu_custom_call.1} parent=1 // pred_check
      _
    $region167: #{tpu_custom_call.1} parent=1 // pred_check_branch
      %314 = sbr.rel (0) target = $region169
    $region168: #{tpu_custom_call.1} parent=1 // pred_region
      %316 = dma.done [#allocation21], 16
    $region169: #{tpu_custom_call.1} parent=1 // pred_fallthru
      _
    // Predicated region
    $region170: #{tpu_custom_call.1} parent=1 // pred_check
      _
    $region171: #{tpu_custom_call.1} parent=1 // pred_check_branch
      %318 = sbr.rel (0) target = $region173
    $region172: #{tpu_custom_call.1} parent=1 // pred_region
      %320 = dma.done [#allocation21], 256
    $region173: #{tpu_custom_call.1} parent=1 // pred_fallthru
      _
    // Predicated region
    $region174: #{tpu_custom_call.1} parent=1 // pred_check
      _
    $region175: #{tpu_custom_call.1} parent=1 // pred_check_branch
      %322 = sbr.rel (0) target = $region177
    $region176: #{tpu_custom_call.1} parent=1 // pred_region
      %324 = dma.done [#allocation24], 512
    $region177: #{tpu_custom_call.1} parent=1 // pred_fallthru
      _
    %v326 = vld [vmem:[%s5] sm:$0xff]
    %v327 = vld [vmem:[%s5 + $0x8] sm:$0xff]
    %v328 = vld [vmem:[%s5 + $0x10] sm:$0xff]
    %v329 = vld [vmem:[%s5 + $0x18] sm:$0xff]
    %v330 = vld [vmem:[#allocation7] sm:$0xf]
    %v331 = vld [vmem:[%s9] sm:$0xff]
    %v332 = vld [vmem:[%s9 + $0x8] sm:$0xff]
    %v333 = vld [vmem:[%s9 + $0x10] sm:$0xff]
    %v334 = vld [vmem:[%s9 + $0x18] sm:$0xff]
    %v335 = vld [vmem:[%s9 + $0x20] sm:$0xff]
    %v336 = vld [vmem:[%s9 + $0x28] sm:$0xff]
    %v337 = vld [vmem:[%s9 + $0x30] sm:$0xff]
    %v338 = vld [vmem:[%s9 + $0x38] sm:$0xff]
    %v339 = vld [vmem:[#allocation8] sm:$0xf]
    %v340 = vld [vmem:[#allocation2] sm:$0xff]
    %v341 = vld [vmem:[#allocation5] sm:$0xff]
    %v342 = vxor.u32 %v341, 2147483648
    %v343 = vmul.f32 %v342, 1.442695
    %v344 = vpow.pop %v343
    %v345 = vadd.f32 %v344, 1.0
    %v346 = vrcp.pop %v345
    %v347 = vmul.f32 %v345, %v346
    %v348 = vsub.f32 1.0, %v347
    %v349 = vmul.f32 %v346, %v348
    %v350 = vadd.f32 %v346, %v349
    %vm351 = vweird.f32 %v345
    %vm352 = vweird.f32 %v346
    %vm353 = vmor %vm351, %vm352
    %v354 = vsel %vm353, %v346, %v350
    %v355 = vand.u32 2147483647, %v345
    %vm356 = vcmp.eq.f32.partialorder %v355, 8.507059e+37
    %v357 = vand.u32 %v345, 2147483648
    %v358 = vor.u32 1.1754944e-38, %v357
    %v359 = vsel %vm356, %v358, %v354
    %v360 = vmul.f32 1.0, %v359
    %v361 = vmul.f32 %v341, %v360
    %v362 = vpack.c.bf16 %v361, %v361
    %v363 = vld [vmem:[%s13] sm:$0x1]
    %v364 = vld [vmem:[#allocation10] sm:$0x1]
    %v365 = vld [vmem:[#allocation11] sm:$0xf]
    %v366 = vld [vmem:[#allocation11 + $0x4] sm:$0xf]
    %v367 = vld [vmem:[#allocation11 + $0x8] sm:$0xf]
    %v368 = vld [vmem:[#allocation11 + $0xc] sm:$0xf]
    %v369 = vld [vmem:[#allocation13] sm:$0x1]
    %v370 = vld [vmem:[#allocation14] sm:$0xf]
    %v371 = vld [vmem:[#allocation14 + $0x4] sm:$0xf]
    %v372 = vld [vmem:[#allocation14 + $0x8] sm:$0xf]
    %v373 = vld [vmem:[#allocation14 + $0xc] sm:$0xf]
    %v374 = vld [vmem:[#allocation16] sm:$0x1]
    %v375 = vld [vmem:[#allocation17] sm:$0x1]
    %v376 = vld [vmem:[#allocation19] sm:$0x1]
    %v377 = vld [vmem:[%s29] sm:$0xf]
    %v378 = vld [vmem:[%s29 + $0x4] sm:$0xf]
    %v379 = vld [vmem:[%s29 + $0x8] sm:$0xf]
    %v380 = vld [vmem:[%s29 + $0xc] sm:$0xf]
    %v381 = vld [vmem:[%s29 + $0x10] sm:$0xf]
    %v382 = vld [vmem:[%s29 + $0x14] sm:$0xf]
    %v383 = vld [vmem:[%s29 + $0x18] sm:$0xf]
    %v384 = vld [vmem:[%s29 + $0x1c] sm:$0xf]
    %v385 = vld [vmem:[#allocation20] sm:$0x1]
    %v386 = vld [vmem:[%s33] sm:$0xf]
    %v387 = vld [vmem:[%s33 + $0x4] sm:$0xf]
    %v388 = vld [vmem:[%s33 + $0x8] sm:$0xf]
    %v389 = vld [vmem:[%s33 + $0xc] sm:$0xf]
    %v390 = vld [vmem:[%s35] sm:$0x1]
    %v391 = vmul.f32 %v340, %v340
    %vm392 = vcmask 261120
    %v394 = vsel %vm392, %v340, 0
    %v397 = vsel %vm392, %v391, 0
    %399 = vmatpush.msra.mxu0 0.0
    %400 = vmatpush.msra.mxu0 0.0
    %401 = vmatpush.msra.mxu0 0.0
    %402 = vmatpush.msra.mxu0 0.0
    %403 = vmatpush.msra.mxu0 0.0
    %404 = vmatpush.msra.mxu0 0.0
    %405 = vmatpush.msra.mxu0 0.0
    %406 = vmatpush.msra.mxu0 0.0
    %407 = vmatpush.msra.mxu0 0.0
    %408 = vmatpush.msra.mxu0 0.0
    %409 = vmatpush.msra.mxu0 0.0
    %410 = vmatpush.msra.mxu0 0.0
    %v411 = vand.u32 %v329, 4294901760
    %412 = vmatpush.msra.mxu0 %v411
    %v413 = vand.u32 %v328, 4294901760
    %414 = vmatpush.msra.mxu0 %v413
    %v415 = vand.u32 %v327, 4294901760
    %416 = vmatpush.msra.mxu0 %v415
    %v417 = vand.u32 %v326, 4294901760
    %418 = vmatpush.msra.mxu0 %v417
    %v419 = vand.u32 %v394, 4294901760
    %v420 = vsub.f32 %v394, %v419
    %v421 = vand.u32 %v420, 4294901760
    %v422 = vsub.f32 %v420, %v421
    %v423 = vand.u32 %v422, 4294901760
    %424 = vmatmul.f32.gmra.mxu0 %v423
    %v425 = vpop.f32.mrf.mxu0
    %v426 = vadd.f32 0.0, %v425
    %v427 = vand.u32 %v397, 4294901760
    %v428 = vsub.f32 %v397, %v427
    %v429 = vand.u32 %v428, 4294901760
    %v430 = vsub.f32 %v428, %v429
    %v431 = vand.u32 %v430, 4294901760
    %432 = vmatmul.f32.gmra.mxu0 %v431
    %v433 = vpop.f32.mrf.mxu0
    %v434 = vadd.f32 0.0, %v433
    %435 = vdwg.mxu0
    %436 = vmatpush.msra.mxu0 0.0
    %437 = vmatpush.msra.mxu0 0.0
    %438 = vmatpush.msra.mxu0 0.0
    %439 = vmatpush.msra.mxu0 0.0
    %440 = vmatpush.msra.mxu0 0.0
    %441 = vmatpush.msra.mxu0 0.0
    %442 = vmatpush.msra.mxu0 0.0
    %443 = vmatpush.msra.mxu0 0.0
    %444 = vmatpush.msra.mxu0 0.0
    %445 = vmatpush.msra.mxu0 0.0
    %446 = vmatpush.msra.mxu0 0.0
    %447 = vmatpush.msra.mxu0 0.0
    %v448 = vand.u32 %v329, 4294901760
    %v449 = vsub.f32 %v329, %v448
    %v450 = vand.u32 %v449, 4294901760
    %v451 = vsub.f32 %v449, %v450
    %v452 = vand.u32 %v451, 4294901760
    %453 = vmatpush.msra.mxu0 %v452
    %v454 = vand.u32 %v328, 4294901760
    %v455 = vsub.f32 %v328, %v454
    %v456 = vand.u32 %v455, 4294901760
    %v457 = vsub.f32 %v455, %v456
    %v458 = vand.u32 %v457, 4294901760
    %459 = vmatpush.msra.mxu0 %v458
    %v460 = vand.u32 %v327, 4294901760
    %v461 = vsub.f32 %v327, %v460
    %v462 = vand.u32 %v461, 4294901760
    %v463 = vsub.f32 %v461, %v462
    %v464 = vand.u32 %v463, 4294901760
    %465 = vmatpush.msra.mxu0 %v464
    %v466 = vand.u32 %v326, 4294901760
    %v467 = vsub.f32 %v326, %v466
    %v468 = vand.u32 %v467, 4294901760
    %v469 = vsub.f32 %v467, %v468
    %v470 = vand.u32 %v469, 4294901760
    %471 = vmatpush.msra.mxu0 %v470
    %v472 = vand.u32 %v394, 4294901760
    %473 = vmatmul.f32.gmra.mxu0 %v472
    %v474 = vpop.f32.mrf.mxu0
    %v475 = vadd.f32 %v426, %v474
    %v476 = vand.u32 %v397, 4294901760
    %477 = vmatmul.f32.gmra.mxu0 %v476
    %v478 = vpop.f32.mrf.mxu0
    %v479 = vadd.f32 %v434, %v478
    %480 = vdwg.mxu0
    %481 = vmatpush.msra.mxu0 0.0
    %482 = vmatpush.msra.mxu0 0.0
    %483 = vmatpush.msra.mxu0 0.0
    %484 = vmatpush.msra.mxu0 0.0
    %485 = vmatpush.msra.mxu0 0.0
    %486 = vmatpush.msra.mxu0 0.0
    %487 = vmatpush.msra.mxu0 0.0
    %488 = vmatpush.msra.mxu0 0.0
    %489 = vmatpush.msra.mxu0 0.0
    %490 = vmatpush.msra.mxu0 0.0
    %491 = vmatpush.msra.mxu0 0.0
    %492 = vmatpush.msra.mxu0 0.0
    %v493 = vand.u32 %v329, 4294901760
    %v494 = vsub.f32 %v329, %v493
    %495 = vmatpush.msra.mxu0 %v494
    %v496 = vand.u32 %v328, 4294901760
    %v497 = vsub.f32 %v328, %v496
    %498 = vmatpush.msra.mxu0 %v497
    %v499 = vand.u32 %v327, 4294901760
    %v500 = vsub.f32 %v327, %v499
    %501 = vmatpush.msra.mxu0 %v500
    %v502 = vand.u32 %v326, 4294901760
    %v503 = vsub.f32 %v326, %v502
    %504 = vmatpush.msra.mxu0 %v503
    %v505 = vand.u32 %v394, 4294901760
    %v506 = vsub.f32 %v394, %v505
    %507 = vmatmul.f32.gmra.mxu0 %v506
    %v508 = vpop.f32.mrf.mxu0
    %v509 = vadd.f32 %v475, %v508
    %v510 = vand.u32 %v397, 4294901760
    %v511 = vsub.f32 %v397, %v510
    %512 = vmatmul.f32.gmra.mxu0 %v511
    %v513 = vpop.f32.mrf.mxu0
    %v514 = vadd.f32 %v479, %v513
    %515 = vdwg.mxu0
    %516 = vmatpush.msra.mxu0 0.0
    %517 = vmatpush.msra.mxu0 0.0
    %518 = vmatpush.msra.mxu0 0.0
    %519 = vmatpush.msra.mxu0 0.0
    %520 = vmatpush.msra.mxu0 0.0
    %521 = vmatpush.msra.mxu0 0.0
    %522 = vmatpush.msra.mxu0 0.0
    %523 = vmatpush.msra.mxu0 0.0
    %524 = vmatpush.msra.mxu0 0.0
    %525 = vmatpush.msra.mxu0 0.0
    %526 = vmatpush.msra.mxu0 0.0
    %527 = vmatpush.msra.mxu0 0.0
    %v528 = vand.u32 %v329, 4294901760
    %529 = vmatpush.msra.mxu0 %v528
    %v530 = vand.u32 %v328, 4294901760
    %531 = vmatpush.msra.mxu0 %v530
    %v532 = vand.u32 %v327, 4294901760
    %533 = vmatpush.msra.mxu0 %v532
    %v534 = vand.u32 %v326, 4294901760
    %535 = vmatpush.msra.mxu0 %v534
    %v536 = vand.u32 %v394, 4294901760
    %v537 = vsub.f32 %v394, %v536
    %v538 = vand.u32 %v537, 4294901760
    %539 = vmatmul.f32.gmra.mxu0 %v538
    %v540 = vpop.f32.mrf.mxu0
    %v541 = vadd.f32 %v509, %v540
    %v542 = vand.u32 %v397, 4294901760
    %v543 = vsub.f32 %v397, %v542
    %v544 = vand.u32 %v543, 4294901760
    %545 = vmatmul.f32.gmra.mxu0 %v544
    %v546 = vpop.f32.mrf.mxu0
    %v547 = vadd.f32 %v514, %v546
    %548 = vdwg.mxu0
    %549 = vmatpush.msra.mxu0 0.0
    %550 = vmatpush.msra.mxu0 0.0
    %551 = vmatpush.msra.mxu0 0.0
    %552 = vmatpush.msra.mxu0 0.0
    %553 = vmatpush.msra.mxu0 0.0
    %554 = vmatpush.msra.mxu0 0.0
    %555 = vmatpush.msra.mxu0 0.0
    %556 = vmatpush.msra.mxu0 0.0
    %557 = vmatpush.msra.mxu0 0.0
    %558 = vmatpush.msra.mxu0 0.0
    %559 = vmatpush.msra.mxu0 0.0
    %560 = vmatpush.msra.mxu0 0.0
    %v561 = vand.u32 %v329, 4294901760
    %v562 = vsub.f32 %v329, %v561
    %v563 = vand.u32 %v562, 4294901760
    %564 = vmatpush.msra.mxu0 %v563
    %v565 = vand.u32 %v328, 4294901760
    %v566 = vsub.f32 %v328, %v565
    %v567 = vand.u32 %v566, 4294901760
    %568 = vmatpush.msra.mxu0 %v567
    %v569 = vand.u32 %v327, 4294901760
    %v570 = vsub.f32 %v327, %v569
    %v571 = vand.u32 %v570, 4294901760
    %572 = vmatpush.msra.mxu0 %v571
    %v573 = vand.u32 %v326, 4294901760
    %v574 = vsub.f32 %v326, %v573
    %v575 = vand.u32 %v574, 4294901760
    %576 = vmatpush.msra.mxu0 %v575
    %v577 = vand.u32 %v394, 4294901760
    %578 = vmatmul.f32.gmra.mxu0 %v577
    %v579 = vpop.f32.mrf.mxu0
    %v580 = vadd.f32 %v541, %v579
    %v581 = vand.u32 %v397, 4294901760
    %582 = vmatmul.f32.gmra.mxu0 %v581
    %v583 = vpop.f32.mrf.mxu0
    %v584 = vadd.f32 %v547, %v583
    %585 = vdwg.mxu0
    %586 = vmatpush.msra.mxu0 0.0
    %587 = vmatpush.msra.mxu0 0.0
    %588 = vmatpush.msra.mxu0 0.0
    %589 = vmatpush.msra.mxu0 0.0
    %590 = vmatpush.msra.mxu0 0.0
    %591 = vmatpush.msra.mxu0 0.0
    %592 = vmatpush.msra.mxu0 0.0
    %593 = vmatpush.msra.mxu0 0.0
    %594 = vmatpush.msra.mxu0 0.0
    %595 = vmatpush.msra.mxu0 0.0
    %596 = vmatpush.msra.mxu0 0.0
    %597 = vmatpush.msra.mxu0 0.0
    %v598 = vand.u32 %v329, 4294901760
    %599 = vmatpush.msra.mxu0 %v598
    %v600 = vand.u32 %v328, 4294901760
    %601 = vmatpush.msra.mxu0 %v600
    %v602 = vand.u32 %v327, 4294901760
    %603 = vmatpush.msra.mxu0 %v602
    %v604 = vand.u32 %v326, 4294901760
    %605 = vmatpush.msra.mxu0 %v604
    %v606 = vand.u32 %v394, 4294901760
    %607 = vmatmul.f32.gmra.mxu0 %v606
    %v608 = vpop.f32.mrf.mxu0
    %v609 = vadd.f32 %v580, %v608
    %v610 = vand.u32 %v397, 4294901760
    %611 = vmatmul.f32.gmra.mxu0 %v610
    %v612 = vpop.f32.mrf.mxu0
    %v613 = vadd.f32 %v584, %v612
    %614 = vdwg.mxu0
    %v615 = vrcp.pop 8.0
    %v616 = vmul.f32 8.0, %v615
    %v617 = vsub.f32 1.0, %v616
    %v618 = vmul.f32 %v615, %v617
    %v619 = vadd.f32 %v615, %v618
    %vm620 = vweird.f32 %v615
    %v621 = vsel %vm620, %v615, %v619
    %v622 = vmul.f32 %v609, %v621
    %v623 = vmul.f32 %v613, %v621
    %v624 = vmul.f32 %v622, %v622
    %v625 = vsub.f32 %v623, %v624
    %v626 = vmax.f32 %v625, 0.0
    %v627 = vadd.f32 %v626, 1e-06
    %v628 = vrsqrt.pop %v627
    %v629 = vmul.f32 %v628, %v627
    %v630 = vmul.f32 %v629, %v628
    %v631 = vmul.f32 0.5, %v630
    %v632 = vsub.f32 1.5, %v631
    %v633 = vmul.f32 %v628, %v632
    %vm634 = vweird.f32 %v627
    %vm635 = vweird.f32 %v628
    %vm636 = vmor %vm634, %vm635
    %v637 = vsel %vm636, %v628, %v633
    %vm638 = vcmask 31744
    %v640 = vsel %vm638, %v622, 0
    %v643 = vsel %vm638, %v637, 0
    %vm645 = vcmask 1043456
    %v647 = vsel %vm645, %v330, 0
    %649 = vmatpush.msra.mxu0 0.0
    %650 = vmatpush.msra.mxu0 0.0
    %651 = vmatpush.msra.mxu0 0.0
    %652 = vmatpush.msra.mxu0 0.0
    %653 = vmatpush.msra.mxu0 0.0
    %654 = vmatpush.msra.mxu0 0.0
    %655 = vmatpush.msra.mxu0 0.0
    %656 = vmatpush.msra.mxu0 0.0
    %657 = vmatpush.msra.mxu0 0.0
    %658 = vmatpush.msra.mxu0 0.0
    %659 = vmatpush.msra.mxu0 0.0
    %660 = vmatpush.msra.mxu0 0.0
    %661 = vmatpush.msra.mxu0 0.0
    %662 = vmatpush.msra.mxu0 0.0
    %663 = vmatpush.msra.mxu0 0.0
    %v664 = vand.u32 %v647, 4294901760
    %665 = vmatpush.msra.mxu0 %v664
    %v666 = vand.u32 %v640, 4294901760
    %v667 = vsub.f32 %v640, %v666
    %v668 = vand.u32 %v667, 4294901760
    %v669 = vsub.f32 %v667, %v668
    %v670 = vand.u32 %v669, 4294901760
    %671 = vmatmul.f32.gmra.mxu0 %v670
    %v672 = vpop.f32.mrf.mxu0
    %v673 = vadd.f32 0.0, %v672
    %v674 = vand.u32 %v643, 4294901760
    %v675 = vsub.f32 %v643, %v674
    %v676 = vand.u32 %v675, 4294901760
    %v677 = vsub.f32 %v675, %v676
    %v678 = vand.u32 %v677, 4294901760
    %679 = vmatmul.f32.gmra.mxu0 %v678
    %v680 = vpop.f32.mrf.mxu0
    %v681 = vadd.f32 0.0, %v680
    %682 = vdwg.mxu0
    %683 = vmatpush.msra.mxu0 0.0
    %684 = vmatpush.msra.mxu0 0.0
    %685 = vmatpush.msra.mxu0 0.0
    %686 = vmatpush.msra.mxu0 0.0
    %687 = vmatpush.msra.mxu0 0.0
    %688 = vmatpush.msra.mxu0 0.0
    %689 = vmatpush.msra.mxu0 0.0
    %690 = vmatpush.msra.mxu0 0.0
    %691 = vmatpush.msra.mxu0 0.0
    %692 = vmatpush.msra.mxu0 0.0
    %693 = vmatpush.msra.mxu0 0.0
    %694 = vmatpush.msra.mxu0 0.0
    %695 = vmatpush.msra.mxu0 0.0
    %696 = vmatpush.msra.mxu0 0.0
    %697 = vmatpush.msra.mxu0 0.0
    %v698 = vand.u32 %v647, 4294901760
    %v699 = vsub.f32 %v647, %v698
    %v700 = vand.u32 %v699, 4294901760
    %v701 = vsub.f32 %v699, %v700
    %v702 = vand.u32 %v701, 4294901760
    %703 = vmatpush.msra.mxu0 %v702
    %v704 = vand.u32 %v640, 4294901760
    %705 = vmatmul.f32.gmra.mxu0 %v704
    %v706 = vpop.f32.mrf.mxu0
    %v707 = vadd.f32 %v673, %v706
    %v708 = vand.u32 %v643, 4294901760
    %709 = vmatmul.f32.gmra.mxu0 %v708
    %v710 = vpop.f32.mrf.mxu0
    %v711 = vadd.f32 %v681, %v710
    %712 = vdwg.mxu0
    %713 = vmatpush.msra.mxu0 0.0
    %714 = vmatpush.msra.mxu0 0.0
    %715 = vmatpush.msra.mxu0 0.0
    %716 = vmatpush.msra.mxu0 0.0
    %717 = vmatpush.msra.mxu0 0.0
    %718 = vmatpush.msra.mxu0 0.0
    %719 = vmatpush.msra.mxu0 0.0
    %720 = vmatpush.msra.mxu0 0.0
    %721 = vmatpush.msra.mxu0 0.0
    %722 = vmatpush.msra.mxu0 0.0
    %723 = vmatpush.msra.mxu0 0.0
    %724 = vmatpush.msra.mxu0 0.0
    %725 = vmatpush.msra.mxu0 0.0
    %726 = vmatpush.msra.mxu0 0.0
    %727 = vmatpush.msra.mxu0 0.0
    %v728 = vand.u32 %v647, 4294901760
    %v729 = vsub.f32 %v647, %v728
    %730 = vmatpush.msra.mxu0 %v729
    %v731 = vand.u32 %v640, 4294901760
    %v732 = vsub.f32 %v640, %v731
    %733 = vmatmul.f32.gmra.mxu0 %v732
    %v734 = vpop.f32.mrf.mxu0
    %v735 = vadd.f32 %v707, %v734
    %v736 = vand.u32 %v643, 4294901760
    %v737 = vsub.f32 %v643, %v736
    %738 = vmatmul.f32.gmra.mxu0 %v737
    %v739 = vpop.f32.mrf.mxu0
    %v740 = vadd.f32 %v711, %v739
    %741 = vdwg.mxu0
    %742 = vmatpush.msra.mxu0 0.0
    %743 = vmatpush.msra.mxu0 0.0
    %744 = vmatpush.msra.mxu0 0.0
    %745 = vmatpush.msra.mxu0 0.0
    %746 = vmatpush.msra.mxu0 0.0
    %747 = vmatpush.msra.mxu0 0.0
    %748 = vmatpush.msra.mxu0 0.0
    %749 = vmatpush.msra.mxu0 0.0
    %750 = vmatpush.msra.mxu0 0.0
    %751 = vmatpush.msra.mxu0 0.0
    %752 = vmatpush.msra.mxu0 0.0
    %753 = vmatpush.msra.mxu0 0.0
    %754 = vmatpush.msra.mxu0 0.0
    %755 = vmatpush.msra.mxu0 0.0
    %756 = vmatpush.msra.mxu0 0.0
    %v757 = vand.u32 %v647, 4294901760
    %758 = vmatpush.msra.mxu0 %v757
    %v759 = vand.u32 %v640, 4294901760
    %v760 = vsub.f32 %v640, %v759
    %v761 = vand.u32 %v760, 4294901760
    %762 = vmatmul.f32.gmra.mxu0 %v761
    %v763 = vpop.f32.mrf.mxu0
    %v764 = vadd.f32 %v735, %v763
    %v765 = vand.u32 %v643, 4294901760
    %v766 = vsub.f32 %v643, %v765
    %v767 = vand.u32 %v766, 4294901760
    %768 = vmatmul.f32.gmra.mxu0 %v767
    %v769 = vpop.f32.mrf.mxu0
    %v770 = vadd.f32 %v740, %v769
    %771 = vdwg.mxu0
    %772 = vmatpush.msra.mxu0 0.0
    %773 = vmatpush.msra.mxu0 0.0
    %774 = vmatpush.msra.mxu0 0.0
    %775 = vmatpush.msra.mxu0 0.0
    %776 = vmatpush.msra.mxu0 0.0
    %777 = vmatpush.msra.mxu0 0.0
    %778 = vmatpush.msra.mxu0 0.0
    %779 = vmatpush.msra.mxu0 0.0
    %780 = vmatpush.msra.mxu0 0.0
    %781 = vmatpush.msra.mxu0 0.0
    %782 = vmatpush.msra.mxu0 0.0
    %783 = vmatpush.msra.mxu0 0.0
    %784 = vmatpush.msra.mxu0 0.0
    %785 = vmatpush.msra.mxu0 0.0
    %786 = vmatpush.msra.mxu0 0.0
    %v787 = vand.u32 %v647, 4294901760
    %v788 = vsub.f32 %v647, %v787
    %v789 = vand.u32 %v788, 4294901760
    %790 = vmatpush.msra.mxu0 %v789
    %v791 = vand.u32 %v640, 4294901760
    %792 = vmatmul.f32.gmra.mxu0 %v791
    %v793 = vpop.f32.mrf.mxu0
    %v794 = vadd.f32 %v764, %v793
    %v795 = vand.u32 %v643, 4294901760
    %796 = vmatmul.f32.gmra.mxu0 %v795
    %v797 = vpop.f32.mrf.mxu0
    %v798 = vadd.f32 %v770, %v797
    %799 = vdwg.mxu0
    %800 = vmatpush.msra.mxu0 0.0
    %801 = vmatpush.msra.mxu0 0.0
    %802 = vmatpush.msra.mxu0 0.0
    %803 = vmatpush.msra.mxu0 0.0
    %804 = vmatpush.msra.mxu0 0.0
    %805 = vmatpush.msra.mxu0 0.0
    %806 = vmatpush.msra.mxu0 0.0
    %807 = vmatpush.msra.mxu0 0.0
    %808 = vmatpush.msra.mxu0 0.0
    %809 = vmatpush.msra.mxu0 0.0
    %810 = vmatpush.msra.mxu0 0.0
    %811 = vmatpush.msra.mxu0 0.0
    %812 = vmatpush.msra.mxu0 0.0
    %813 = vmatpush.msra.mxu0 0.0
    %814 = vmatpush.msra.mxu0 0.0
    %v815 = vand.u32 %v647, 4294901760
    %816 = vmatpush.msra.mxu0 %v815
    %v817 = vand.u32 %v640, 4294901760
    %818 = vmatmul.f32.gmra.mxu0 %v817
    %v819 = vpop.f32.mrf.mxu0
    %v820 = vadd.f32 %v794, %v819
    %v821 = vand.u32 %v643, 4294901760
    %822 = vmatmul.f32.gmra.mxu0 %v821
    %v823 = vpop.f32.mrf.mxu0
    %v824 = vadd.f32 %v798, %v823
    %825 = vdwg.mxu0
    %v826 = vsub.f32 %v340, %v820
    %v827 = vmul.f32 %v826, %v824
    %v829 = vperm.slane %v363, 0
    %v831 = vmul.f32 %v827, %v829
    %v833 = vperm.slane %v364, 0
    %v835 = vadd.f32 %v831, %v833
    %v836 = vxor.u32 %v835, 2147483648
    %v837 = vmul.f32 %v836, 1.442695
    %v838 = vpow.pop %v837
    %v839 = vadd.f32 %v838, 1.0
    %v840 = vrcp.pop %v839
    %v841 = vmul.f32 %v839, %v840
    %v842 = vsub.f32 1.0, %v841
    %v843 = vmul.f32 %v840, %v842
    %v844 = vadd.f32 %v840, %v843
    %vm845 = vweird.f32 %v839
    %vm846 = vweird.f32 %v840
    %vm847 = vmor %vm845, %vm846
    %v848 = vsel %vm847, %v840, %v844
    %v849 = vand.u32 2147483647, %v839
    %vm850 = vcmp.eq.f32.partialorder %v849, 8.507059e+37
    %v851 = vand.u32 %v839, 2147483648
    %v852 = vor.u32 1.1754944e-38, %v851
    %v853 = vsel %vm850, %v852, %v848
    %v854 = vmul.f32 1.0, %v853
    %v855 = vmul.f32 %v835, %v854
    %v856 = vpack.c.bf16 %v855, %v855
    %v858 = vperm.slane %v369, 0
    %v864 = vunpack.c.l.b16 %v365
    %v865 = vunpack.c.l.b16 %v366
    %v866 = vunpack.c.l.b16 %v367
    %v867 = vunpack.c.l.b16 %v368
    %v868 = vpack.c.b16 %v865, %v864
    %v869 = vpack.c.b16 %v867, %v866
    %v873 = vsel %vm392, %v856, 0
    %875 = vmatpush.bf16.msra.mxu0 0
    %876 = vmatpush.bf16.msra.mxu0 0
    %877 = vmatpush.bf16.msra.mxu0 0
    %878 = vmatpush.bf16.msra.mxu0 0
    %879 = vmatpush.bf16.msra.mxu0 0
    %880 = vmatpush.bf16.msra.mxu0 0
    %881 = vmatpush.bf16.msra.mxu0 %v869
    %882 = vmatpush.bf16.msra.mxu0 %v868
    %883 = vmatmul.bf16.gmra.mxu0 %v873
    %v884 = vpop.f32.mrf.mxu0
    %v885 = vadd.f32 %v858, %v884
    %v886 = vpop.f32.mrf.mxu0
    %887 = vdwg.mxu0
    %v892 = vunpack.c.l.b16 %v370
    %v893 = vunpack.c.l.b16 %v371
    %v894 = vunpack.c.l.b16 %v372
    %v895 = vunpack.c.l.b16 %v373
    %v896 = vpack.c.b16 %v893, %v892
    %v897 = vpack.c.b16 %v895, %v894
    %v901 = vsel %vm392, %v362, 0
    %903 = vmatpush.bf16.msra.mxu0 0
    %904 = vmatpush.bf16.msra.mxu0 0
    %905 = vmatpush.bf16.msra.mxu0 0
    %906 = vmatpush.bf16.msra.mxu0 0
    %907 = vmatpush.bf16.msra.mxu0 0
    %908 = vmatpush.bf16.msra.mxu0 0
    %909 = vmatpush.bf16.msra.mxu0 %v897
    %910 = vmatpush.bf16.msra.mxu0 %v896
    %911 = vmatmul.bf16.gmra.mxu0 %v901
    %v912 = vpop.f32.mrf.mxu0
    %v913 = vadd.f32 0.0, %v912
    %v914 = vpop.f32.mrf.mxu0
    %915 = vdwg.mxu0
    %v916 = vadd.f32 %v885, %v913
    %v918 = vperm.slane %v374, 0
    %v920 = vadd.f32 %v916, %v918
    %v921 = vmul.f32 %v920, %v920
    %vm922 = vcmask 523264
    %v924 = vsel %vm922, %v920, 0
    %v927 = vsel %vm922, %v921, 0
    %929 = vmatpush.msra.mxu0 0.0
    %930 = vmatpush.msra.mxu0 0.0
    %931 = vmatpush.msra.mxu0 0.0
    %932 = vmatpush.msra.mxu0 0.0
    %933 = vmatpush.msra.mxu0 0.0
    %934 = vmatpush.msra.mxu0 0.0
    %935 = vmatpush.msra.mxu0 0.0
    %936 = vmatpush.msra.mxu0 0.0
    %v937 = vand.u32 %v338, 4294901760
    %938 = vmatpush.msra.mxu0 %v937
    %v939 = vand.u32 %v337, 4294901760
    %940 = vmatpush.msra.mxu0 %v939
    %v941 = vand.u32 %v336, 4294901760
    %942 = vmatpush.msra.mxu0 %v941
    %v943 = vand.u32 %v335, 4294901760
    %944 = vmatpush.msra.mxu0 %v943
    %v945 = vand.u32 %v334, 4294901760
    %946 = vmatpush.msra.mxu0 %v945
    %v947 = vand.u32 %v333, 4294901760
    %948 = vmatpush.msra.mxu0 %v947
    %v949 = vand.u32 %v332, 4294901760
    %950 = vmatpush.msra.mxu0 %v949
    %v951 = vand.u32 %v331, 4294901760
    %952 = vmatpush.msra.mxu0 %v951
    %v953 = vand.u32 %v924, 4294901760
    %v954 = vsub.f32 %v924, %v953
    %v955 = vand.u32 %v954, 4294901760
    %v956 = vsub.f32 %v954, %v955
    %v957 = vand.u32 %v956, 4294901760
    %958 = vmatmul.f32.gmra.mxu0 %v957
    %v959 = vpop.f32.mrf.mxu0
    %v960 = vadd.f32 0.0, %v959
    %v961 = vand.u32 %v927, 4294901760
    %v962 = vsub.f32 %v927, %v961
    %v963 = vand.u32 %v962, 4294901760
    %v964 = vsub.f32 %v962, %v963
    %v965 = vand.u32 %v964, 4294901760
    %966 = vmatmul.f32.gmra.mxu0 %v965
    %v967 = vpop.f32.mrf.mxu0
    %v968 = vadd.f32 0.0, %v967
    %969 = vdwg.mxu0
    %970 = vmatpush.msra.mxu0 0.0
    %971 = vmatpush.msra.mxu0 0.0
    %972 = vmatpush.msra.mxu0 0.0
    %973 = vmatpush.msra.mxu0 0.0
    %974 = vmatpush.msra.mxu0 0.0
    %975 = vmatpush.msra.mxu0 0.0
    %976 = vmatpush.msra.mxu0 0.0
    %977 = vmatpush.msra.mxu0 0.0
    %v978 = vand.u32 %v338, 4294901760
    %v979 = vsub.f32 %v338, %v978
    %v980 = vand.u32 %v979, 4294901760
    %v981 = vsub.f32 %v979, %v980
    %v982 = vand.u32 %v981, 4294901760
    %983 = vmatpush.msra.mxu0 %v982
    %v984 = vand.u32 %v337, 4294901760
    %v985 = vsub.f32 %v337, %v984
    %v986 = vand.u32 %v985, 4294901760
    %v987 = vsub.f32 %v985, %v986
    %v988 = vand.u32 %v987, 4294901760
    %989 = vmatpush.msra.mxu0 %v988
    %v990 = vand.u32 %v336, 4294901760
    %v991 = vsub.f32 %v336, %v990
    %v992 = vand.u32 %v991, 4294901760
    %v993 = vsub.f32 %v991, %v992
    %v994 = vand.u32 %v993, 4294901760
    %995 = vmatpush.msra.mxu0 %v994
    %v996 = vand.u32 %v335, 4294901760
    %v997 = vsub.f32 %v335, %v996
    %v998 = vand.u32 %v997, 4294901760
    %v999 = vsub.f32 %v997, %v998
    %v1000 = vand.u32 %v999, 4294901760
    %1001 = vmatpush.msra.mxu0 %v1000
    %v1002 = vand.u32 %v334, 4294901760
    %v1003 = vsub.f32 %v334, %v1002
    %v1004 = vand.u32 %v1003, 4294901760
    %v1005 = vsub.f32 %v1003, %v1004
    %v1006 = vand.u32 %v1005, 4294901760
    %1007 = vmatpush.msra.mxu0 %v1006
    %v1008 = vand.u32 %v333, 4294901760
    %v1009 = vsub.f32 %v333, %v1008
    %v1010 = vand.u32 %v1009, 4294901760
    %v1011 = vsub.f32 %v1009, %v1010
    %v1012 = vand.u32 %v1011, 4294901760
    %1013 = vmatpush.msra.mxu0 %v1012
    %v1014 = vand.u32 %v332, 4294901760
    %v1015 = vsub.f32 %v332, %v1014
    %v1016 = vand.u32 %v1015, 4294901760
    %v1017 = vsub.f32 %v1015, %v1016
    %v1018 = vand.u32 %v1017, 4294901760
    %1019 = vmatpush.msra.mxu0 %v1018
    %v1020 = vand.u32 %v331, 4294901760
    %v1021 = vsub.f32 %v331, %v1020
    %v1022 = vand.u32 %v1021, 4294901760
    %v1023 = vsub.f32 %v1021, %v1022
    %v1024 = vand.u32 %v1023, 4294901760
    %1025 = vmatpush.msra.mxu0 %v1024
    %v1026 = vand.u32 %v924, 4294901760
    %1027 = vmatmul.f32.gmra.mxu0 %v1026
    %v1028 = vpop.f32.mrf.mxu0
    %v1029 = vadd.f32 %v960, %v1028
    %v1030 = vand.u32 %v927, 4294901760
    %1031 = vmatmul.f32.gmra.mxu0 %v1030
    %v1032 = vpop.f32.mrf.mxu0
    %v1033 = vadd.f32 %v968, %v1032
    %1034 = vdwg.mxu0
    %1035 = vmatpush.msra.mxu0 0.0
    %1036 = vmatpush.msra.mxu0 0.0
    %1037 = vmatpush.msra.mxu0 0.0
    %1038 = vmatpush.msra.mxu0 0.0
    %1039 = vmatpush.msra.mxu0 0.0
    %1040 = vmatpush.msra.mxu0 0.0
    %1041 = vmatpush.msra.mxu0 0.0
    %1042 = vmatpush.msra.mxu0 0.0
    %v1043 = vand.u32 %v338, 4294901760
    %v1044 = vsub.f32 %v338, %v1043
    %1045 = vmatpush.msra.mxu0 %v1044
    %v1046 = vand.u32 %v337, 4294901760
    %v1047 = vsub.f32 %v337, %v1046
    %1048 = vmatpush.msra.mxu0 %v1047
    %v1049 = vand.u32 %v336, 4294901760
    %v1050 = vsub.f32 %v336, %v1049
    %1051 = vmatpush.msra.mxu0 %v1050
    %v1052 = vand.u32 %v335, 4294901760
    %v1053 = vsub.f32 %v335, %v1052
    %1054 = vmatpush.msra.mxu0 %v1053
    %v1055 = vand.u32 %v334, 4294901760
    %v1056 = vsub.f32 %v334, %v1055
    %1057 = vmatpush.msra.mxu0 %v1056
    %v1058 = vand.u32 %v333, 4294901760
    %v1059 = vsub.f32 %v333, %v1058
    %1060 = vmatpush.msra.mxu0 %v1059
    %v1061 = vand.u32 %v332, 4294901760
    %v1062 = vsub.f32 %v332, %v1061
    %1063 = vmatpush.msra.mxu0 %v1062
    %v1064 = vand.u32 %v331, 4294901760
    %v1065 = vsub.f32 %v331, %v1064
    %1066 = vmatpush.msra.mxu0 %v1065
    %v1067 = vand.u32 %v924, 4294901760
    %v1068 = vsub.f32 %v924, %v1067
    %1069 = vmatmul.f32.gmra.mxu0 %v1068
    %v1070 = vpop.f32.mrf.mxu0
    %v1071 = vadd.f32 %v1029, %v1070
    %v1072 = vand.u32 %v927, 4294901760
    %v1073 = vsub.f32 %v927, %v1072
    %1074 = vmatmul.f32.gmra.mxu0 %v1073
    %v1075 = vpop.f32.mrf.mxu0
    %v1076 = vadd.f32 %v1033, %v1075
    %1077 = vdwg.mxu0
    %1078 = vmatpush.msra.mxu0 0.0
    %1079 = vmatpush.msra.mxu0 0.0
    %1080 = vmatpush.msra.mxu0 0.0
    %1081 = vmatpush.msra.mxu0 0.0
    %1082 = vmatpush.msra.mxu0 0.0
    %1083 = vmatpush.msra.mxu0 0.0
    %1084 = vmatpush.msra.mxu0 0.0
    %1085 = vmatpush.msra.mxu0 0.0
    %v1086 = vand.u32 %v338, 4294901760
    %1087 = vmatpush.msra.mxu0 %v1086
    %v1088 = vand.u32 %v337, 4294901760
    %1089 = vmatpush.msra.mxu0 %v1088
    %v1090 = vand.u32 %v336, 4294901760
    %1091 = vmatpush.msra.mxu0 %v1090
    %v1092 = vand.u32 %v335, 4294901760
    %1093 = vmatpush.msra.mxu0 %v1092
    %v1094 = vand.u32 %v334, 4294901760
    %1095 = vmatpush.msra.mxu0 %v1094
    %v1096 = vand.u32 %v333, 4294901760
    %1097 = vmatpush.msra.mxu0 %v1096
    %v1098 = vand.u32 %v332, 4294901760
    %1099 = vmatpush.msra.mxu0 %v1098
    %v1100 = vand.u32 %v331, 4294901760
    %1101 = vmatpush.msra.mxu0 %v1100
    %v1102 = vand.u32 %v924, 4294901760
    %v1103 = vsub.f32 %v924, %v1102
    %v1104 = vand.u32 %v1103, 4294901760
    %1105 = vmatmul.f32.gmra.mxu0 %v1104
    %v1106 = vpop.f32.mrf.mxu0
    %v1107 = vadd.f32 %v1071, %v1106
    %v1108 = vand.u32 %v927, 4294901760
    %v1109 = vsub.f32 %v927, %v1108
    %v1110 = vand.u32 %v1109, 4294901760
    %1111 = vmatmul.f32.gmra.mxu0 %v1110
    %v1112 = vpop.f32.mrf.mxu0
    %v1113 = vadd.f32 %v1076, %v1112
    %1114 = vdwg.mxu0
    %1115 = vmatpush.msra.mxu0 0.0
    %1116 = vmatpush.msra.mxu0 0.0
    %1117 = vmatpush.msra.mxu0 0.0
    %1118 = vmatpush.msra.mxu0 0.0
    %1119 = vmatpush.msra.mxu0 0.0
    %1120 = vmatpush.msra.mxu0 0.0
    %1121 = vmatpush.msra.mxu0 0.0
    %1122 = vmatpush.msra.mxu0 0.0
    %v1123 = vand.u32 %v338, 4294901760
    %v1124 = vsub.f32 %v338, %v1123
    %v1125 = vand.u32 %v1124, 4294901760
    %1126 = vmatpush.msra.mxu0 %v1125
    %v1127 = vand.u32 %v337, 4294901760
    %v1128 = vsub.f32 %v337, %v1127
    %v1129 = vand.u32 %v1128, 4294901760
    %1130 = vmatpush.msra.mxu0 %v1129
    %v1131 = vand.u32 %v336, 4294901760
    %v1132 = vsub.f32 %v336, %v1131
    %v1133 = vand.u32 %v1132, 4294901760
    %1134 = vmatpush.msra.mxu0 %v1133
    %v1135 = vand.u32 %v335, 4294901760
    %v1136 = vsub.f32 %v335, %v1135
    %v1137 = vand.u32 %v1136, 4294901760
    %1138 = vmatpush.msra.mxu0 %v1137
    %v1139 = vand.u32 %v334, 4294901760
    %v1140 = vsub.f32 %v334, %v1139
    %v1141 = vand.u32 %v1140, 4294901760
    %1142 = vmatpush.msra.mxu0 %v1141
    %v1143 = vand.u32 %v333, 4294901760
    %v1144 = vsub.f32 %v333, %v1143
    %v1145 = vand.u32 %v1144, 4294901760
    %1146 = vmatpush.msra.mxu0 %v1145
    %v1147 = vand.u32 %v332, 4294901760
    %v1148 = vsub.f32 %v332, %v1147
    %v1149 = vand.u32 %v1148, 4294901760
    %1150 = vmatpush.msra.mxu0 %v1149
    %v1151 = vand.u32 %v331, 4294901760
    %v1152 = vsub.f32 %v331, %v1151
    %v1153 = vand.u32 %v1152, 4294901760
    %1154 = vmatpush.msra.mxu0 %v1153
    %v1155 = vand.u32 %v924, 4294901760
    %1156 = vmatmul.f32.gmra.mxu0 %v1155
    %v1157 = vpop.f32.mrf.mxu0
    %v1158 = vadd.f32 %v1107, %v1157
    %v1159 = vand.u32 %v927, 4294901760
    %1160 = vmatmul.f32.gmra.mxu0 %v1159
    %v1161 = vpop.f32.mrf.mxu0
    %v1162 = vadd.f32 %v1113, %v1161
    %1163 = vdwg.mxu0
    %1164 = vmatpush.msra.mxu0 0.0
    %1165 = vmatpush.msra.mxu0 0.0
    %1166 = vmatpush.msra.mxu0 0.0
    %1167 = vmatpush.msra.mxu0 0.0
    %1168 = vmatpush.msra.mxu0 0.0
    %1169 = vmatpush.msra.mxu0 0.0
    %1170 = vmatpush.msra.mxu0 0.0
    %1171 = vmatpush.msra.mxu0 0.0
    %v1172 = vand.u32 %v338, 4294901760
    %1173 = vmatpush.msra.mxu0 %v1172
    %v1174 = vand.u32 %v337, 4294901760
    %1175 = vmatpush.msra.mxu0 %v1174
    %v1176 = vand.u32 %v336, 4294901760
    %1177 = vmatpush.msra.mxu0 %v1176
    %v1178 = vand.u32 %v335, 4294901760
    %1179 = vmatpush.msra.mxu0 %v1178
    %v1180 = vand.u32 %v334, 4294901760
    %1181 = vmatpush.msra.mxu0 %v1180
    %v1182 = vand.u32 %v333, 4294901760
    %1183 = vmatpush.msra.mxu0 %v1182
    %v1184 = vand.u32 %v332, 4294901760
    %1185 = vmatpush.msra.mxu0 %v1184
    %v1186 = vand.u32 %v331, 4294901760
    %1187 = vmatpush.msra.mxu0 %v1186
    %v1188 = vand.u32 %v924, 4294901760
    %1189 = vmatmul.f32.gmra.mxu0 %v1188
    %v1190 = vpop.f32.mrf.mxu0
    %v1191 = vadd.f32 %v1158, %v1190
    %v1192 = vand.u32 %v927, 4294901760
    %1193 = vmatmul.f32.gmra.mxu0 %v1192
    %v1194 = vpop.f32.mrf.mxu0
    %v1195 = vadd.f32 %v1162, %v1194
    %1196 = vdwg.mxu0
    %v1197 = vrcp.pop 16.0
    %v1198 = vmul.f32 16.0, %v1197
    %v1199 = vsub.f32 1.0, %v1198
    %v1200 = vmul.f32 %v1197, %v1199
    %v1201 = vadd.f32 %v1197, %v1200
    %vm1202 = vweird.f32 %v1197
    %v1203 = vsel %vm1202, %v1197, %v1201
    %v1204 = vmul.f32 %v1191, %v1203
    %v1205 = vmul.f32 %v1195, %v1203
    %v1206 = vmul.f32 %v1204, %v1204
    %v1207 = vsub.f32 %v1205, %v1206
    %v1208 = vmax.f32 %v1207, 0.0
    %v1209 = vadd.f32 %v1208, 1e-06
    %v1210 = vrsqrt.pop %v1209
    %v1211 = vmul.f32 %v1210, %v1209
    %v1212 = vmul.f32 %v1211, %v1210
    %v1213 = vmul.f32 0.5, %v1212
    %v1214 = vsub.f32 1.5, %v1213
    %v1215 = vmul.f32 %v1210, %v1214
    %vm1216 = vweird.f32 %v1209
    %vm1217 = vweird.f32 %v1210
    %vm1218 = vmor %vm1216, %vm1217
    %v1219 = vsel %vm1218, %v1210, %v1215
    %v1221 = vsel %vm638, %v1204, 0
    %v1224 = vsel %vm638, %v1219, 0
    %v1227 = vsel %vm645, %v339, 0
    %1229 = vmatpush.msra.mxu0 0.0
    %1230 = vmatpush.msra.mxu0 0.0
    %1231 = vmatpush.msra.mxu0 0.0
    %1232 = vmatpush.msra.mxu0 0.0
    %1233 = vmatpush.msra.mxu0 0.0
    %1234 = vmatpush.msra.mxu0 0.0
    %1235 = vmatpush.msra.mxu0 0.0
    %1236 = vmatpush.msra.mxu0 0.0
    %1237 = vmatpush.msra.mxu0 0.0
    %1238 = vmatpush.msra.mxu0 0.0
    %1239 = vmatpush.msra.mxu0 0.0
    %1240 = vmatpush.msra.mxu0 0.0
    %1241 = vmatpush.msra.mxu0 0.0
    %1242 = vmatpush.msra.mxu0 0.0
    %1243 = vmatpush.msra.mxu0 0.0
    %v1244 = vand.u32 %v1227, 4294901760
    %1245 = vmatpush.msra.mxu0 %v1244
    %v1246 = vand.u32 %v1221, 4294901760
    %v1247 = vsub.f32 %v1221, %v1246
    %v1248 = vand.u32 %v1247, 4294901760
    %v1249 = vsub.f32 %v1247, %v1248
    %v1250 = vand.u32 %v1249, 4294901760
    %1251 = vmatmul.f32.gmra.mxu0 %v1250
    %v1252 = vpop.f32.mrf.mxu0
    %v1253 = vadd.f32 0.0, %v1252
    %v1254 = vand.u32 %v1224, 4294901760
    %v1255 = vsub.f32 %v1224, %v1254
    %v1256 = vand.u32 %v1255, 4294901760
    %v1257 = vsub.f32 %v1255, %v1256
    %v1258 = vand.u32 %v1257, 4294901760
    %1259 = vmatmul.f32.gmra.mxu0 %v1258
    %v1260 = vpop.f32.mrf.mxu0
    %v1261 = vadd.f32 0.0, %v1260
    %1262 = vdwg.mxu0
    %1263 = vmatpush.msra.mxu0 0.0
    %1264 = vmatpush.msra.mxu0 0.0
    %1265 = vmatpush.msra.mxu0 0.0
    %1266 = vmatpush.msra.mxu0 0.0
    %1267 = vmatpush.msra.mxu0 0.0
    %1268 = vmatpush.msra.mxu0 0.0
    %1269 = vmatpush.msra.mxu0 0.0
    %1270 = vmatpush.msra.mxu0 0.0
    %1271 = vmatpush.msra.mxu0 0.0
    %1272 = vmatpush.msra.mxu0 0.0
    %1273 = vmatpush.msra.mxu0 0.0
    %1274 = vmatpush.msra.mxu0 0.0
    %1275 = vmatpush.msra.mxu0 0.0
    %1276 = vmatpush.msra.mxu0 0.0
    %1277 = vmatpush.msra.mxu0 0.0
    %v1278 = vand.u32 %v1227, 4294901760
    %v1279 = vsub.f32 %v1227, %v1278
    %v1280 = vand.u32 %v1279, 4294901760
    %v1281 = vsub.f32 %v1279, %v1280
    %v1282 = vand.u32 %v1281, 4294901760
    %1283 = vmatpush.msra.mxu0 %v1282
    %v1284 = vand.u32 %v1221, 4294901760
    %1285 = vmatmul.f32.gmra.mxu0 %v1284
    %v1286 = vpop.f32.mrf.mxu0
    %v1287 = vadd.f32 %v1253, %v1286
    %v1288 = vand.u32 %v1224, 4294901760
    %1289 = vmatmul.f32.gmra.mxu0 %v1288
    %v1290 = vpop.f32.mrf.mxu0
    %v1291 = vadd.f32 %v1261, %v1290
    %1292 = vdwg.mxu0
    %1293 = vmatpush.msra.mxu0 0.0
    %1294 = vmatpush.msra.mxu0 0.0
    %1295 = vmatpush.msra.mxu0 0.0
    %1296 = vmatpush.msra.mxu0 0.0
    %1297 = vmatpush.msra.mxu0 0.0
    %1298 = vmatpush.msra.mxu0 0.0
    %1299 = vmatpush.msra.mxu0 0.0
    %1300 = vmatpush.msra.mxu0 0.0
    %1301 = vmatpush.msra.mxu0 0.0
    %1302 = vmatpush.msra.mxu0 0.0
    %1303 = vmatpush.msra.mxu0 0.0
    %1304 = vmatpush.msra.mxu0 0.0
    %1305 = vmatpush.msra.mxu0 0.0
    %1306 = vmatpush.msra.mxu0 0.0
    %1307 = vmatpush.msra.mxu0 0.0
    %v1308 = vand.u32 %v1227, 4294901760
    %v1309 = vsub.f32 %v1227, %v1308
    %1310 = vmatpush.msra.mxu0 %v1309
    %v1311 = vand.u32 %v1221, 4294901760
    %v1312 = vsub.f32 %v1221, %v1311
    %1313 = vmatmul.f32.gmra.mxu0 %v1312
    %v1314 = vpop.f32.mrf.mxu0
    %v1315 = vadd.f32 %v1287, %v1314
    %v1316 = vand.u32 %v1224, 4294901760
    %v1317 = vsub.f32 %v1224, %v1316
    %1318 = vmatmul.f32.gmra.mxu0 %v1317
    %v1319 = vpop.f32.mrf.mxu0
    %v1320 = vadd.f32 %v1291, %v1319
    %1321 = vdwg.mxu0
    %1322 = vmatpush.msra.mxu0 0.0
    %1323 = vmatpush.msra.mxu0 0.0
    %1324 = vmatpush.msra.mxu0 0.0
    %1325 = vmatpush.msra.mxu0 0.0
    %1326 = vmatpush.msra.mxu0 0.0
    %1327 = vmatpush.msra.mxu0 0.0
    %1328 = vmatpush.msra.mxu0 0.0
    %1329 = vmatpush.msra.mxu0 0.0
    %1330 = vmatpush.msra.mxu0 0.0
    %1331 = vmatpush.msra.mxu0 0.0
    %1332 = vmatpush.msra.mxu0 0.0
    %1333 = vmatpush.msra.mxu0 0.0
    %1334 = vmatpush.msra.mxu0 0.0
    %1335 = vmatpush.msra.mxu0 0.0
    %1336 = vmatpush.msra.mxu0 0.0
    %v1337 = vand.u32 %v1227, 4294901760
    %1338 = vmatpush.msra.mxu0 %v1337
    %v1339 = vand.u32 %v1221, 4294901760
    %v1340 = vsub.f32 %v1221, %v1339
    %v1341 = vand.u32 %v1340, 4294901760
    %1342 = vmatmul.f32.gmra.mxu0 %v1341
    %v1343 = vpop.f32.mrf.mxu0
    %v1344 = vadd.f32 %v1315, %v1343
    %v1345 = vand.u32 %v1224, 4294901760
    %v1346 = vsub.f32 %v1224, %v1345
    %v1347 = vand.u32 %v1346, 4294901760
    %1348 = vmatmul.f32.gmra.mxu0 %v1347
    %v1349 = vpop.f32.mrf.mxu0
    %v1350 = vadd.f32 %v1320, %v1349
    %1351 = vdwg.mxu0
    %1352 = vmatpush.msra.mxu0 0.0
    %1353 = vmatpush.msra.mxu0 0.0
    %1354 = vmatpush.msra.mxu0 0.0
    %1355 = vmatpush.msra.mxu0 0.0
    %1356 = vmatpush.msra.mxu0 0.0
    %1357 = vmatpush.msra.mxu0 0.0
    %1358 = vmatpush.msra.mxu0 0.0
    %1359 = vmatpush.msra.mxu0 0.0
    %1360 = vmatpush.msra.mxu0 0.0
    %1361 = vmatpush.msra.mxu0 0.0
    %1362 = vmatpush.msra.mxu0 0.0
    %1363 = vmatpush.msra.mxu0 0.0
    %1364 = vmatpush.msra.mxu0 0.0
    %1365 = vmatpush.msra.mxu0 0.0
    %1366 = vmatpush.msra.mxu0 0.0
    %v1367 = vand.u32 %v1227, 4294901760
    %v1368 = vsub.f32 %v1227, %v1367
    %v1369 = vand.u32 %v1368, 4294901760
    %1370 = vmatpush.msra.mxu0 %v1369
    %v1371 = vand.u32 %v1221, 4294901760
    %1372 = vmatmul.f32.gmra.mxu0 %v1371
    %v1373 = vpop.f32.mrf.mxu0
    %v1374 = vadd.f32 %v1344, %v1373
    %v1375 = vand.u32 %v1224, 4294901760
    %1376 = vmatmul.f32.gmra.mxu0 %v1375
    %v1377 = vpop.f32.mrf.mxu0
    %v1378 = vadd.f32 %v1350, %v1377
    %1379 = vdwg.mxu0
    %1380 = vmatpush.msra.mxu0 0.0
    %1381 = vmatpush.msra.mxu0 0.0
    %1382 = vmatpush.msra.mxu0 0.0
    %1383 = vmatpush.msra.mxu0 0.0
    %1384 = vmatpush.msra.mxu0 0.0
    %1385 = vmatpush.msra.mxu0 0.0
    %1386 = vmatpush.msra.mxu0 0.0
    %1387 = vmatpush.msra.mxu0 0.0
    %1388 = vmatpush.msra.mxu0 0.0
    %1389 = vmatpush.msra.mxu0 0.0
    %1390 = vmatpush.msra.mxu0 0.0
    %1391 = vmatpush.msra.mxu0 0.0
    %1392 = vmatpush.msra.mxu0 0.0
    %1393 = vmatpush.msra.mxu0 0.0
    %1394 = vmatpush.msra.mxu0 0.0
    %v1395 = vand.u32 %v1227, 4294901760
    %1396 = vmatpush.msra.mxu0 %v1395
    %v1397 = vand.u32 %v1221, 4294901760
    %1398 = vmatmul.f32.gmra.mxu0 %v1397
    %v1399 = vpop.f32.mrf.mxu0
    %v1400 = vadd.f32 %v1374, %v1399
    %v1401 = vand.u32 %v1224, 4294901760
    %1402 = vmatmul.f32.gmra.mxu0 %v1401
    %v1403 = vpop.f32.mrf.mxu0
    %v1404 = vadd.f32 %v1378, %v1403
    %1405 = vdwg.mxu0
    %v1406 = vsub.f32 %v920, %v1400
    %v1407 = vmul.f32 %v1406, %v1404
    %v1409 = vperm.slane %v375, 0
    %v1411 = vmul.f32 %v1407, %v1409
    %v1413 = vperm.slane %v376, 0
    %v1415 = vadd.f32 %v1411, %v1413
    %v1416 = vxor.u32 %v1415, 2147483648
    %v1417 = vmul.f32 %v1416, 1.442695
    %v1418 = vpow.pop %v1417
    %v1419 = vadd.f32 %v1418, 1.0
    %v1420 = vrcp.pop %v1419
    %v1421 = vmul.f32 %v1419, %v1420
    %v1422 = vsub.f32 1.0, %v1421
    %v1423 = vmul.f32 %v1420, %v1422
    %v1424 = vadd.f32 %v1420, %v1423
    %vm1425 = vweird.f32 %v1419
    %vm1426 = vweird.f32 %v1420
    %vm1427 = vmor %vm1425, %vm1426
    %v1428 = vsel %vm1427, %v1420, %v1424
    %v1429 = vand.u32 2147483647, %v1419
    %vm1430 = vcmp.eq.f32.partialorder %v1429, 8.507059e+37
    %v1431 = vand.u32 %v1419, 2147483648
    %v1432 = vor.u32 1.1754944e-38, %v1431
    %v1433 = vsel %vm1430, %v1432, %v1428
    %v1434 = vmul.f32 1.0, %v1433
    %v1435 = vmul.f32 %v1415, %v1434
    %v1436 = vpack.c.bf16 %v1435, %v1435
    %v1438 = vperm.slane %v385, 0
    %v1448 = vunpack.c.l.b16 %v377
    %v1449 = vunpack.c.l.b16 %v378
    %v1450 = vunpack.c.l.b16 %v379
    %v1451 = vunpack.c.l.b16 %v380
    %v1452 = vunpack.c.l.b16 %v381
    %v1453 = vunpack.c.l.b16 %v382
    %v1454 = vunpack.c.l.b16 %v383
    %v1455 = vunpack.c.l.b16 %v384
    %v1456 = vpack.c.b16 %v1449, %v1448
    %v1457 = vpack.c.b16 %v1451, %v1450
    %v1458 = vpack.c.b16 %v1453, %v1452
    %v1459 = vpack.c.b16 %v1455, %v1454
    %v1465 = vsel %vm922, %v1436, 0
    %1467 = vmatpush.bf16.msra.mxu0 0
    %1468 = vmatpush.bf16.msra.mxu0 0
    %1469 = vmatpush.bf16.msra.mxu0 0
    %1470 = vmatpush.bf16.msra.mxu0 0
    %1471 = vmatpush.bf16.msra.mxu0 %v1459
    %1472 = vmatpush.bf16.msra.mxu0 %v1458
    %1473 = vmatpush.bf16.msra.mxu0 %v1457
    %1474 = vmatpush.bf16.msra.mxu0 %v1456
    %1475 = vmatmul.bf16.gmra.mxu0 %v1465
    %v1476 = vpop.f32.mrf.mxu0
    %v1477 = vadd.f32 %v1438, %v1476
    %v1478 = vpop.f32.mrf.mxu0
    %1479 = vdwg.mxu0
    %v1480 = vpack.c.bf16 %v340, %v340
    %v1482 = vperm.slane %v390, 0
    %v1488 = vunpack.c.l.b16 %v386
    %v1489 = vunpack.c.l.b16 %v387
    %v1490 = vunpack.c.l.b16 %v388
    %v1491 = vunpack.c.l.b16 %v389
    %v1492 = vpack.c.b16 %v1489, %v1488
    %v1493 = vpack.c.b16 %v1491, %v1490
    %v1497 = vsel %vm392, %v1480, 0
    %1499 = vmatpush.bf16.msra.mxu0 0
    %1500 = vmatpush.bf16.msra.mxu0 0
    %1501 = vmatpush.bf16.msra.mxu0 0
    %1502 = vmatpush.bf16.msra.mxu0 0
    %1503 = vmatpush.bf16.msra.mxu0 0
    %1504 = vmatpush.bf16.msra.mxu0 0
    %1505 = vmatpush.bf16.msra.mxu0 %v1493
    %1506 = vmatpush.bf16.msra.mxu0 %v1492
    %1507 = vmatmul.bf16.gmra.mxu0 %v1497
    %v1508 = vpop.f32.mrf.mxu0
    %v1509 = vadd.f32 %v1482, %v1508
    %v1510 = vpop.f32.mrf.mxu0
    %1511 = vdwg.mxu0
    %v1512 = vadd.f32 %v1509, %v1477
    %v1513 = vsel %vm922, %v1512, 0.0
    %1514 = vst [vmem:[#allocation25] sm:$0xff] %v1513
    %v1515 = vld [vmem:[%s37] sm:$0x1]
    %v1516 = vld [vmem:[%s39] sm:$0x1]
    %v1517 = vld [vmem:[%s41] sm:$0xf]
    %v1518 = vld [vmem:[%s41 + $0x4] sm:$0xf]
    %v1519 = vld [vmem:[%s41 + $0x8] sm:$0xf]
    %v1520 = vld [vmem:[%s41 + $0xc] sm:$0xf]
    %v1521 = vld [vmem:[%s41 + $0x10] sm:$0xf]
    %v1522 = vld [vmem:[%s41 + $0x14] sm:$0xf]
    %v1523 = vld [vmem:[%s41 + $0x18] sm:$0xf]
    %v1524 = vld [vmem:[%s41 + $0x1c] sm:$0xf]
    %v1525 = vld [vmem:[%s43] sm:$0x1]
    %v1526 = vld [vmem:[#allocation22] sm:$0xf]
    %v1527 = vld [vmem:[#allocation22 + $0x4] sm:$0xf]
    %v1528 = vld [vmem:[#allocation22 + $0x8] sm:$0xf]
    %v1529 = vld [vmem:[#allocation22 + $0xc] sm:$0xf]
    %v1530 = vld [vmem:[%s47] sm:$0x1]
    %v1531 = vld [vmem:[%s49] sm:$0x1]
    %v1532 = vld [vmem:[%s51] sm:$0x1]
    %v1533 = vld [vmem:[%s53] sm:$0xf]
    %v1534 = vld [vmem:[%s53 + $0x4] sm:$0xf]
    %v1535 = vld [vmem:[%s53 + $0x8] sm:$0xf]
    %v1536 = vld [vmem:[%s53 + $0xc] sm:$0xf]
    %v1537 = vld [vmem:[%s53 + $0x10] sm:$0xf]
    %v1538 = vld [vmem:[%s53 + $0x14] sm:$0xf]
    %v1539 = vld [vmem:[%s53 + $0x18] sm:$0xf]
    %v1540 = vld [vmem:[%s53 + $0x1c] sm:$0xf]
    %v1541 = vld [vmem:[%s55] sm:$0x1]
    %v1542 = vmul.f32 %v1512, %v1512
    %v1544 = vsel %vm922, %v1512, 0
    %v1547 = vsel %vm922, %v1542, 0
    %1549 = vmatpush.msra.mxu0 0.0
    %1550 = vmatpush.msra.mxu0 0.0
    %1551 = vmatpush.msra.mxu0 0.0
    %1552 = vmatpush.msra.mxu0 0.0
    %1553 = vmatpush.msra.mxu0 0.0
    %1554 = vmatpush.msra.mxu0 0.0
    %1555 = vmatpush.msra.mxu0 0.0
    %1556 = vmatpush.msra.mxu0 0.0
    %v1557 = vand.u32 %v338, 4294901760
    %1558 = vmatpush.msra.mxu0 %v1557
    %v1559 = vand.u32 %v337, 4294901760
    %1560 = vmatpush.msra.mxu0 %v1559
    %v1561 = vand.u32 %v336, 4294901760
    %1562 = vmatpush.msra.mxu0 %v1561
    %v1563 = vand.u32 %v335, 4294901760
    %1564 = vmatpush.msra.mxu0 %v1563
    %v1565 = vand.u32 %v334, 4294901760
    %1566 = vmatpush.msra.mxu0 %v1565
    %v1567 = vand.u32 %v333, 4294901760
    %1568 = vmatpush.msra.mxu0 %v1567
    %v1569 = vand.u32 %v332, 4294901760
    %1570 = vmatpush.msra.mxu0 %v1569
    %v1571 = vand.u32 %v331, 4294901760
    %1572 = vmatpush.msra.mxu0 %v1571
    %v1573 = vand.u32 %v1544, 4294901760
    %v1574 = vsub.f32 %v1544, %v1573
    %v1575 = vand.u32 %v1574, 4294901760
    %v1576 = vsub.f32 %v1574, %v1575
    %v1577 = vand.u32 %v1576, 4294901760
    %1578 = vmatmul.f32.gmra.mxu0 %v1577
    %v1579 = vpop.f32.mrf.mxu0
    %v1580 = vadd.f32 0.0, %v1579
    %v1581 = vand.u32 %v1547, 4294901760
    %v1582 = vsub.f32 %v1547, %v1581
    %v1583 = vand.u32 %v1582, 4294901760
    %v1584 = vsub.f32 %v1582, %v1583
    %v1585 = vand.u32 %v1584, 4294901760
    %1586 = vmatmul.f32.gmra.mxu0 %v1585
    %v1587 = vpop.f32.mrf.mxu0
    %v1588 = vadd.f32 0.0, %v1587
    %1589 = vdwg.mxu0
    %1590 = vmatpush.msra.mxu0 0.0
    %1591 = vmatpush.msra.mxu0 0.0
    %1592 = vmatpush.msra.mxu0 0.0
    %1593 = vmatpush.msra.mxu0 0.0
    %1594 = vmatpush.msra.mxu0 0.0
    %1595 = vmatpush.msra.mxu0 0.0
    %1596 = vmatpush.msra.mxu0 0.0
    %1597 = vmatpush.msra.mxu0 0.0
    %v1598 = vand.u32 %v338, 4294901760
    %v1599 = vsub.f32 %v338, %v1598
    %v1600 = vand.u32 %v1599, 4294901760
    %v1601 = vsub.f32 %v1599, %v1600
    %v1602 = vand.u32 %v1601, 4294901760
    %1603 = vmatpush.msra.mxu0 %v1602
    %v1604 = vand.u32 %v337, 4294901760
    %v1605 = vsub.f32 %v337, %v1604
    %v1606 = vand.u32 %v1605, 4294901760
    %v1607 = vsub.f32 %v1605, %v1606
    %v1608 = vand.u32 %v1607, 4294901760
    %1609 = vmatpush.msra.mxu0 %v1608
    %v1610 = vand.u32 %v336, 4294901760
    %v1611 = vsub.f32 %v336, %v1610
    %v1612 = vand.u32 %v1611, 4294901760
    %v1613 = vsub.f32 %v1611, %v1612
    %v1614 = vand.u32 %v1613, 4294901760
    %1615 = vmatpush.msra.mxu0 %v1614
    %v1616 = vand.u32 %v335, 4294901760
    %v1617 = vsub.f32 %v335, %v1616
    %v1618 = vand.u32 %v1617, 4294901760
    %v1619 = vsub.f32 %v1617, %v1618
    %v1620 = vand.u32 %v1619, 4294901760
    %1621 = vmatpush.msra.mxu0 %v1620
    %v1622 = vand.u32 %v334, 4294901760
    %v1623 = vsub.f32 %v334, %v1622
    %v1624 = vand.u32 %v1623, 4294901760
    %v1625 = vsub.f32 %v1623, %v1624
    %v1626 = vand.u32 %v1625, 4294901760
    %1627 = vmatpush.msra.mxu0 %v1626
    %v1628 = vand.u32 %v333, 4294901760
    %v1629 = vsub.f32 %v333, %v1628
    %v1630 = vand.u32 %v1629, 4294901760
    %v1631 = vsub.f32 %v1629, %v1630
    %v1632 = vand.u32 %v1631, 4294901760
    %1633 = vmatpush.msra.mxu0 %v1632
    %v1634 = vand.u32 %v332, 4294901760
    %v1635 = vsub.f32 %v332, %v1634
    %v1636 = vand.u32 %v1635, 4294901760
    %v1637 = vsub.f32 %v1635, %v1636
    %v1638 = vand.u32 %v1637, 4294901760
    %1639 = vmatpush.msra.mxu0 %v1638
    %v1640 = vand.u32 %v331, 4294901760
    %v1641 = vsub.f32 %v331, %v1640
    %v1642 = vand.u32 %v1641, 4294901760
    %v1643 = vsub.f32 %v1641, %v1642
    %v1644 = vand.u32 %v1643, 4294901760
    %1645 = vmatpush.msra.mxu0 %v1644
    %v1646 = vand.u32 %v1544, 4294901760
    %1647 = vmatmul.f32.gmra.mxu0 %v1646
    %v1648 = vpop.f32.mrf.mxu0
    %v1649 = vadd.f32 %v1580, %v1648
    %v1650 = vand.u32 %v1547, 4294901760
    %1651 = vmatmul.f32.gmra.mxu0 %v1650
    %v1652 = vpop.f32.mrf.mxu0
    %v1653 = vadd.f32 %v1588, %v1652
    %1654 = vdwg.mxu0
    %1655 = vmatpush.msra.mxu0 0.0
    %1656 = vmatpush.msra.mxu0 0.0
    %1657 = vmatpush.msra.mxu0 0.0
    %1658 = vmatpush.msra.mxu0 0.0
    %1659 = vmatpush.msra.mxu0 0.0
    %1660 = vmatpush.msra.mxu0 0.0
    %1661 = vmatpush.msra.mxu0 0.0
    %1662 = vmatpush.msra.mxu0 0.0
    %v1663 = vand.u32 %v338, 4294901760
    %v1664 = vsub.f32 %v338, %v1663
    %1665 = vmatpush.msra.mxu0 %v1664
    %v1666 = vand.u32 %v337, 4294901760
    %v1667 = vsub.f32 %v337, %v1666
    %1668 = vmatpush.msra.mxu0 %v1667
    %v1669 = vand.u32 %v336, 4294901760
    %v1670 = vsub.f32 %v336, %v1669
    %1671 = vmatpush.msra.mxu0 %v1670
    %v1672 = vand.u32 %v335, 4294901760
    %v1673 = vsub.f32 %v335, %v1672
    %1674 = vmatpush.msra.mxu0 %v1673
    %v1675 = vand.u32 %v334, 4294901760
    %v1676 = vsub.f32 %v334, %v1675
    %1677 = vmatpush.msra.mxu0 %v1676
    %v1678 = vand.u32 %v333, 4294901760
    %v1679 = vsub.f32 %v333, %v1678
    %1680 = vmatpush.msra.mxu0 %v1679
    %v1681 = vand.u32 %v332, 4294901760
    %v1682 = vsub.f32 %v332, %v1681
    %1683 = vmatpush.msra.mxu0 %v1682
    %v1684 = vand.u32 %v331, 4294901760
    %v1685 = vsub.f32 %v331, %v1684
    %1686 = vmatpush.msra.mxu0 %v1685
    %v1687 = vand.u32 %v1544, 4294901760
    %v1688 = vsub.f32 %v1544, %v1687
    %1689 = vmatmul.f32.gmra.mxu0 %v1688
    %v1690 = vpop.f32.mrf.mxu0
    %v1691 = vadd.f32 %v1649, %v1690
    %v1692 = vand.u32 %v1547, 4294901760
    %v1693 = vsub.f32 %v1547, %v1692
    %1694 = vmatmul.f32.gmra.mxu0 %v1693
    %v1695 = vpop.f32.mrf.mxu0
    %v1696 = vadd.f32 %v1653, %v1695
    %1697 = vdwg.mxu0
    %1698 = vmatpush.msra.mxu0 0.0
    %1699 = vmatpush.msra.mxu0 0.0
    %1700 = vmatpush.msra.mxu0 0.0
    %1701 = vmatpush.msra.mxu0 0.0
    %1702 = vmatpush.msra.mxu0 0.0
    %1703 = vmatpush.msra.mxu0 0.0
    %1704 = vmatpush.msra.mxu0 0.0
    %1705 = vmatpush.msra.mxu0 0.0
    %v1706 = vand.u32 %v338, 4294901760
    %1707 = vmatpush.msra.mxu0 %v1706
    %v1708 = vand.u32 %v337, 4294901760
    %1709 = vmatpush.msra.mxu0 %v1708
    %v1710 = vand.u32 %v336, 4294901760
    %1711 = vmatpush.msra.mxu0 %v1710
    %v1712 = vand.u32 %v335, 4294901760
    %1713 = vmatpush.msra.mxu0 %v1712
    %v1714 = vand.u32 %v334, 4294901760
    %1715 = vmatpush.msra.mxu0 %v1714
    %v1716 = vand.u32 %v333, 4294901760
    %1717 = vmatpush.msra.mxu0 %v1716
    %v1718 = vand.u32 %v332, 4294901760
    %1719 = vmatpush.msra.mxu0 %v1718
    %v1720 = vand.u32 %v331, 4294901760
    %1721 = vmatpush.msra.mxu0 %v1720
    %v1722 = vand.u32 %v1544, 4294901760
    %v1723 = vsub.f32 %v1544, %v1722
    %v1724 = vand.u32 %v1723, 4294901760
    %1725 = vmatmul.f32.gmra.mxu0 %v1724
    %v1726 = vpop.f32.mrf.mxu0
    %v1727 = vadd.f32 %v1691, %v1726
    %v1728 = vand.u32 %v1547, 4294901760
    %v1729 = vsub.f32 %v1547, %v1728
    %v1730 = vand.u32 %v1729, 4294901760
    %1731 = vmatmul.f32.gmra.mxu0 %v1730
    %v1732 = vpop.f32.mrf.mxu0
    %v1733 = vadd.f32 %v1696, %v1732
    %1734 = vdwg.mxu0
    %1735 = vmatpush.msra.mxu0 0.0
    %1736 = vmatpush.msra.mxu0 0.0
    %1737 = vmatpush.msra.mxu0 0.0
    %1738 = vmatpush.msra.mxu0 0.0
    %1739 = vmatpush.msra.mxu0 0.0
    %1740 = vmatpush.msra.mxu0 0.0
    %1741 = vmatpush.msra.mxu0 0.0
    %1742 = vmatpush.msra.mxu0 0.0
    %v1743 = vand.u32 %v338, 4294901760
    %v1744 = vsub.f32 %v338, %v1743
    %v1745 = vand.u32 %v1744, 4294901760
    %1746 = vmatpush.msra.mxu0 %v1745
    %v1747 = vand.u32 %v337, 4294901760
    %v1748 = vsub.f32 %v337, %v1747
    %v1749 = vand.u32 %v1748, 4294901760
    %1750 = vmatpush.msra.mxu0 %v1749
    %v1751 = vand.u32 %v336, 4294901760
    %v1752 = vsub.f32 %v336, %v1751
    %v1753 = vand.u32 %v1752, 4294901760
    %1754 = vmatpush.msra.mxu0 %v1753
    %v1755 = vand.u32 %v335, 4294901760
    %v1756 = vsub.f32 %v335, %v1755
    %v1757 = vand.u32 %v1756, 4294901760
    %1758 = vmatpush.msra.mxu0 %v1757
    %v1759 = vand.u32 %v334, 4294901760
    %v1760 = vsub.f32 %v334, %v1759
    %v1761 = vand.u32 %v1760, 4294901760
    %1762 = vmatpush.msra.mxu0 %v1761
    %v1763 = vand.u32 %v333, 4294901760
    %v1764 = vsub.f32 %v333, %v1763
    %v1765 = vand.u32 %v1764, 4294901760
    %1766 = vmatpush.msra.mxu0 %v1765
    %v1767 = vand.u32 %v332, 4294901760
    %v1768 = vsub.f32 %v332, %v1767
    %v1769 = vand.u32 %v1768, 4294901760
    %1770 = vmatpush.msra.mxu0 %v1769
    %v1771 = vand.u32 %v331, 4294901760
    %v1772 = vsub.f32 %v331, %v1771
    %v1773 = vand.u32 %v1772, 4294901760
    %1774 = vmatpush.msra.mxu0 %v1773
    %v1775 = vand.u32 %v1544, 4294901760
    %1776 = vmatmul.f32.gmra.mxu0 %v1775
    %v1777 = vpop.f32.mrf.mxu0
    %v1778 = vadd.f32 %v1727, %v1777
    %v1779 = vand.u32 %v1547, 4294901760
    %1780 = vmatmul.f32.gmra.mxu0 %v1779
    %v1781 = vpop.f32.mrf.mxu0
    %v1782 = vadd.f32 %v1733, %v1781
    %1783 = vdwg.mxu0
    %1784 = vmatpush.msra.mxu0 0.0
    %1785 = vmatpush.msra.mxu0 0.0
    %1786 = vmatpush.msra.mxu0 0.0
    %1787 = vmatpush.msra.mxu0 0.0
    %1788 = vmatpush.msra.mxu0 0.0
    %1789 = vmatpush.msra.mxu0 0.0
    %1790 = vmatpush.msra.mxu0 0.0
    %1791 = vmatpush.msra.mxu0 0.0
    %v1792 = vand.u32 %v338, 4294901760
    %1793 = vmatpush.msra.mxu0 %v1792
    %v1794 = vand.u32 %v337, 4294901760
    %1795 = vmatpush.msra.mxu0 %v1794
    %v1796 = vand.u32 %v336, 4294901760
    %1797 = vmatpush.msra.mxu0 %v1796
    %v1798 = vand.u32 %v335, 4294901760
    %1799 = vmatpush.msra.mxu0 %v1798
    %v1800 = vand.u32 %v334, 4294901760
    %1801 = vmatpush.msra.mxu0 %v1800
    %v1802 = vand.u32 %v333, 4294901760
    %1803 = vmatpush.msra.mxu0 %v1802
    %v1804 = vand.u32 %v332, 4294901760
    %1805 = vmatpush.msra.mxu0 %v1804
    %v1806 = vand.u32 %v331, 4294901760
    %1807 = vmatpush.msra.mxu0 %v1806
    %v1808 = vand.u32 %v1544, 4294901760
    %1809 = vmatmul.f32.gmra.mxu0 %v1808
    %v1810 = vpop.f32.mrf.mxu0
    %v1811 = vadd.f32 %v1778, %v1810
    %v1812 = vand.u32 %v1547, 4294901760
    %1813 = vmatmul.f32.gmra.mxu0 %v1812
    %v1814 = vpop.f32.mrf.mxu0
    %v1815 = vadd.f32 %v1782, %v1814
    %1816 = vdwg.mxu0
    %v1817 = vmul.f32 %v1811, %v1203
    %v1818 = vmul.f32 %v1815, %v1203
    %v1819 = vmul.f32 %v1817, %v1817
    %v1820 = vsub.f32 %v1818, %v1819
    %v1821 = vmax.f32 %v1820, 0.0
    %v1822 = vadd.f32 %v1821, 1e-06
    %v1823 = vrsqrt.pop %v1822
    %v1824 = vmul.f32 %v1823, %v1822
    %v1825 = vmul.f32 %v1824, %v1823
    %v1826 = vmul.f32 0.5, %v1825
    %v1827 = vsub.f32 1.5, %v1826
    %v1828 = vmul.f32 %v1823, %v1827
    %vm1829 = vweird.f32 %v1822
    %vm1830 = vweird.f32 %v1823
    %vm1831 = vmor %vm1829, %vm1830
    %v1832 = vsel %vm1831, %v1823, %v1828
    %v1834 = vsel %vm638, %v1817, 0
    %v1837 = vsel %vm638, %v1832, 0
    %1839 = vmatpush.msra.mxu0 0.0
    %1840 = vmatpush.msra.mxu0 0.0
    %1841 = vmatpush.msra.mxu0 0.0
    %1842 = vmatpush.msra.mxu0 0.0
    %1843 = vmatpush.msra.mxu0 0.0
    %1844 = vmatpush.msra.mxu0 0.0
    %1845 = vmatpush.msra.mxu0 0.0
    %1846 = vmatpush.msra.mxu0 0.0
    %1847 = vmatpush.msra.mxu0 0.0
    %1848 = vmatpush.msra.mxu0 0.0
    %1849 = vmatpush.msra.mxu0 0.0
    %1850 = vmatpush.msra.mxu0 0.0
    %1851 = vmatpush.msra.mxu0 0.0
    %1852 = vmatpush.msra.mxu0 0.0
    %1853 = vmatpush.msra.mxu0 0.0
    %v1854 = vand.u32 %v1227, 4294901760
    %1855 = vmatpush.msra.mxu0 %v1854
    %v1856 = vand.u32 %v1834, 4294901760
    %v1857 = vsub.f32 %v1834, %v1856
    %v1858 = vand.u32 %v1857, 4294901760
    %v1859 = vsub.f32 %v1857, %v1858
    %v1860 = vand.u32 %v1859, 4294901760
    %1861 = vmatmul.f32.gmra.mxu0 %v1860
    %v1862 = vpop.f32.mrf.mxu0
    %v1863 = vadd.f32 0.0, %v1862
    %v1864 = vand.u32 %v1837, 4294901760
    %v1865 = vsub.f32 %v1837, %v1864
    %v1866 = vand.u32 %v1865, 4294901760
    %v1867 = vsub.f32 %v1865, %v1866
    %v1868 = vand.u32 %v1867, 4294901760
    %1869 = vmatmul.f32.gmra.mxu0 %v1868
    %v1870 = vpop.f32.mrf.mxu0
    %v1871 = vadd.f32 0.0, %v1870
    %1872 = vdwg.mxu0
    %1873 = vmatpush.msra.mxu0 0.0
    %1874 = vmatpush.msra.mxu0 0.0
    %1875 = vmatpush.msra.mxu0 0.0
    %1876 = vmatpush.msra.mxu0 0.0
    %1877 = vmatpush.msra.mxu0 0.0
    %1878 = vmatpush.msra.mxu0 0.0
    %1879 = vmatpush.msra.mxu0 0.0
    %1880 = vmatpush.msra.mxu0 0.0
    %1881 = vmatpush.msra.mxu0 0.0
    %1882 = vmatpush.msra.mxu0 0.0
    %1883 = vmatpush.msra.mxu0 0.0
    %1884 = vmatpush.msra.mxu0 0.0
    %1885 = vmatpush.msra.mxu0 0.0
    %1886 = vmatpush.msra.mxu0 0.0
    %1887 = vmatpush.msra.mxu0 0.0
    %v1888 = vand.u32 %v1227, 4294901760
    %v1889 = vsub.f32 %v1227, %v1888
    %v1890 = vand.u32 %v1889, 4294901760
    %v1891 = vsub.f32 %v1889, %v1890
    %v1892 = vand.u32 %v1891, 4294901760
    %1893 = vmatpush.msra.mxu0 %v1892
    %v1894 = vand.u32 %v1834, 4294901760
    %1895 = vmatmul.f32.gmra.mxu0 %v1894
    %v1896 = vpop.f32.mrf.mxu0
    %v1897 = vadd.f32 %v1863, %v1896
    %v1898 = vand.u32 %v1837, 4294901760
    %1899 = vmatmul.f32.gmra.mxu0 %v1898
    %v1900 = vpop.f32.mrf.mxu0
    %v1901 = vadd.f32 %v1871, %v1900
    %1902 = vdwg.mxu0
    %1903 = vmatpush.msra.mxu0 0.0
    %1904 = vmatpush.msra.mxu0 0.0
    %1905 = vmatpush.msra.mxu0 0.0
    %1906 = vmatpush.msra.mxu0 0.0
    %1907 = vmatpush.msra.mxu0 0.0
    %1908 = vmatpush.msra.mxu0 0.0
    %1909 = vmatpush.msra.mxu0 0.0
    %1910 = vmatpush.msra.mxu0 0.0
    %1911 = vmatpush.msra.mxu0 0.0
    %1912 = vmatpush.msra.mxu0 0.0
    %1913 = vmatpush.msra.mxu0 0.0
    %1914 = vmatpush.msra.mxu0 0.0
    %1915 = vmatpush.msra.mxu0 0.0
    %1916 = vmatpush.msra.mxu0 0.0
    %1917 = vmatpush.msra.mxu0 0.0
    %v1918 = vand.u32 %v1227, 4294901760
    %v1919 = vsub.f32 %v1227, %v1918
    %1920 = vmatpush.msra.mxu0 %v1919
    %v1921 = vand.u32 %v1834, 4294901760
    %v1922 = vsub.f32 %v1834, %v1921
    %1923 = vmatmul.f32.gmra.mxu0 %v1922
    %v1924 = vpop.f32.mrf.mxu0
    %v1925 = vadd.f32 %v1897, %v1924
    %v1926 = vand.u32 %v1837, 4294901760
    %v1927 = vsub.f32 %v1837, %v1926
    %1928 = vmatmul.f32.gmra.mxu0 %v1927
    %v1929 = vpop.f32.mrf.mxu0
    %v1930 = vadd.f32 %v1901, %v1929
    %1931 = vdwg.mxu0
    %1932 = vmatpush.msra.mxu0 0.0
    %1933 = vmatpush.msra.mxu0 0.0
    %1934 = vmatpush.msra.mxu0 0.0
    %1935 = vmatpush.msra.mxu0 0.0
    %1936 = vmatpush.msra.mxu0 0.0
    %1937 = vmatpush.msra.mxu0 0.0
    %1938 = vmatpush.msra.mxu0 0.0
    %1939 = vmatpush.msra.mxu0 0.0
    %1940 = vmatpush.msra.mxu0 0.0
    %1941 = vmatpush.msra.mxu0 0.0
    %1942 = vmatpush.msra.mxu0 0.0
    %1943 = vmatpush.msra.mxu0 0.0
    %1944 = vmatpush.msra.mxu0 0.0
    %1945 = vmatpush.msra.mxu0 0.0
    %1946 = vmatpush.msra.mxu0 0.0
    %v1947 = vand.u32 %v1227, 4294901760
    %1948 = vmatpush.msra.mxu0 %v1947
    %v1949 = vand.u32 %v1834, 4294901760
    %v1950 = vsub.f32 %v1834, %v1949
    %v1951 = vand.u32 %v1950, 4294901760
    %1952 = vmatmul.f32.gmra.mxu0 %v1951
    %v1953 = vpop.f32.mrf.mxu0
    %v1954 = vadd.f32 %v1925, %v1953
    %v1955 = vand.u32 %v1837, 4294901760
    %v1956 = vsub.f32 %v1837, %v1955
    %v1957 = vand.u32 %v1956, 4294901760
    %1958 = vmatmul.f32.gmra.mxu0 %v1957
    %v1959 = vpop.f32.mrf.mxu0
    %v1960 = vadd.f32 %v1930, %v1959
    %1961 = vdwg.mxu0
    %1962 = vmatpush.msra.mxu0 0.0
    %1963 = vmatpush.msra.mxu0 0.0
    %1964 = vmatpush.msra.mxu0 0.0
    %1965 = vmatpush.msra.mxu0 0.0
    %1966 = vmatpush.msra.mxu0 0.0
    %1967 = vmatpush.msra.mxu0 0.0
    %1968 = vmatpush.msra.mxu0 0.0
    %1969 = vmatpush.msra.mxu0 0.0
    %1970 = vmatpush.msra.mxu0 0.0
    %1971 = vmatpush.msra.mxu0 0.0
    %1972 = vmatpush.msra.mxu0 0.0
    %1973 = vmatpush.msra.mxu0 0.0
    %1974 = vmatpush.msra.mxu0 0.0
    %1975 = vmatpush.msra.mxu0 0.0
    %1976 = vmatpush.msra.mxu0 0.0
    %v1977 = vand.u32 %v1227, 4294901760
    %v1978 = vsub.f32 %v1227, %v1977
    %v1979 = vand.u32 %v1978, 4294901760
    %1980 = vmatpush.msra.mxu0 %v1979
    %v1981 = vand.u32 %v1834, 4294901760
    %1982 = vmatmul.f32.gmra.mxu0 %v1981
    %v1983 = vpop.f32.mrf.mxu0
    %v1984 = vadd.f32 %v1954, %v1983
    %v1985 = vand.u32 %v1837, 4294901760
    %1986 = vmatmul.f32.gmra.mxu0 %v1985
    %v1987 = vpop.f32.mrf.mxu0
    %v1988 = vadd.f32 %v1960, %v1987
    %1989 = vdwg.mxu0
    %1990 = vmatpush.msra.mxu0 0.0
    %1991 = vmatpush.msra.mxu0 0.0
    %1992 = vmatpush.msra.mxu0 0.0
    %1993 = vmatpush.msra.mxu0 0.0
    %1994 = vmatpush.msra.mxu0 0.0
    %1995 = vmatpush.msra.mxu0 0.0
    %1996 = vmatpush.msra.mxu0 0.0
    %1997 = vmatpush.msra.mxu0 0.0
    %1998 = vmatpush.msra.mxu0 0.0
    %1999 = vmatpush.msra.mxu0 0.0
    %2000 = vmatpush.msra.mxu0 0.0
    %2001 = vmatpush.msra.mxu0 0.0
    %2002 = vmatpush.msra.mxu0 0.0
    %2003 = vmatpush.msra.mxu0 0.0
    %2004 = vmatpush.msra.mxu0 0.0
    %v2005 = vand.u32 %v1227, 4294901760
    %2006 = vmatpush.msra.mxu0 %v2005
    %v2007 = vand.u32 %v1834, 4294901760
    %2008 = vmatmul.f32.gmra.mxu0 %v2007
    %v2009 = vpop.f32.mrf.mxu0
    %v2010 = vadd.f32 %v1984, %v2009
    %v2011 = vand.u32 %v1837, 4294901760
    %2012 = vmatmul.f32.gmra.mxu0 %v2011
    %v2013 = vpop.f32.mrf.mxu0
    %v2014 = vadd.f32 %v1988, %v2013
    %2015 = vdwg.mxu0
    %v2016 = vsub.f32 %v1512, %v2010
    %v2017 = vmul.f32 %v2016, %v2014
    %v2019 = vperm.slane %v1515, 0
    %v2021 = vmul.f32 %v2017, %v2019
    %v2023 = vperm.slane %v1516, 0
    %v2025 = vadd.f32 %v2021, %v2023
    %v2026 = vxor.u32 %v2025, 2147483648
    %v2027 = vmul.f32 %v2026, 1.442695
    %v2028 = vpow.pop %v2027
    %v2029 = vadd.f32 %v2028, 1.0
    %v2030 = vrcp.pop %v2029
    %v2031 = vmul.f32 %v2029, %v2030
    %v2032 = vsub.f32 1.0, %v2031
    %v2033 = vmul.f32 %v2030, %v2032
    %v2034 = vadd.f32 %v2030, %v2033
    %vm2035 = vweird.f32 %v2029
    %vm2036 = vweird.f32 %v2030
    %vm2037 = vmor %vm2035, %vm2036
    %v2038 = vsel %vm2037, %v2030, %v2034
    %v2039 = vand.u32 2147483647, %v2029
    %vm2040 = vcmp.eq.f32.partialorder %v2039, 8.507059e+37
    %v2041 = vand.u32 %v2029, 2147483648
    %v2042 = vor.u32 1.1754944e-38, %v2041
    %v2043 = vsel %vm2040, %v2042, %v2038
    %v2044 = vmul.f32 1.0, %v2043
    %v2045 = vmul.f32 %v2025, %v2044
    %v2046 = vpack.c.bf16 %v2045, %v2045
    %v2048 = vperm.slane %v1525, 0
    %v2058 = vunpack.c.l.b16 %v1517
    %v2059 = vunpack.c.l.b16 %v1518
    %v2060 = vunpack.c.l.b16 %v1519
    %v2061 = vunpack.c.l.b16 %v1520
    %v2062 = vunpack.c.l.b16 %v1521
    %v2063 = vunpack.c.l.b16 %v1522
    %v2064 = vunpack.c.l.b16 %v1523
    %v2065 = vunpack.c.l.b16 %v1524
    %v2066 = vpack.c.b16 %v2059, %v2058
    %v2067 = vpack.c.b16 %v2061, %v2060
    %v2068 = vpack.c.b16 %v2063, %v2062
    %v2069 = vpack.c.b16 %v2065, %v2064
    %v2075 = vsel %vm922, %v2046, 0
    %2077 = vmatpush.bf16.msra.mxu0 0
    %2078 = vmatpush.bf16.msra.mxu0 0
    %2079 = vmatpush.bf16.msra.mxu0 0
    %2080 = vmatpush.bf16.msra.mxu0 0
    %2081 = vmatpush.bf16.msra.mxu0 %v2069
    %2082 = vmatpush.bf16.msra.mxu0 %v2068
    %2083 = vmatpush.bf16.msra.mxu0 %v2067
    %2084 = vmatpush.bf16.msra.mxu0 %v2066
    %2085 = vmatmul.bf16.gmra.mxu0 %v2075
    %v2086 = vpop.f32.mrf.mxu0
    %v2087 = vadd.f32 %v2048, %v2086
    %v2088 = vpop.f32.mrf.mxu0
    %2089 = vdwg.mxu0
    %v2094 = vunpack.c.l.b16 %v1526
    %v2095 = vunpack.c.l.b16 %v1527
    %v2096 = vunpack.c.l.b16 %v1528
    %v2097 = vunpack.c.l.b16 %v1529
    %v2098 = vpack.c.b16 %v2095, %v2094
    %v2099 = vpack.c.b16 %v2097, %v2096
    %2102 = vmatpush.bf16.msra.mxu0 0
    %2103 = vmatpush.bf16.msra.mxu0 0
    %2104 = vmatpush.bf16.msra.mxu0 0
    %2105 = vmatpush.bf16.msra.mxu0 0
    %2106 = vmatpush.bf16.msra.mxu0 0
    %2107 = vmatpush.bf16.msra.mxu0 0
    %2108 = vmatpush.bf16.msra.mxu0 %v2099
    %2109 = vmatpush.bf16.msra.mxu0 %v2098
    %2110 = vmatmul.bf16.gmra.mxu0 %v901
    %v2111 = vpop.f32.mrf.mxu0
    %v2112 = vadd.f32 0.0, %v2111
    %v2113 = vpop.f32.mrf.mxu0
    %2114 = vdwg.mxu0
    %v2115 = vadd.f32 %v2087, %v2112
    %v2117 = vperm.slane %v1530, 0
    %v2119 = vadd.f32 %v2115, %v2117
    %v2120 = vmul.f32 %v2119, %v2119
    %v2122 = vsel %vm922, %v2119, 0
    %v2125 = vsel %vm922, %v2120, 0
    %2127 = vmatpush.msra.mxu0 0.0
    %2128 = vmatpush.msra.mxu0 0.0
    %2129 = vmatpush.msra.mxu0 0.0
    %2130 = vmatpush.msra.mxu0 0.0
    %2131 = vmatpush.msra.mxu0 0.0
    %2132 = vmatpush.msra.mxu0 0.0
    %2133 = vmatpush.msra.mxu0 0.0
    %2134 = vmatpush.msra.mxu0 0.0
    %v2135 = vand.u32 %v338, 4294901760
    %2136 = vmatpush.msra.mxu0 %v2135
    %v2137 = vand.u32 %v337, 4294901760
    %2138 = vmatpush.msra.mxu0 %v2137
    %v2139 = vand.u32 %v336, 4294901760
    %2140 = vmatpush.msra.mxu0 %v2139
    %v2141 = vand.u32 %v335, 4294901760
    %2142 = vmatpush.msra.mxu0 %v2141
    %v2143 = vand.u32 %v334, 4294901760
    %2144 = vmatpush.msra.mxu0 %v2143
    %v2145 = vand.u32 %v333, 4294901760
    %2146 = vmatpush.msra.mxu0 %v2145
    %v2147 = vand.u32 %v332, 4294901760
    %2148 = vmatpush.msra.mxu0 %v2147
    %v2149 = vand.u32 %v331, 4294901760
    %2150 = vmatpush.msra.mxu0 %v2149
    %v2151 = vand.u32 %v2122, 4294901760
    %v2152 = vsub.f32 %v2122, %v2151
    %v2153 = vand.u32 %v2152, 4294901760
    %v2154 = vsub.f32 %v2152, %v2153
    %v2155 = vand.u32 %v2154, 4294901760
    %2156 = vmatmul.f32.gmra.mxu0 %v2155
    %v2157 = vpop.f32.mrf.mxu0
    %v2158 = vadd.f32 0.0, %v2157
    %v2159 = vand.u32 %v2125, 4294901760
    %v2160 = vsub.f32 %v2125, %v2159
    %v2161 = vand.u32 %v2160, 4294901760
    %v2162 = vsub.f32 %v2160, %v2161
    %v2163 = vand.u32 %v2162, 4294901760
    %2164 = vmatmul.f32.gmra.mxu0 %v2163
    %v2165 = vpop.f32.mrf.mxu0
    %v2166 = vadd.f32 0.0, %v2165
    %2167 = vdwg.mxu0
    %2168 = vmatpush.msra.mxu0 0.0
    %2169 = vmatpush.msra.mxu0 0.0
    %2170 = vmatpush.msra.mxu0 0.0
    %2171 = vmatpush.msra.mxu0 0.0
    %2172 = vmatpush.msra.mxu0 0.0
    %2173 = vmatpush.msra.mxu0 0.0
    %2174 = vmatpush.msra.mxu0 0.0
    %2175 = vmatpush.msra.mxu0 0.0
    %v2176 = vand.u32 %v338, 4294901760
    %v2177 = vsub.f32 %v338, %v2176
    %v2178 = vand.u32 %v2177, 4294901760
    %v2179 = vsub.f32 %v2177, %v2178
    %v2180 = vand.u32 %v2179, 4294901760
    %2181 = vmatpush.msra.mxu0 %v2180
    %v2182 = vand.u32 %v337, 4294901760
    %v2183 = vsub.f32 %v337, %v2182
    %v2184 = vand.u32 %v2183, 4294901760
    %v2185 = vsub.f32 %v2183, %v2184
    %v2186 = vand.u32 %v2185, 4294901760
    %2187 = vmatpush.msra.mxu0 %v2186
    %v2188 = vand.u32 %v336, 4294901760
    %v2189 = vsub.f32 %v336, %v2188
    %v2190 = vand.u32 %v2189, 4294901760
    %v2191 = vsub.f32 %v2189, %v2190
    %v2192 = vand.u32 %v2191, 4294901760
    %2193 = vmatpush.msra.mxu0 %v2192
    %v2194 = vand.u32 %v335, 4294901760
    %v2195 = vsub.f32 %v335, %v2194
    %v2196 = vand.u32 %v2195, 4294901760
    %v2197 = vsub.f32 %v2195, %v2196
    %v2198 = vand.u32 %v2197, 4294901760
    %2199 = vmatpush.msra.mxu0 %v2198
    %v2200 = vand.u32 %v334, 4294901760
    %v2201 = vsub.f32 %v334, %v2200
    %v2202 = vand.u32 %v2201, 4294901760
    %v2203 = vsub.f32 %v2201, %v2202
    %v2204 = vand.u32 %v2203, 4294901760
    %2205 = vmatpush.msra.mxu0 %v2204
    %v2206 = vand.u32 %v333, 4294901760
    %v2207 = vsub.f32 %v333, %v2206
    %v2208 = vand.u32 %v2207, 4294901760
    %v2209 = vsub.f32 %v2207, %v2208
    %v2210 = vand.u32 %v2209, 4294901760
    %2211 = vmatpush.msra.mxu0 %v2210
    %v2212 = vand.u32 %v332, 4294901760
    %v2213 = vsub.f32 %v332, %v2212
    %v2214 = vand.u32 %v2213, 4294901760
    %v2215 = vsub.f32 %v2213, %v2214
    %v2216 = vand.u32 %v2215, 4294901760
    %2217 = vmatpush.msra.mxu0 %v2216
    %v2218 = vand.u32 %v331, 4294901760
    %v2219 = vsub.f32 %v331, %v2218
    %v2220 = vand.u32 %v2219, 4294901760
    %v2221 = vsub.f32 %v2219, %v2220
    %v2222 = vand.u32 %v2221, 4294901760
    %2223 = vmatpush.msra.mxu0 %v2222
    %v2224 = vand.u32 %v2122, 4294901760
    %2225 = vmatmul.f32.gmra.mxu0 %v2224
    %v2226 = vpop.f32.mrf.mxu0
    %v2227 = vadd.f32 %v2158, %v2226
    %v2228 = vand.u32 %v2125, 4294901760
    %2229 = vmatmul.f32.gmra.mxu0 %v2228
    %v2230 = vpop.f32.mrf.mxu0
    %v2231 = vadd.f32 %v2166, %v2230
    %2232 = vdwg.mxu0
    %2233 = vmatpush.msra.mxu0 0.0
    %2234 = vmatpush.msra.mxu0 0.0
    %2235 = vmatpush.msra.mxu0 0.0
    %2236 = vmatpush.msra.mxu0 0.0
    %2237 = vmatpush.msra.mxu0 0.0
    %2238 = vmatpush.msra.mxu0 0.0
    %2239 = vmatpush.msra.mxu0 0.0
    %2240 = vmatpush.msra.mxu0 0.0
    %v2241 = vand.u32 %v338, 4294901760
    %v2242 = vsub.f32 %v338, %v2241
    %2243 = vmatpush.msra.mxu0 %v2242
    %v2244 = vand.u32 %v337, 4294901760
    %v2245 = vsub.f32 %v337, %v2244
    %2246 = vmatpush.msra.mxu0 %v2245
    %v2247 = vand.u32 %v336, 4294901760
    %v2248 = vsub.f32 %v336, %v2247
    %2249 = vmatpush.msra.mxu0 %v2248
    %v2250 = vand.u32 %v335, 4294901760
    %v2251 = vsub.f32 %v335, %v2250
    %2252 = vmatpush.msra.mxu0 %v2251
    %v2253 = vand.u32 %v334, 4294901760
    %v2254 = vsub.f32 %v334, %v2253
    %2255 = vmatpush.msra.mxu0 %v2254
    %v2256 = vand.u32 %v333, 4294901760
    %v2257 = vsub.f32 %v333, %v2256
    %2258 = vmatpush.msra.mxu0 %v2257
    %v2259 = vand.u32 %v332, 4294901760
    %v2260 = vsub.f32 %v332, %v2259
    %2261 = vmatpush.msra.mxu0 %v2260
    %v2262 = vand.u32 %v331, 4294901760
    %v2263 = vsub.f32 %v331, %v2262
    %2264 = vmatpush.msra.mxu0 %v2263
    %v2265 = vand.u32 %v2122, 4294901760
    %v2266 = vsub.f32 %v2122, %v2265
    %2267 = vmatmul.f32.gmra.mxu0 %v2266
    %v2268 = vpop.f32.mrf.mxu0
    %v2269 = vadd.f32 %v2227, %v2268
    %v2270 = vand.u32 %v2125, 4294901760
    %v2271 = vsub.f32 %v2125, %v2270
    %2272 = vmatmul.f32.gmra.mxu0 %v2271
    %v2273 = vpop.f32.mrf.mxu0
    %v2274 = vadd.f32 %v2231, %v2273
    %2275 = vdwg.mxu0
    %2276 = vmatpush.msra.mxu0 0.0
    %2277 = vmatpush.msra.mxu0 0.0
    %2278 = vmatpush.msra.mxu0 0.0
    %2279 = vmatpush.msra.mxu0 0.0
    %2280 = vmatpush.msra.mxu0 0.0
    %2281 = vmatpush.msra.mxu0 0.0
    %2282 = vmatpush.msra.mxu0 0.0
    %2283 = vmatpush.msra.mxu0 0.0
    %v2284 = vand.u32 %v338, 4294901760
    %2285 = vmatpush.msra.mxu0 %v2284
    %v2286 = vand.u32 %v337, 4294901760
    %2287 = vmatpush.msra.mxu0 %v2286
    %v2288 = vand.u32 %v336, 4294901760
    %2289 = vmatpush.msra.mxu0 %v2288
    %v2290 = vand.u32 %v335, 4294901760
    %2291 = vmatpush.msra.mxu0 %v2290
    %v2292 = vand.u32 %v334, 4294901760
    %2293 = vmatpush.msra.mxu0 %v2292
    %v2294 = vand.u32 %v333, 4294901760
    %2295 = vmatpush.msra.mxu0 %v2294
    %v2296 = vand.u32 %v332, 4294901760
    %2297 = vmatpush.msra.mxu0 %v2296
    %v2298 = vand.u32 %v331, 4294901760
    %2299 = vmatpush.msra.mxu0 %v2298
    %v2300 = vand.u32 %v2122, 4294901760
    %v2301 = vsub.f32 %v2122, %v2300
    %v2302 = vand.u32 %v2301, 4294901760
    %2303 = vmatmul.f32.gmra.mxu0 %v2302
    %v2304 = vpop.f32.mrf.mxu0
    %v2305 = vadd.f32 %v2269, %v2304
    %v2306 = vand.u32 %v2125, 4294901760
    %v2307 = vsub.f32 %v2125, %v2306
    %v2308 = vand.u32 %v2307, 4294901760
    %2309 = vmatmul.f32.gmra.mxu0 %v2308
    %v2310 = vpop.f32.mrf.mxu0
    %v2311 = vadd.f32 %v2274, %v2310
    %2312 = vdwg.mxu0
    %2313 = vmatpush.msra.mxu0 0.0
    %2314 = vmatpush.msra.mxu0 0.0
    %2315 = vmatpush.msra.mxu0 0.0
    %2316 = vmatpush.msra.mxu0 0.0
    %2317 = vmatpush.msra.mxu0 0.0
    %2318 = vmatpush.msra.mxu0 0.0
    %2319 = vmatpush.msra.mxu0 0.0
    %2320 = vmatpush.msra.mxu0 0.0
    %v2321 = vand.u32 %v338, 4294901760
    %v2322 = vsub.f32 %v338, %v2321
    %v2323 = vand.u32 %v2322, 4294901760
    %2324 = vmatpush.msra.mxu0 %v2323
    %v2325 = vand.u32 %v337, 4294901760
    %v2326 = vsub.f32 %v337, %v2325
    %v2327 = vand.u32 %v2326, 4294901760
    %2328 = vmatpush.msra.mxu0 %v2327
    %v2329 = vand.u32 %v336, 4294901760
    %v2330 = vsub.f32 %v336, %v2329
    %v2331 = vand.u32 %v2330, 4294901760
    %2332 = vmatpush.msra.mxu0 %v2331
    %v2333 = vand.u32 %v335, 4294901760
    %v2334 = vsub.f32 %v335, %v2333
    %v2335 = vand.u32 %v2334, 4294901760
    %2336 = vmatpush.msra.mxu0 %v2335
    %v2337 = vand.u32 %v334, 4294901760
    %v2338 = vsub.f32 %v334, %v2337
    %v2339 = vand.u32 %v2338, 4294901760
    %2340 = vmatpush.msra.mxu0 %v2339
    %v2341 = vand.u32 %v333, 4294901760
    %v2342 = vsub.f32 %v333, %v2341
    %v2343 = vand.u32 %v2342, 4294901760
    %2344 = vmatpush.msra.mxu0 %v2343
    %v2345 = vand.u32 %v332, 4294901760
    %v2346 = vsub.f32 %v332, %v2345
    %v2347 = vand.u32 %v2346, 4294901760
    %2348 = vmatpush.msra.mxu0 %v2347
    %v2349 = vand.u32 %v331, 4294901760
    %v2350 = vsub.f32 %v331, %v2349
    %v2351 = vand.u32 %v2350, 4294901760
    %2352 = vmatpush.msra.mxu0 %v2351
    %v2353 = vand.u32 %v2122, 4294901760
    %2354 = vmatmul.f32.gmra.mxu0 %v2353
    %v2355 = vpop.f32.mrf.mxu0
    %v2356 = vadd.f32 %v2305, %v2355
    %v2357 = vand.u32 %v2125, 4294901760
    %2358 = vmatmul.f32.gmra.mxu0 %v2357
    %v2359 = vpop.f32.mrf.mxu0
    %v2360 = vadd.f32 %v2311, %v2359
    %2361 = vdwg.mxu0
    %2362 = vmatpush.msra.mxu0 0.0
    %2363 = vmatpush.msra.mxu0 0.0
    %2364 = vmatpush.msra.mxu0 0.0
    %2365 = vmatpush.msra.mxu0 0.0
    %2366 = vmatpush.msra.mxu0 0.0
    %2367 = vmatpush.msra.mxu0 0.0
    %2368 = vmatpush.msra.mxu0 0.0
    %2369 = vmatpush.msra.mxu0 0.0
    %v2370 = vand.u32 %v338, 4294901760
    %2371 = vmatpush.msra.mxu0 %v2370
    %v2372 = vand.u32 %v337, 4294901760
    %2373 = vmatpush.msra.mxu0 %v2372
    %v2374 = vand.u32 %v336, 4294901760
    %2375 = vmatpush.msra.mxu0 %v2374
    %v2376 = vand.u32 %v335, 4294901760
    %2377 = vmatpush.msra.mxu0 %v2376
    %v2378 = vand.u32 %v334, 4294901760
    %2379 = vmatpush.msra.mxu0 %v2378
    %v2380 = vand.u32 %v333, 4294901760
    %2381 = vmatpush.msra.mxu0 %v2380
    %v2382 = vand.u32 %v332, 4294901760
    %2383 = vmatpush.msra.mxu0 %v2382
    %v2384 = vand.u32 %v331, 4294901760
    %2385 = vmatpush.msra.mxu0 %v2384
    %v2386 = vand.u32 %v2122, 4294901760
    %2387 = vmatmul.f32.gmra.mxu0 %v2386
    %v2388 = vpop.f32.mrf.mxu0
    %v2389 = vadd.f32 %v2356, %v2388
    %v2390 = vand.u32 %v2125, 4294901760
    %2391 = vmatmul.f32.gmra.mxu0 %v2390
    %v2392 = vpop.f32.mrf.mxu0
    %v2393 = vadd.f32 %v2360, %v2392
    %2394 = vdwg.mxu0
    %v2395 = vmul.f32 %v2389, %v1203
    %v2396 = vmul.f32 %v2393, %v1203
    %v2397 = vmul.f32 %v2395, %v2395
    %v2398 = vsub.f32 %v2396, %v2397
    %v2399 = vmax.f32 %v2398, 0.0
    %v2400 = vadd.f32 %v2399, 1e-06
    %v2401 = vrsqrt.pop %v2400
    %v2402 = vmul.f32 %v2401, %v2400
    %v2403 = vmul.f32 %v2402, %v2401
    %v2404 = vmul.f32 0.5, %v2403
    %v2405 = vsub.f32 1.5, %v2404
    %v2406 = vmul.f32 %v2401, %v2405
    %vm2407 = vweird.f32 %v2400
    %vm2408 = vweird.f32 %v2401
    %vm2409 = vmor %vm2407, %vm2408
    %v2410 = vsel %vm2409, %v2401, %v2406
    %v2412 = vsel %vm638, %v2395, 0
    %v2415 = vsel %vm638, %v2410, 0
    %2417 = vmatpush.msra.mxu0 0.0
    %2418 = vmatpush.msra.mxu0 0.0
    %2419 = vmatpush.msra.mxu0 0.0
    %2420 = vmatpush.msra.mxu0 0.0
    %2421 = vmatpush.msra.mxu0 0.0
    %2422 = vmatpush.msra.mxu0 0.0
    %2423 = vmatpush.msra.mxu0 0.0
    %2424 = vmatpush.msra.mxu0 0.0
    %2425 = vmatpush.msra.mxu0 0.0
    %2426 = vmatpush.msra.mxu0 0.0
    %2427 = vmatpush.msra.mxu0 0.0
    %2428 = vmatpush.msra.mxu0 0.0
    %2429 = vmatpush.msra.mxu0 0.0
    %2430 = vmatpush.msra.mxu0 0.0
    %2431 = vmatpush.msra.mxu0 0.0
    %v2432 = vand.u32 %v1227, 4294901760
    %2433 = vmatpush.msra.mxu0 %v2432
    %v2434 = vand.u32 %v2412, 4294901760
    %v2435 = vsub.f32 %v2412, %v2434
    %v2436 = vand.u32 %v2435, 4294901760
    %v2437 = vsub.f32 %v2435, %v2436
    %v2438 = vand.u32 %v2437, 4294901760
    %2439 = vmatmul.f32.gmra.mxu0 %v2438
    %v2440 = vpop.f32.mrf.mxu0
    %v2441 = vadd.f32 0.0, %v2440
    %v2442 = vand.u32 %v2415, 4294901760
    %v2443 = vsub.f32 %v2415, %v2442
    %v2444 = vand.u32 %v2443, 4294901760
    %v2445 = vsub.f32 %v2443, %v2444
    %v2446 = vand.u32 %v2445, 4294901760
    %2447 = vmatmul.f32.gmra.mxu0 %v2446
    %v2448 = vpop.f32.mrf.mxu0
    %v2449 = vadd.f32 0.0, %v2448
    %2450 = vdwg.mxu0
    %2451 = vmatpush.msra.mxu0 0.0
    %2452 = vmatpush.msra.mxu0 0.0
    %2453 = vmatpush.msra.mxu0 0.0
    %2454 = vmatpush.msra.mxu0 0.0
    %2455 = vmatpush.msra.mxu0 0.0
    %2456 = vmatpush.msra.mxu0 0.0
    %2457 = vmatpush.msra.mxu0 0.0
    %2458 = vmatpush.msra.mxu0 0.0
    %2459 = vmatpush.msra.mxu0 0.0
    %2460 = vmatpush.msra.mxu0 0.0
    %2461 = vmatpush.msra.mxu0 0.0
    %2462 = vmatpush.msra.mxu0 0.0
    %2463 = vmatpush.msra.mxu0 0.0
    %2464 = vmatpush.msra.mxu0 0.0
    %2465 = vmatpush.msra.mxu0 0.0
    %v2466 = vand.u32 %v1227, 4294901760
    %v2467 = vsub.f32 %v1227, %v2466
    %v2468 = vand.u32 %v2467, 4294901760
    %v2469 = vsub.f32 %v2467, %v2468
    %v2470 = vand.u32 %v2469, 4294901760
    %2471 = vmatpush.msra.mxu0 %v2470
    %v2472 = vand.u32 %v2412, 4294901760
    %2473 = vmatmul.f32.gmra.mxu0 %v2472
    %v2474 = vpop.f32.mrf.mxu0
    %v2475 = vadd.f32 %v2441, %v2474
    %v2476 = vand.u32 %v2415, 4294901760
    %2477 = vmatmul.f32.gmra.mxu0 %v2476
    %v2478 = vpop.f32.mrf.mxu0
    %v2479 = vadd.f32 %v2449, %v2478
    %2480 = vdwg.mxu0
    %2481 = vmatpush.msra.mxu0 0.0
    %2482 = vmatpush.msra.mxu0 0.0
    %2483 = vmatpush.msra.mxu0 0.0
    %2484 = vmatpush.msra.mxu0 0.0
    %2485 = vmatpush.msra.mxu0 0.0
    %2486 = vmatpush.msra.mxu0 0.0
    %2487 = vmatpush.msra.mxu0 0.0
    %2488 = vmatpush.msra.mxu0 0.0
    %2489 = vmatpush.msra.mxu0 0.0
    %2490 = vmatpush.msra.mxu0 0.0
    %2491 = vmatpush.msra.mxu0 0.0
    %2492 = vmatpush.msra.mxu0 0.0
    %2493 = vmatpush.msra.mxu0 0.0
    %2494 = vmatpush.msra.mxu0 0.0
    %2495 = vmatpush.msra.mxu0 0.0
    %v2496 = vand.u32 %v1227, 4294901760
    %v2497 = vsub.f32 %v1227, %v2496
    %2498 = vmatpush.msra.mxu0 %v2497
    %v2499 = vand.u32 %v2412, 4294901760
    %v2500 = vsub.f32 %v2412, %v2499
    %2501 = vmatmul.f32.gmra.mxu0 %v2500
    %v2502 = vpop.f32.mrf.mxu0
    %v2503 = vadd.f32 %v2475, %v2502
    %v2504 = vand.u32 %v2415, 4294901760
    %v2505 = vsub.f32 %v2415, %v2504
    %2506 = vmatmul.f32.gmra.mxu0 %v2505
    %v2507 = vpop.f32.mrf.mxu0
    %v2508 = vadd.f32 %v2479, %v2507
    %2509 = vdwg.mxu0
    %2510 = vmatpush.msra.mxu0 0.0
    %2511 = vmatpush.msra.mxu0 0.0
    %2512 = vmatpush.msra.mxu0 0.0
    %2513 = vmatpush.msra.mxu0 0.0
    %2514 = vmatpush.msra.mxu0 0.0
    %2515 = vmatpush.msra.mxu0 0.0
    %2516 = vmatpush.msra.mxu0 0.0
    %2517 = vmatpush.msra.mxu0 0.0
    %2518 = vmatpush.msra.mxu0 0.0
    %2519 = vmatpush.msra.mxu0 0.0
    %2520 = vmatpush.msra.mxu0 0.0
    %2521 = vmatpush.msra.mxu0 0.0
    %2522 = vmatpush.msra.mxu0 0.0
    %2523 = vmatpush.msra.mxu0 0.0
    %2524 = vmatpush.msra.mxu0 0.0
    %v2525 = vand.u32 %v1227, 4294901760
    %2526 = vmatpush.msra.mxu0 %v2525
    %v2527 = vand.u32 %v2412, 4294901760
    %v2528 = vsub.f32 %v2412, %v2527
    %v2529 = vand.u32 %v2528, 4294901760
    %2530 = vmatmul.f32.gmra.mxu0 %v2529
    %v2531 = vpop.f32.mrf.mxu0
    %v2532 = vadd.f32 %v2503, %v2531
    %v2533 = vand.u32 %v2415, 4294901760
    %v2534 = vsub.f32 %v2415, %v2533
    %v2535 = vand.u32 %v2534, 4294901760
    %2536 = vmatmul.f32.gmra.mxu0 %v2535
    %v2537 = vpop.f32.mrf.mxu0
    %v2538 = vadd.f32 %v2508, %v2537
    %2539 = vdwg.mxu0
    %2540 = vmatpush.msra.mxu0 0.0
    %2541 = vmatpush.msra.mxu0 0.0
    %2542 = vmatpush.msra.mxu0 0.0
    %2543 = vmatpush.msra.mxu0 0.0
    %2544 = vmatpush.msra.mxu0 0.0
    %2545 = vmatpush.msra.mxu0 0.0
    %2546 = vmatpush.msra.mxu0 0.0
    %2547 = vmatpush.msra.mxu0 0.0
    %2548 = vmatpush.msra.mxu0 0.0
    %2549 = vmatpush.msra.mxu0 0.0
    %2550 = vmatpush.msra.mxu0 0.0
    %2551 = vmatpush.msra.mxu0 0.0
    %2552 = vmatpush.msra.mxu0 0.0
    %2553 = vmatpush.msra.mxu0 0.0
    %2554 = vmatpush.msra.mxu0 0.0
    %v2555 = vand.u32 %v1227, 4294901760
    %v2556 = vsub.f32 %v1227, %v2555
    %v2557 = vand.u32 %v2556, 4294901760
    %2558 = vmatpush.msra.mxu0 %v2557
    %v2559 = vand.u32 %v2412, 4294901760
    %2560 = vmatmul.f32.gmra.mxu0 %v2559
    %v2561 = vpop.f32.mrf.mxu0
    %v2562 = vadd.f32 %v2532, %v2561
    %v2563 = vand.u32 %v2415, 4294901760
    %2564 = vmatmul.f32.gmra.mxu0 %v2563
    %v2565 = vpop.f32.mrf.mxu0
    %v2566 = vadd.f32 %v2538, %v2565
    %2567 = vdwg.mxu0
    %2568 = vmatpush.msra.mxu0 0.0
    %2569 = vmatpush.msra.mxu0 0.0
    %2570 = vmatpush.msra.mxu0 0.0
    %2571 = vmatpush.msra.mxu0 0.0
    %2572 = vmatpush.msra.mxu0 0.0
    %2573 = vmatpush.msra.mxu0 0.0
    %2574 = vmatpush.msra.mxu0 0.0
    %2575 = vmatpush.msra.mxu0 0.0
    %2576 = vmatpush.msra.mxu0 0.0
    %2577 = vmatpush.msra.mxu0 0.0
    %2578 = vmatpush.msra.mxu0 0.0
    %2579 = vmatpush.msra.mxu0 0.0
    %2580 = vmatpush.msra.mxu0 0.0
    %2581 = vmatpush.msra.mxu0 0.0
    %2582 = vmatpush.msra.mxu0 0.0
    %v2583 = vand.u32 %v1227, 4294901760
    %2584 = vmatpush.msra.mxu0 %v2583
    %v2585 = vand.u32 %v2412, 4294901760
    %2586 = vmatmul.f32.gmra.mxu0 %v2585
    %v2587 = vpop.f32.mrf.mxu0
    %v2588 = vadd.f32 %v2562, %v2587
    %v2589 = vand.u32 %v2415, 4294901760
    %2590 = vmatmul.f32.gmra.mxu0 %v2589
    %v2591 = vpop.f32.mrf.mxu0
    %v2592 = vadd.f32 %v2566, %v2591
    %2593 = vdwg.mxu0
    %v2594 = vsub.f32 %v2119, %v2588
    %v2595 = vmul.f32 %v2594, %v2592
    %v2597 = vperm.slane %v1531, 0
    %v2599 = vmul.f32 %v2595, %v2597
    %v2601 = vperm.slane %v1532, 0
    %v2603 = vadd.f32 %v2599, %v2601
    %v2604 = vxor.u32 %v2603, 2147483648
    %v2605 = vmul.f32 %v2604, 1.442695
    %v2606 = vpow.pop %v2605
    %v2607 = vadd.f32 %v2606, 1.0
    %v2608 = vrcp.pop %v2607
    %v2609 = vmul.f32 %v2607, %v2608
    %v2610 = vsub.f32 1.0, %v2609
    %v2611 = vmul.f32 %v2608, %v2610
    %v2612 = vadd.f32 %v2608, %v2611
    %vm2613 = vweird.f32 %v2607
    %vm2614 = vweird.f32 %v2608
    %vm2615 = vmor %vm2613, %vm2614
    %v2616 = vsel %vm2615, %v2608, %v2612
    %v2617 = vand.u32 2147483647, %v2607
    %vm2618 = vcmp.eq.f32.partialorder %v2617, 8.507059e+37
    %v2619 = vand.u32 %v2607, 2147483648
    %v2620 = vor.u32 1.1754944e-38, %v2619
    %v2621 = vsel %vm2618, %v2620, %v2616
    %v2622 = vmul.f32 1.0, %v2621
    %v2623 = vmul.f32 %v2603, %v2622
    %v2624 = vpack.c.bf16 %v2623, %v2623
    %v2626 = vperm.slane %v1541, 0
    %v2636 = vunpack.c.l.b16 %v1533
    %v2637 = vunpack.c.l.b16 %v1534
    %v2638 = vunpack.c.l.b16 %v1535
    %v2639 = vunpack.c.l.b16 %v1536
    %v2640 = vunpack.c.l.b16 %v1537
    %v2641 = vunpack.c.l.b16 %v1538
    %v2642 = vunpack.c.l.b16 %v1539
    %v2643 = vunpack.c.l.b16 %v1540
    %v2644 = vpack.c.b16 %v2637, %v2636
    %v2645 = vpack.c.b16 %v2639, %v2638
    %v2646 = vpack.c.b16 %v2641, %v2640
    %v2647 = vpack.c.b16 %v2643, %v2642
    %v2653 = vsel %vm922, %v2624, 0
    %2655 = vmatpush.bf16.msra.mxu0 0
    %2656 = vmatpush.bf16.msra.mxu0 0
    %2657 = vmatpush.bf16.msra.mxu0 0
    %2658 = vmatpush.bf16.msra.mxu0 0
    %2659 = vmatpush.bf16.msra.mxu0 %v2647
    %2660 = vmatpush.bf16.msra.mxu0 %v2646
    %2661 = vmatpush.bf16.msra.mxu0 %v2645
    %2662 = vmatpush.bf16.msra.mxu0 %v2644
    %2663 = vmatmul.bf16.gmra.mxu0 %v2653
    %v2664 = vpop.f32.mrf.mxu0
    %v2665 = vadd.f32 %v2626, %v2664
    %v2666 = vpop.f32.mrf.mxu0
    %2667 = vdwg.mxu0
    %v2668 = vadd.f32 %v1512, %v2665
    %v2669 = vsel %vm922, %v2668, 0.0
    %s2670 = scalar_lea.vmem [#allocation25], 8
    %2671 = vst [vmem:[%s2670] sm:$0xff] %v2669
    %v2672 = vld [vmem:[#allocation23] sm:$0xf]
    %v2673 = vld [vmem:[#allocation23 + $0x4] sm:$0xf]
    %v2674 = vld [vmem:[#allocation23 + $0x8] sm:$0xf]
    %v2675 = vld [vmem:[#allocation23 + $0xc] sm:$0xf]
    %v2676 = vld [vmem:[#allocation23 + $0x10] sm:$0xf]
    %v2677 = vld [vmem:[#allocation23 + $0x14] sm:$0xf]
    %v2678 = vld [vmem:[#allocation23 + $0x18] sm:$0xf]
    %v2679 = vld [vmem:[#allocation23 + $0x1c] sm:$0xf]
    %v2680 = vld [vmem:[%s59] sm:$0x1]
    %v2681 = vpack.c.bf16 %v2668, %v2668
    %v2683 = vperm.slane %v2680, 0
    %v2693 = vunpack.c.l.b16 %v2672
    %v2694 = vunpack.c.l.b16 %v2673
    %v2695 = vunpack.c.l.b16 %v2674
    %v2696 = vunpack.c.l.b16 %v2675
    %v2697 = vunpack.c.l.b16 %v2676
    %v2698 = vunpack.c.l.b16 %v2677
    %v2699 = vunpack.c.l.b16 %v2678
    %v2700 = vunpack.c.l.b16 %v2679
    %v2701 = vpack.c.b16 %v2694, %v2693
    %v2702 = vpack.c.b16 %v2696, %v2695
    %v2703 = vpack.c.b16 %v2698, %v2697
    %v2704 = vpack.c.b16 %v2700, %v2699
    %v2710 = vsel %vm922, %v2681, 0
    %2712 = vmatpush.bf16.msra.mxu0 0
    %2713 = vmatpush.bf16.msra.mxu0 0
    %2714 = vmatpush.bf16.msra.mxu0 0
    %2715 = vmatpush.bf16.msra.mxu0 0
    %2716 = vmatpush.bf16.msra.mxu0 %v2704
    %2717 = vmatpush.bf16.msra.mxu0 %v2703
    %2718 = vmatpush.bf16.msra.mxu0 %v2702
    %2719 = vmatpush.bf16.msra.mxu0 %v2701
    %2720 = vmatmul.bf16.gmra.mxu0 %v2710
    %v2721 = vpop.f32.mrf.mxu0
    %v2722 = vadd.f32 %v2683, %v2721
    %v2723 = vpop.f32.mrf.mxu0
    %2724 = vdwg.mxu0
    %v2725 = vsel %vm922, %v2722, 0.0
    %s2726 = scalar_lea.vmem [#allocation25], 16
    %2727 = vst [vmem:[%s2726] sm:$0xff] %v2725
    // Predicated region
    $region178: #{tpu_custom_call.1} parent=1 // pred_check
      _
    $region179: #{tpu_custom_call.1} parent=1 // pred_check_branch
      %2729 = sbr.rel (0) target = $region181
    $region180: #{tpu_custom_call.1} parent=1 // pred_region
      %2731 = vsyncadd [#allocation4], 0
      %s2732 = sshll.u32 [#allocation25], 4
      %s2733 = int_to_ptr.vmem [resolvable:$true] %s2732
      %s2734 = sshll.u32 %s61, 4
      %s2735 = int_to_ptr.hbm [resolvable:$true] %s2734
      %2740 = dma.vmem_to_hbm [thread:$0]  %s2733, 384, %s2735, [#allocation4], 128, 128, 8
    $region181: #{tpu_custom_call.1} parent=1 // pred_fallthru
      _
    // Predicated region
    $region182: #{tpu_custom_call.1} parent=1 // pred_check
      _
    $region183: #{tpu_custom_call.1} parent=1 // pred_check_branch
      %2742 = sbr.rel (0) target = $region185
    $region184: #{tpu_custom_call.1} parent=1 // pred_region
      %2744 = dma.done [#allocation4], 384
    $region185: #{tpu_custom_call.1} parent=1 // pred_fallthru
      _
    %2745 = vsyncpa [#allocation3], 1
    %2746 = vsyncpa [#allocation6], 1
    %2747 = vsyncpa [#allocation9], 1
    %2748 = vsyncpa [#allocation12], 1
    %2749 = vsyncpa [#allocation15], 1
    %2750 = vsyncpa [#allocation18], 1
    %2751 = vsyncpa [#allocation21], 1
    %2752 = vsyncpa [#allocation24], 1
    %2753 = vsyncpa [#allocation4], 1

</llo_original>
